<compile_context>
chip_gen: v7x
topology: tpu7x:2x2x1
jax: 0.10.0
libtpu: 0.0.40
codegen_flags: <defaults>
</compile_context>

<pallas_src>
import math

import jax
import jax.numpy as jnp
from jax.experimental import pallas as pl
from jax.experimental.pallas import tpu as pltpu

# ---------------- model hyper-parameters (small, BERT-like) ----------------
SEQ = 8          # sequence length (tokenizer output length, batch = 1)
HIDDEN = 32      # hidden size
NUM_HEADS = 4
HEAD_DIM = HIDDEN // NUM_HEADS
INTER = 64       # FFN intermediate size (4 * hidden)
NUM_LAYERS = 2   # encoder layers -> hidden_states has NUM_LAYERS + 1 entries
VOCAB = 128
LAYERS_TO_CONCAT = (0, 1, 2)   # `self.layers` of REncoder
LN_EPS = 1e-12
OUT_WIDTH = len(LAYERS_TO_CONCAT) * HIDDEN
_OUT_SLOT = {layer: i for i, layer in enumerate(LAYERS_TO_CONCAT)}


# --------------------------- in-kernel helpers ------------------------------
def _layer_norm(x, gamma, beta):
    mu = jnp.mean(x, axis=-1, keepdims=True)
    var = jnp.mean((x - mu) * (x - mu), axis=-1, keepdims=True)
    return (x - mu) * jax.lax.rsqrt(var + LN_EPS) * gamma + beta


def _gelu(x):
    # TODO(synk): HF BERT uses exact erf-GELU; tanh approximation keeps the
    # activation on the EUP transcendental path with a guaranteed lowering.
    c = math.sqrt(2.0 / math.pi)
    return 0.5 * x * (1.0 + jnp.tanh(c * (x + 0.044715 * x * x * x)))


def _qkv_idx(li, c, hh):
    """Row index into the flattened (NL*3*NH, ...) per-head QKV weight slab."""
    return (li * 3 + c) * NUM_HEADS + hh


# --------------------- fused Pallas encoder-stack kernel --------------------
def fused_encoder_kernel(ids_ref, tt_ref, mask_ref,
                         word_ref, type_ref, pos_ref, embln_ref,
                         wqkv_ref, bqkv_ref, wo_ref, wi_ref, wf_ref, bi_ref,
                         vec_ref, out_ref):
    """Whole forward in one invocation; hidden state never leaves VMEM."""

    def store_hidden(hs_idx, h):                   # static Python decision
        if hs_idx in _OUT_SLOT:
            out_ref[_OUT_SLOT[hs_idx]] = h         # full (SEQ, HIDDEN) block store

    # ---- fused embedding lookup: one-hot MXU gather (no XLA gather op) ----
    onehot = (ids_ref[...] ==
              jax.lax.broadcasted_iota(jnp.int32, (SEQ, VOCAB), 1)
              ).astype(jnp.float32)                                     # (S, V)
    emb = jnp.dot(onehot, word_ref[...], preferred_element_type=jnp.float32)
    tt = tt_ref[...].astype(jnp.float32)                                # (S, 1) in {0,1}
    emb = emb + type_ref[0:1, :] + tt * (type_ref[1:2, :] - type_ref[0:1, :])
    emb = emb + pos_ref[...]

    # hidden_states[0]: embedding LayerNorm output
    h = _layer_norm(emb, embln_ref[0:1, :], embln_ref[1:2, :])
    store_hidden(0, h)

    # HF-style additive key mask, computed in-kernel: (1 - mask) * -10000
    mask_bias = (1.0 - mask_ref[...].astype(jnp.float32)) * -10000.0    # (1, S)

    for li in range(NUM_LAYERS):                   # static, unrolled layer loop
        vecs = vec_ref[li]                         # (6, H): bo, g1, b1, bf, g2, b2
        bo, g1, b1 = vecs[0:1, :], vecs[1:2, :], vecs[2:3, :]
        bf, g2, b2 = vecs[3:4, :], vecs[4:5, :], vecs[5:6, :]

        # --- attention: static per-head loop over host-pre-split weights.
        # No lane slices / stacks / concats in-kernel; 1/sqrt(HEAD_DIM) is
        # baked into the Q weights at init.
        attn = jnp.zeros((SEQ, HIDDEN), jnp.float32)
        for hh in range(NUM_HEADS):
            qi, ki, vi = (_qkv_idx(li, c, hh) for c in range(3))
            q = jnp.dot(h, wqkv_ref[qi], preferred_element_type=jnp.float32) + bqkv_ref[qi]
            k = jnp.dot(h, wqkv_ref[ki], preferred_element_type=jnp.float32) + bqkv_ref[ki]
            v = jnp.dot(h, wqkv_ref[vi], preferred_element_type=jnp.float32) + bqkv_ref[vi]

            s = jax.lax.dot_general(q, k, (((1,), (1,)), ((), ())),
                                    preferred_element_type=jnp.float32)   # (S, S)
            s = s + mask_bias
            s = s - jnp.max(s, axis=-1, keepdims=True)
            p = jnp.exp(s)
            p = p * pl.reciprocal(jnp.sum(p, axis=-1, keepdims=True),
                                  approx=True)                            # EUP, not VPU
            ctx = jnp.dot(p, v, preferred_element_type=jnp.float32)       # (S, HD)
            attn = attn + jnp.dot(ctx, wo_ref[li * NUM_HEADS + hh],
                                  preferred_element_type=jnp.float32)     # (S, H)

        h1 = _layer_norm(attn + bo + h, g1, b1)

        # --- feed-forward ---
        inter = _gelu(jnp.dot(h1, wi_ref[li], preferred_element_type=jnp.float32)
                      + bi_ref[li])
        ffn = jnp.dot(inter, wf_ref[li], preferred_element_type=jnp.float32) + bf
        h = _layer_norm(ffn + h1, g2, b2)

        store_hidden(li + 1, h)


_IN_COUNT = 14
_fused_encoder = pl.pallas_call(
    fused_encoder_kernel,
    # Lane-friendly slab output: (num_selected_layers, SEQ, HIDDEN); the final
    # concat along the last dim is a transpose+reshape in the wrapper.
    out_shape=jax.ShapeDtypeStruct((len(LAYERS_TO_CONCAT), SEQ, HIDDEN), jnp.float32),
    # No grid: single invocation, whole (tiny) arrays VMEM-resident.
    in_specs=[pl.BlockSpec(memory_space=pltpu.MemorySpace.VMEM)] * _IN_COUNT,
    out_specs=pl.BlockSpec(memory_space=pltpu.MemorySpace.VMEM),
)


# ----------------------------- parameter setup ------------------------------
def init_params(key):
    def nrm(k, shape):
        return 0.02 * jax.random.normal(k, shape, dtype=jnp.float32)

    keys = jax.random.split(key, 3 + NUM_LAYERS)
    scale = 1.0 / math.sqrt(HEAD_DIM)
    params = {
        "word_emb": nrm(keys[0], (VOCAB, HIDDEN)),
        "type_emb": nrm(keys[1], (2, HIDDEN)),
        "pos_emb": nrm(keys[2], (SEQ, HIDDEN)),
        # rows: [gamma, beta] of the embedding LayerNorm
        "emb_ln": jnp.stack([jnp.ones(HIDDEN), jnp.zeros(HIDDEN)]).astype(jnp.float32),
    }
    wqkv, bqkv, wo, wi, wf, bi, vecs = [], [], [], [], [], [], []
    for li in range(NUM_LAYERS):
        lk = jax.random.split(keys[3 + li], 4)
        # head-split QKV weights (3, NH, H, HD); fold 1/sqrt(HD) into Q weights+bias
        w = nrm(lk[0], (3, NUM_HEADS, HIDDEN, HEAD_DIM))
        w = w.at[0].multiply(scale)
        b = jnp.zeros((3, NUM_HEADS, 1, HEAD_DIM), jnp.float32)
        b = b.at[0].multiply(scale)
        wqkv.append(w.reshape(3 * NUM_HEADS, HIDDEN, HEAD_DIM))
        bqkv.append(b.reshape(3 * NUM_HEADS, 1, HEAD_DIM))
        wo.append(nrm(lk[1], (NUM_HEADS, HEAD_DIM, HIDDEN)))   # per-head output proj
        wi.append(nrm(lk[2], (HIDDEN, INTER)))
        wf.append(nrm(lk[3], (INTER, HIDDEN)))
        bi.append(jnp.zeros((1, INTER), jnp.float32))
        # packed (6, H) slab: bo, ln1_gamma, ln1_beta, bf, ln2_gamma, ln2_beta
        vecs.append(jnp.stack([jnp.zeros(HIDDEN), jnp.ones(HIDDEN), jnp.zeros(HIDDEN),
                               jnp.zeros(HIDDEN), jnp.ones(HIDDEN), jnp.zeros(HIDDEN)]
                              ).astype(jnp.float32))
    params.update({
        "wqkv": jnp.concatenate(wqkv),     # (NL*3*NH, H, HD)
        "bqkv": jnp.concatenate(bqkv),     # (NL*3*NH, 1, HD)
        "wo": jnp.concatenate(wo),         # (NL*NH, HD, H)
        "wi": jnp.stack(wi), "wf": jnp.stack(wf), "bi": jnp.stack(bi),
        "vecs": jnp.stack(vecs),
    })
    return params


# ------------------------------ REncoder.forward ----------------------------
@jax.jit
def encode(params, input_ids, token_type_ids, attention_mask):
    # only layout plumbing here -- gather, mask bias and all math are in-kernel
    ids = input_ids.astype(jnp.int32).reshape(SEQ, 1)
    tt = token_type_ids.astype(jnp.int32).reshape(SEQ, 1)
    mask = attention_mask.astype(jnp.int32).reshape(1, SEQ)
    slab = _fused_encoder(ids, tt, mask,
                          params["word_emb"], params["type_emb"], params["pos_emb"],
                          params["emb_ln"], params["wqkv"], params["bqkv"],
                          params["wo"], params["wi"], params["wf"], params["bi"],
                          params["vecs"])
    # (L, S, H) -> (S, L*H): mirrors torch.cat(hidden_states[layer], -1).squeeze(0)
    return jnp.transpose(slab, (1, 0, 2)).reshape(SEQ, OUT_WIDTH)


def rencoder_forward(params, input_ids, token_type_ids, attention_mask):
    """Returns (tokens, final_state); mirrors REncoder.forward with batch=1."""
    final_state = encode(params, input_ids, token_type_ids, attention_mask)
    # TODO(synk): tokenizer string ops have no Pallas equivalent; synthetic stand-in.
    tokens = ["[CLS]"] + [f"tok_{int(i)}" for i in input_ids[1:-1]] + ["[SEP]"]
    return tokens, final_state


# ----------------------------------- main ------------------------------------
if __name__ == "__main__":
    key = jax.random.PRNGKey(0)
    pkey, ikey = jax.random.split(key)
    params = init_params(pkey)

    # synthetic tokenizer output: batch of one sentence, SEQ token ids
    input_ids = jax.random.randint(ikey, (SEQ,), 0, VOCAB, dtype=jnp.int32)
    token_type_ids = jnp.zeros((SEQ,), jnp.int32)
    attention_mask = jnp.ones((SEQ,), jnp.int32)

    tokens, final_state = rencoder_forward(params, input_ids, token_type_ids,
                                           attention_mask)
    final_state = jax.block_until_ready(final_state)

    expected = (SEQ, OUT_WIDTH)
    assert final_state.shape == expected, (final_state.shape, expected)
    assert final_state.dtype == jnp.float32
    assert bool(jnp.all(jnp.isfinite(final_state)))
    assert len(tokens) == SEQ
    print("KERNEL_OK")
</pallas_src>

<mosaic_0001>
module attributes {stable_mosaic.version = 11 : i64} {
  func.func @fused_encoder_kernel(%arg0: memref<8x1xi32, #tpu.memory_space<vmem>>, %arg1: memref<8x1xi32, #tpu.memory_space<vmem>>, %arg2: memref<1x8xi32, #tpu.memory_space<vmem>>, %arg3: memref<128x32xf32, #tpu.memory_space<vmem>>, %arg4: memref<2x32xf32, #tpu.memory_space<vmem>>, %arg5: memref<8x32xf32, #tpu.memory_space<vmem>>, %arg6: memref<2x32xf32, #tpu.memory_space<vmem>>, %arg7: memref<24x32x8xf32, #tpu.memory_space<vmem>>, %arg8: memref<24x1x8xf32, #tpu.memory_space<vmem>>, %arg9: memref<8x8x32xf32, #tpu.memory_space<vmem>>, %arg10: memref<2x32x64xf32, #tpu.memory_space<vmem>>, %arg11: memref<2x64x32xf32, #tpu.memory_space<vmem>>, %arg12: memref<2x1x64xf32, #tpu.memory_space<vmem>>, %arg13: memref<2x6x32xf32, #tpu.memory_space<vmem>>, %arg14: memref<3x8x32xf32, #tpu.memory_space<vmem>>) attributes {dimension_semantics = [], scalar_prefetch = 0 : i64, scratch_operands = 0 : i64, tpu.core_type = #tpu.core_type<tc>} {
    %c0 = arith.constant 0 : index
    %c0_0 = arith.constant 0 : index
    %0 = vector.load %arg0[%c0, %c0_0] : memref<8x1xi32, #tpu.memory_space<vmem>>, vector<8x1xi32>
    %1 = tpu.iota {dimensions = array<i32: 1>} : vector<8x128xi32>
    %2 = vector.broadcast %0 : vector<8x1xi32> to vector<8x128xi32>
    %3 = arith.cmpi eq, %2, %1 : vector<8x128xi32>
    %4 = arith.extui %3 : vector<8x128xi1> to vector<8x128xi32>
    %5 = arith.sitofp %4 : vector<8x128xi32> to vector<8x128xf32>
    %c0_1 = arith.constant 0 : index
    %c0_2 = arith.constant 0 : index
    %6 = vector.load %arg3[%c0_1, %c0_2] : memref<128x32xf32, #tpu.memory_space<vmem>>, vector<128x32xf32>
    %cst = arith.constant dense<0.000000e+00> : vector<8x32xf32>
    %7 = tpu.matmul %5, %6, %cst {dimension_numbers = #tpu.dot_dimension_numbers<[1], [0], [0], [1], [0, 0, 1, 1], [], []>} : vector<8x128xf32>, vector<128x32xf32>, vector<8x32xf32> -> vector<8x32xf32>
    %c0_3 = arith.constant 0 : index
    %c0_4 = arith.constant 0 : index
    %8 = vector.load %arg1[%c0_3, %c0_4] : memref<8x1xi32, #tpu.memory_space<vmem>>, vector<8x1xi32>
    %9 = arith.sitofp %8 : vector<8x1xi32> to vector<8x1xf32>
    %c0_5 = arith.constant 0 : index
    %c0_6 = arith.constant 0 : index
    %10 = vector.load %arg4[%c0_5, %c0_6] : memref<2x32xf32, #tpu.memory_space<vmem>>, vector<1x32xf32>
    %11 = vector.broadcast %10 : vector<1x32xf32> to vector<8x32xf32>
    %12 = arith.addf %7, %11 : vector<8x32xf32>
    %c1 = arith.constant 1 : index
    %c0_7 = arith.constant 0 : index
    %13 = vector.load %arg4[%c1, %c0_7] : memref<2x32xf32, #tpu.memory_space<vmem>>, vector<1x32xf32>
    %c0_8 = arith.constant 0 : index
    %c0_9 = arith.constant 0 : index
    %14 = vector.load %arg4[%c0_8, %c0_9] : memref<2x32xf32, #tpu.memory_space<vmem>>, vector<1x32xf32>
    %15 = arith.subf %13, %14 : vector<1x32xf32>
    %16 = vector.broadcast %9 : vector<8x1xf32> to vector<8x32xf32>
    %17 = vector.broadcast %15 : vector<1x32xf32> to vector<8x32xf32>
    %18 = arith.mulf %16, %17 : vector<8x32xf32>
    %19 = arith.addf %12, %18 : vector<8x32xf32>
    %c0_10 = arith.constant 0 : index
    %c0_11 = arith.constant 0 : index
    %20 = vector.load %arg5[%c0_10, %c0_11] : memref<8x32xf32, #tpu.memory_space<vmem>>, vector<8x32xf32>
    %21 = arith.addf %19, %20 : vector<8x32xf32>
    %c0_12 = arith.constant 0 : index
    %c0_13 = arith.constant 0 : index
    %22 = vector.load %arg6[%c0_12, %c0_13] : memref<2x32xf32, #tpu.memory_space<vmem>>, vector<1x32xf32>
    %c1_14 = arith.constant 1 : index
    %c0_15 = arith.constant 0 : index
    %23 = vector.load %arg6[%c1_14, %c0_15] : memref<2x32xf32, #tpu.memory_space<vmem>>, vector<1x32xf32>
    %cst_16 = arith.constant dense<0.000000e+00> : vector<8xf32>
    %24 = vector.multi_reduction <add>, %21, %cst_16 [1] : vector<8x32xf32> to vector<8xf32>
    %25 = vector.shape_cast %24 : vector<8xf32> to vector<8x1xf32>
    %cst_17 = arith.constant 3.200000e+01 : f32
    %26 = vector.broadcast %cst_17 : f32 to vector<8x1xf32>
    %27 = arith.divf %25, %26 : vector<8x1xf32>
    %28 = vector.broadcast %27 : vector<8x1xf32> to vector<8x32xf32>
    %29 = arith.subf %21, %28 : vector<8x32xf32>
    %30 = vector.broadcast %27 : vector<8x1xf32> to vector<8x32xf32>
    %31 = arith.subf %21, %30 : vector<8x32xf32>
    %32 = arith.mulf %29, %31 : vector<8x32xf32>
    %cst_18 = arith.constant dense<0.000000e+00> : vector<8xf32>
    %33 = vector.multi_reduction <add>, %32, %cst_18 [1] : vector<8x32xf32> to vector<8xf32>
    %34 = vector.shape_cast %33 : vector<8xf32> to vector<8x1xf32>
    %cst_19 = arith.constant 3.200000e+01 : f32
    %35 = vector.broadcast %cst_19 : f32 to vector<8x1xf32>
    %36 = arith.divf %34, %35 : vector<8x1xf32>
    %37 = vector.broadcast %27 : vector<8x1xf32> to vector<8x32xf32>
    %38 = arith.subf %21, %37 : vector<8x32xf32>
    %cst_20 = arith.constant 9.99999996E-13 : f32
    %39 = vector.broadcast %cst_20 : f32 to vector<8x1xf32>
    %40 = arith.addf %36, %39 : vector<8x1xf32>
    %41 = math.rsqrt %40 : vector<8x1xf32>
    %42 = vector.broadcast %41 : vector<8x1xf32> to vector<8x32xf32>
    %43 = arith.mulf %38, %42 : vector<8x32xf32>
    %44 = vector.broadcast %22 : vector<1x32xf32> to vector<8x32xf32>
    %45 = arith.mulf %43, %44 : vector<8x32xf32>
    %46 = vector.broadcast %23 : vector<1x32xf32> to vector<8x32xf32>
    %47 = arith.addf %45, %46 : vector<8x32xf32>
    %c0_21 = arith.constant 0 : index
    %c0_22 = arith.constant 0 : index
    %c0_23 = arith.constant 0 : index
    %48 = vector.load %arg14[%c0_21, %c0_22, %c0_23] : memref<3x8x32xf32, #tpu.memory_space<vmem>>, vector<1x8x32xf32>
    %49 = vector.shape_cast %48 : vector<1x8x32xf32> to vector<8x32xf32>
    %50 = vector.shape_cast %47 : vector<8x32xf32> to vector<1x8x32xf32>
    tpu.vector_store %arg14[%c0_21, %c0_22, %c0_23], %50 {strides = array<i32>} : memref<3x8x32xf32, #tpu.memory_space<vmem>>, vector<1x8x32xf32>,
    %c0_24 = arith.constant 0 : index
    %c0_25 = arith.constant 0 : index
    %51 = vector.load %arg2[%c0_24, %c0_25] : memref<1x8xi32, #tpu.memory_space<vmem>>, vector<1x8xi32>
    %52 = arith.sitofp %51 : vector<1x8xi32> to vector<1x8xf32>
    %cst_26 = arith.constant 1.000000e+00 : f32
    %53 = vector.broadcast %cst_26 : f32 to vector<1x8xf32>
    %54 = arith.subf %53, %52 : vector<1x8xf32>
    %cst_27 = arith.constant -1.000000e+04 : f32
    %55 = vector.broadcast %cst_27 : f32 to vector<1x8xf32>
    %56 = arith.mulf %54, %55 : vector<1x8xf32>
    %c0_28 = arith.constant 0 : index
    %c0_29 = arith.constant 0 : index
    %c0_30 = arith.constant 0 : index
    %57 = vector.load %arg13[%c0_28, %c0_29, %c0_30] : memref<2x6x32xf32, #tpu.memory_space<vmem>>, vector<1x6x32xf32>
    %58 = vector.shape_cast %57 : vector<1x6x32xf32> to vector<6x32xf32>
    %59 = vector.extract_strided_slice %58 {offsets = [0, 0], sizes = [1, 32], strides = [1, 1]} : vector<6x32xf32> to vector<1x32xf32>
    %60 = vector.extract_strided_slice %58 {offsets = [1, 0], sizes = [1, 32], strides = [1, 1]} : vector<6x32xf32> to vector<1x32xf32>
    %61 = vector.extract_strided_slice %58 {offsets = [2, 0], sizes = [1, 32], strides = [1, 1]} : vector<6x32xf32> to vector<1x32xf32>
    %62 = vector.extract_strided_slice %58 {offsets = [3, 0], sizes = [1, 32], strides = [1, 1]} : vector<6x32xf32> to vector<1x32xf32>
    %63 = vector.extract_strided_slice %58 {offsets = [4, 0], sizes = [1, 32], strides = [1, 1]} : vector<6x32xf32> to vector<1x32xf32>
    %64 = vector.extract_strided_slice %58 {offsets = [5, 0], sizes = [1, 32], strides = [1, 1]} : vector<6x32xf32> to vector<1x32xf32>
    %cst_31 = arith.constant 0.000000e+00 : f32
    %65 = vector.broadcast %cst_31 : f32 to vector<8x32xf32>
    %c0_32 = arith.constant 0 : index
    %c0_33 = arith.constant 0 : index
    %c0_34 = arith.constant 0 : index
    %66 = vector.load %arg7[%c0_32, %c0_33, %c0_34] : memref<24x32x8xf32, #tpu.memory_space<vmem>>, vector<1x32x8xf32>
    %67 = vector.shape_cast %66 : vector<1x32x8xf32> to vector<32x8xf32>
    %cst_35 = arith.constant dense<0.000000e+00> : vector<8x8xf32>
    %68 = tpu.matmul %47, %67, %cst_35 {dimension_numbers = #tpu.dot_dimension_numbers<[1], [0], [0], [1], [0, 0, 1, 1], [], []>} : vector<8x32xf32>, vector<32x8xf32>, vector<8x8xf32> -> vector<8x8xf32>
    %c0_36 = arith.constant 0 : index
    %c0_37 = arith.constant 0 : index
    %c0_38 = arith.constant 0 : index
    %69 = vector.load %arg8[%c0_36, %c0_37, %c0_38] : memref<24x1x8xf32, #tpu.memory_space<vmem>>, vector<1x1x8xf32>
    %70 = vector.shape_cast %69 : vector<1x1x8xf32> to vector<1x8xf32>
    %71 = vector.broadcast %70 : vector<1x8xf32> to vector<8x8xf32>
    %72 = arith.addf %68, %71 : vector<8x8xf32>
    %c4 = arith.constant 4 : index
    %c0_39 = arith.constant 0 : index
    %c0_40 = arith.constant 0 : index
    %73 = vector.load %arg7[%c4, %c0_39, %c0_40] : memref<24x32x8xf32, #tpu.memory_space<vmem>>, vector<1x32x8xf32>
    %74 = vector.shape_cast %73 : vector<1x32x8xf32> to vector<32x8xf32>
    %cst_41 = arith.constant dense<0.000000e+00> : vector<8x8xf32>
    %75 = tpu.matmul %47, %74, %cst_41 {dimension_numbers = #tpu.dot_dimension_numbers<[1], [0], [0], [1], [0, 0, 1, 1], [], []>} : vector<8x32xf32>, vector<32x8xf32>, vector<8x8xf32> -> vector<8x8xf32>
    %c4_42 = arith.constant 4 : index
    %c0_43 = arith.constant 0 : index
    %c0_44 = arith.constant 0 : index
    %76 = vector.load %arg8[%c4_42, %c0_43, %c0_44] : memref<24x1x8xf32, #tpu.memory_space<vmem>>, vector<1x1x8xf32>
    %77 = vector.shape_cast %76 : vector<1x1x8xf32> to vector<1x8xf32>
    %78 = vector.broadcast %77 : vector<1x8xf32> to vector<8x8xf32>
    %79 = arith.addf %75, %78 : vector<8x8xf32>
    %c8 = arith.constant 8 : index
    %c0_45 = arith.constant 0 : index
    %c0_46 = arith.constant 0 : index
    %80 = vector.load %arg7[%c8, %c0_45, %c0_46] : memref<24x32x8xf32, #tpu.memory_space<vmem>>, vector<1x32x8xf32>
    %81 = vector.shape_cast %80 : vector<1x32x8xf32> to vector<32x8xf32>
    %cst_47 = arith.constant dense<0.000000e+00> : vector<8x8xf32>
    %82 = tpu.matmul %47, %81, %cst_47 {dimension_numbers = #tpu.dot_dimension_numbers<[1], [0], [0], [1], [0, 0, 1, 1], [], []>} : vector<8x32xf32>, vector<32x8xf32>, vector<8x8xf32> -> vector<8x8xf32>
    %c8_48 = arith.constant 8 : index
    %c0_49 = arith.constant 0 : index
    %c0_50 = arith.constant 0 : index
    %83 = vector.load %arg8[%c8_48, %c0_49, %c0_50] : memref<24x1x8xf32, #tpu.memory_space<vmem>>, vector<1x1x8xf32>
    %84 = vector.shape_cast %83 : vector<1x1x8xf32> to vector<1x8xf32>
    %85 = vector.broadcast %84 : vector<1x8xf32> to vector<8x8xf32>
    %86 = arith.addf %82, %85 : vector<8x8xf32>
    %cst_51 = arith.constant dense<0.000000e+00> : vector<8x8xf32>
    %87 = tpu.matmul %72, %79, %cst_51 {dimension_numbers = #tpu.dot_dimension_numbers<[1], [1], [0], [0], [0, 0, 1, 0], [], []>} : vector<8x8xf32>, vector<8x8xf32>, vector<8x8xf32> -> vector<8x8xf32>
    %88 = vector.broadcast %56 : vector<1x8xf32> to vector<8x8xf32>
    %89 = arith.addf %87, %88 : vector<8x8xf32>
    %cst_52 = arith.constant dense<0xFF800000> : vector<8xf32>
    %90 = vector.multi_reduction <maximumf>, %89, %cst_52 [1] : vector<8x8xf32> to vector<8xf32>
    %91 = vector.shape_cast %90 : vector<8xf32> to vector<8x1xf32>
    %92 = vector.broadcast %91 : vector<8x1xf32> to vector<8x8xf32>
    %93 = arith.subf %89, %92 : vector<8x8xf32>
    %94 = math.exp %93 : vector<8x8xf32>
    %cst_53 = arith.constant dense<0.000000e+00> : vector<8xf32>
    %95 = vector.multi_reduction <add>, %94, %cst_53 [1] : vector<8x8xf32> to vector<8xf32>
    %96 = vector.shape_cast %95 : vector<8xf32> to vector<8x1xf32>
    %97 = tpu.reciprocal %96 {approx = true} : vector<8x1xf32> -> vector<8x1xf32>
    %98 = vector.broadcast %97 : vector<8x1xf32> to vector<8x8xf32>
    %99 = arith.mulf %94, %98 : vector<8x8xf32>
    %cst_54 = arith.constant dense<0.000000e+00> : vector<8x8xf32>
    %100 = tpu.matmul %99, %86, %cst_54 {dimension_numbers = #tpu.dot_dimension_numbers<[1], [0], [0], [1], [0, 0, 1, 1], [], []>} : vector<8x8xf32>, vector<8x8xf32>, vector<8x8xf32> -> vector<8x8xf32>
    %c0_55 = arith.constant 0 : index
    %c0_56 = arith.constant 0 : index
    %c0_57 = arith.constant 0 : index
    %101 = vector.load %arg9[%c0_55, %c0_56, %c0_57] : memref<8x8x32xf32, #tpu.memory_space<vmem>>, vector<1x8x32xf32>
    %102 = vector.shape_cast %101 : vector<1x8x32xf32> to vector<8x32xf32>
    %cst_58 = arith.constant dense<0.000000e+00> : vector<8x32xf32>
    %103 = tpu.matmul %100, %102, %cst_58 {dimension_numbers = #tpu.dot_dimension_numbers<[1], [0], [0], [1], [0, 0, 1, 1], [], []>} : vector<8x8xf32>, vector<8x32xf32>, vector<8x32xf32> -> vector<8x32xf32>
    %104 = arith.addf %65, %103 : vector<8x32xf32>
    %c1_59 = arith.constant 1 : index
    %c0_60 = arith.constant 0 : index
    %c0_61 = arith.constant 0 : index
    %105 = vector.load %arg7[%c1_59, %c0_60, %c0_61] : memref<24x32x8xf32, #tpu.memory_space<vmem>>, vector<1x32x8xf32>
    %106 = vector.shape_cast %105 : vector<1x32x8xf32> to vector<32x8xf32>
    %cst_62 = arith.constant dense<0.000000e+00> : vector<8x8xf32>
    %107 = tpu.matmul %47, %106, %cst_62 {dimension_numbers = #tpu.dot_dimension_numbers<[1], [0], [0], [1], [0, 0, 1, 1], [], []>} : vector<8x32xf32>, vector<32x8xf32>, vector<8x8xf32> -> vector<8x8xf32>
    %c1_63 = arith.constant 1 : index
    %c0_64 = arith.constant 0 : index
    %c0_65 = arith.constant 0 : index
    %108 = vector.load %arg8[%c1_63, %c0_64, %c0_65] : memref<24x1x8xf32, #tpu.memory_space<vmem>>, vector<1x1x8xf32>
    %109 = vector.shape_cast %108 : vector<1x1x8xf32> to vector<1x8xf32>
    %110 = vector.broadcast %109 : vector<1x8xf32> to vector<8x8xf32>
    %111 = arith.addf %107, %110 : vector<8x8xf32>
    %c5 = arith.constant 5 : index
    %c0_66 = arith.constant 0 : index
    %c0_67 = arith.constant 0 : index
    %112 = vector.load %arg7[%c5, %c0_66, %c0_67] : memref<24x32x8xf32, #tpu.memory_space<vmem>>, vector<1x32x8xf32>
    %113 = vector.shape_cast %112 : vector<1x32x8xf32> to vector<32x8xf32>
    %cst_68 = arith.constant dense<0.000000e+00> : vector<8x8xf32>
    %114 = tpu.matmul %47, %113, %cst_68 {dimension_numbers = #tpu.dot_dimension_numbers<[1], [0], [0], [1], [0, 0, 1, 1], [], []>} : vector<8x32xf32>, vector<32x8xf32>, vector<8x8xf32> -> vector<8x8xf32>
    %c5_69 = arith.constant 5 : index
    %c0_70 = arith.constant 0 : index
    %c0_71 = arith.constant 0 : index
    %115 = vector.load %arg8[%c5_69, %c0_70, %c0_71] : memref<24x1x8xf32, #tpu.memory_space<vmem>>, vector<1x1x8xf32>
    %116 = vector.shape_cast %115 : vector<1x1x8xf32> to vector<1x8xf32>
    %117 = vector.broadcast %116 : vector<1x8xf32> to vector<8x8xf32>
    %118 = arith.addf %114, %117 : vector<8x8xf32>
    %c9 = arith.constant 9 : index
    %c0_72 = arith.constant 0 : index
    %c0_73 = arith.constant 0 : index
    %119 = vector.load %arg7[%c9, %c0_72, %c0_73] : memref<24x32x8xf32, #tpu.memory_space<vmem>>, vector<1x32x8xf32>
    %120 = vector.shape_cast %119 : vector<1x32x8xf32> to vector<32x8xf32>
    %cst_74 = arith.constant dense<0.000000e+00> : vector<8x8xf32>
    %121 = tpu.matmul %47, %120, %cst_74 {dimension_numbers = #tpu.dot_dimension_numbers<[1], [0], [0], [1], [0, 0, 1, 1], [], []>} : vector<8x32xf32>, vector<32x8xf32>, vector<8x8xf32> -> vector<8x8xf32>
    %c9_75 = arith.constant 9 : index
    %c0_76 = arith.constant 0 : index
    %c0_77 = arith.constant 0 : index
    %122 = vector.load %arg8[%c9_75, %c0_76, %c0_77] : memref<24x1x8xf32, #tpu.memory_space<vmem>>, vector<1x1x8xf32>
    %123 = vector.shape_cast %122 : vector<1x1x8xf32> to vector<1x8xf32>
    %124 = vector.broadcast %123 : vector<1x8xf32> to vector<8x8xf32>
    %125 = arith.addf %121, %124 : vector<8x8xf32>
    %cst_78 = arith.constant dense<0.000000e+00> : vector<8x8xf32>
    %126 = tpu.matmul %111, %118, %cst_78 {dimension_numbers = #tpu.dot_dimension_numbers<[1], [1], [0], [0], [0, 0, 1, 0], [], []>} : vector<8x8xf32>, vector<8x8xf32>, vector<8x8xf32> -> vector<8x8xf32>
    %127 = vector.broadcast %56 : vector<1x8xf32> to vector<8x8xf32>
    %128 = arith.addf %126, %127 : vector<8x8xf32>
    %cst_79 = arith.constant dense<0xFF800000> : vector<8xf32>
    %129 = vector.multi_reduction <maximumf>, %128, %cst_79 [1] : vector<8x8xf32> to vector<8xf32>
    %130 = vector.shape_cast %129 : vector<8xf32> to vector<8x1xf32>
    %131 = vector.broadcast %130 : vector<8x1xf32> to vector<8x8xf32>
    %132 = arith.subf %128, %131 : vector<8x8xf32>
    %133 = math.exp %132 : vector<8x8xf32>
    %cst_80 = arith.constant dense<0.000000e+00> : vector<8xf32>
    %134 = vector.multi_reduction <add>, %133, %cst_80 [1] : vector<8x8xf32> to vector<8xf32>
    %135 = vector.shape_cast %134 : vector<8xf32> to vector<8x1xf32>
    %136 = tpu.reciprocal %135 {approx = true} : vector<8x1xf32> -> vector<8x1xf32>
    %137 = vector.broadcast %136 : vector<8x1xf32> to vector<8x8xf32>
    %138 = arith.mulf %133, %137 : vector<8x8xf32>
    %cst_81 = arith.constant dense<0.000000e+00> : vector<8x8xf32>
    %139 = tpu.matmul %138, %125, %cst_81 {dimension_numbers = #tpu.dot_dimension_numbers<[1], [0], [0], [1], [0, 0, 1, 1], [], []>} : vector<8x8xf32>, vector<8x8xf32>, vector<8x8xf32> -> vector<8x8xf32>
    %c1_82 = arith.constant 1 : index
    %c0_83 = arith.constant 0 : index
    %c0_84 = arith.constant 0 : index
    %140 = vector.load %arg9[%c1_82, %c0_83, %c0_84] : memref<8x8x32xf32, #tpu.memory_space<vmem>>, vector<1x8x32xf32>
    %141 = vector.shape_cast %140 : vector<1x8x32xf32> to vector<8x32xf32>
    %cst_85 = arith.constant dense<0.000000e+00> : vector<8x32xf32>
    %142 = tpu.matmul %139, %141, %cst_85 {dimension_numbers = #tpu.dot_dimension_numbers<[1], [0], [0], [1], [0, 0, 1, 1], [], []>} : vector<8x8xf32>, vector<8x32xf32>, vector<8x32xf32> -> vector<8x32xf32>
    %143 = arith.addf %104, %142 : vector<8x32xf32>
    %c2 = arith.constant 2 : index
    %c0_86 = arith.constant 0 : index
    %c0_87 = arith.constant 0 : index
    %144 = vector.load %arg7[%c2, %c0_86, %c0_87] : memref<24x32x8xf32, #tpu.memory_space<vmem>>, vector<1x32x8xf32>
    %145 = vector.shape_cast %144 : vector<1x32x8xf32> to vector<32x8xf32>
    %cst_88 = arith.constant dense<0.000000e+00> : vector<8x8xf32>
    %146 = tpu.matmul %47, %145, %cst_88 {dimension_numbers = #tpu.dot_dimension_numbers<[1], [0], [0], [1], [0, 0, 1, 1], [], []>} : vector<8x32xf32>, vector<32x8xf32>, vector<8x8xf32> -> vector<8x8xf32>
    %c2_89 = arith.constant 2 : index
    %c0_90 = arith.constant 0 : index
    %c0_91 = arith.constant 0 : index
    %147 = vector.load %arg8[%c2_89, %c0_90, %c0_91] : memref<24x1x8xf32, #tpu.memory_space<vmem>>, vector<1x1x8xf32>
    %148 = vector.shape_cast %147 : vector<1x1x8xf32> to vector<1x8xf32>
    %149 = vector.broadcast %148 : vector<1x8xf32> to vector<8x8xf32>
    %150 = arith.addf %146, %149 : vector<8x8xf32>
    %c6 = arith.constant 6 : index
    %c0_92 = arith.constant 0 : index
    %c0_93 = arith.constant 0 : index
    %151 = vector.load %arg7[%c6, %c0_92, %c0_93] : memref<24x32x8xf32, #tpu.memory_space<vmem>>, vector<1x32x8xf32>
    %152 = vector.shape_cast %151 : vector<1x32x8xf32> to vector<32x8xf32>
    %cst_94 = arith.constant dense<0.000000e+00> : vector<8x8xf32>
    %153 = tpu.matmul %47, %152, %cst_94 {dimension_numbers = #tpu.dot_dimension_numbers<[1], [0], [0], [1], [0, 0, 1, 1], [], []>} : vector<8x32xf32>, vector<32x8xf32>, vector<8x8xf32> -> vector<8x8xf32>
    %c6_95 = arith.constant 6 : index
    %c0_96 = arith.constant 0 : index
    %c0_97 = arith.constant 0 : index
    %154 = vector.load %arg8[%c6_95, %c0_96, %c0_97] : memref<24x1x8xf32, #tpu.memory_space<vmem>>, vector<1x1x8xf32>
    %155 = vector.shape_cast %154 : vector<1x1x8xf32> to vector<1x8xf32>
    %156 = vector.broadcast %155 : vector<1x8xf32> to vector<8x8xf32>
    %157 = arith.addf %153, %156 : vector<8x8xf32>
    %c10 = arith.constant 10 : index
    %c0_98 = arith.constant 0 : index
    %c0_99 = arith.constant 0 : index
    %158 = vector.load %arg7[%c10, %c0_98, %c0_99] : memref<24x32x8xf32, #tpu.memory_space<vmem>>, vector<1x32x8xf32>
    %159 = vector.shape_cast %158 : vector<1x32x8xf32> to vector<32x8xf32>
    %cst_100 = arith.constant dense<0.000000e+00> : vector<8x8xf32>
    %160 = tpu.matmul %47, %159, %cst_100 {dimension_numbers = #tpu.dot_dimension_numbers<[1], [0], [0], [1], [0, 0, 1, 1], [], []>} : vector<8x32xf32>, vector<32x8xf32>, vector<8x8xf32> -> vector<8x8xf32>
    %c10_101 = arith.constant 10 : index
    %c0_102 = arith.constant 0 : index
    %c0_103 = arith.constant 0 : index
    %161 = vector.load %arg8[%c10_101, %c0_102, %c0_103] : memref<24x1x8xf32, #tpu.memory_space<vmem>>, vector<1x1x8xf32>
    %162 = vector.shape_cast %161 : vector<1x1x8xf32> to vector<1x8xf32>
    %163 = vector.broadcast %162 : vector<1x8xf32> to vector<8x8xf32>
    %164 = arith.addf %160, %163 : vector<8x8xf32>
    %cst_104 = arith.constant dense<0.000000e+00> : vector<8x8xf32>
    %165 = tpu.matmul %150, %157, %cst_104 {dimension_numbers = #tpu.dot_dimension_numbers<[1], [1], [0], [0], [0, 0, 1, 0], [], []>} : vector<8x8xf32>, vector<8x8xf32>, vector<8x8xf32> -> vector<8x8xf32>
    %166 = vector.broadcast %56 : vector<1x8xf32> to vector<8x8xf32>
    %167 = arith.addf %165, %166 : vector<8x8xf32>
    %cst_105 = arith.constant dense<0xFF800000> : vector<8xf32>
    %168 = vector.multi_reduction <maximumf>, %167, %cst_105 [1] : vector<8x8xf32> to vector<8xf32>
    %169 = vector.shape_cast %168 : vector<8xf32> to vector<8x1xf32>
    %170 = vector.broadcast %169 : vector<8x1xf32> to vector<8x8xf32>
    %171 = arith.subf %167, %170 : vector<8x8xf32>
    %172 = math.exp %171 : vector<8x8xf32>
    %cst_106 = arith.constant dense<0.000000e+00> : vector<8xf32>
    %173 = vector.multi_reduction <add>, %172, %cst_106 [1] : vector<8x8xf32> to vector<8xf32>
    %174 = vector.shape_cast %173 : vector<8xf32> to vector<8x1xf32>
    %175 = tpu.reciprocal %174 {approx = true} : vector<8x1xf32> -> vector<8x1xf32>
    %176 = vector.broadcast %175 : vector<8x1xf32> to vector<8x8xf32>
    %177 = arith.mulf %172, %176 : vector<8x8xf32>
    %cst_107 = arith.constant dense<0.000000e+00> : vector<8x8xf32>
    %178 = tpu.matmul %177, %164, %cst_107 {dimension_numbers = #tpu.dot_dimension_numbers<[1], [0], [0], [1], [0, 0, 1, 1], [], []>} : vector<8x8xf32>, vector<8x8xf32>, vector<8x8xf32> -> vector<8x8xf32>
    %c2_108 = arith.constant 2 : index
    %c0_109 = arith.constant 0 : index
    %c0_110 = arith.constant 0 : index
    %179 = vector.load %arg9[%c2_108, %c0_109, %c0_110] : memref<8x8x32xf32, #tpu.memory_space<vmem>>, vector<1x8x32xf32>
    %180 = vector.shape_cast %179 : vector<1x8x32xf32> to vector<8x32xf32>
    %cst_111 = arith.constant dense<0.000000e+00> : vector<8x32xf32>
    %181 = tpu.matmul %178, %180, %cst_111 {dimension_numbers = #tpu.dot_dimension_numbers<[1], [0], [0], [1], [0, 0, 1, 1], [], []>} : vector<8x8xf32>, vector<8x32xf32>, vector<8x32xf32> -> vector<8x32xf32>
    %182 = arith.addf %143, %181 : vector<8x32xf32>
    %c3 = arith.constant 3 : index
    %c0_112 = arith.constant 0 : index
    %c0_113 = arith.constant 0 : index
    %183 = vector.load %arg7[%c3, %c0_112, %c0_113] : memref<24x32x8xf32, #tpu.memory_space<vmem>>, vector<1x32x8xf32>
    %184 = vector.shape_cast %183 : vector<1x32x8xf32> to vector<32x8xf32>
    %cst_114 = arith.constant dense<0.000000e+00> : vector<8x8xf32>
    %185 = tpu.matmul %47, %184, %cst_114 {dimension_numbers = #tpu.dot_dimension_numbers<[1], [0], [0], [1], [0, 0, 1, 1], [], []>} : vector<8x32xf32>, vector<32x8xf32>, vector<8x8xf32> -> vector<8x8xf32>
    %c3_115 = arith.constant 3 : index
    %c0_116 = arith.constant 0 : index
    %c0_117 = arith.constant 0 : index
    %186 = vector.load %arg8[%c3_115, %c0_116, %c0_117] : memref<24x1x8xf32, #tpu.memory_space<vmem>>, vector<1x1x8xf32>
    %187 = vector.shape_cast %186 : vector<1x1x8xf32> to vector<1x8xf32>
    %188 = vector.broadcast %187 : vector<1x8xf32> to vector<8x8xf32>
    %189 = arith.addf %185, %188 : vector<8x8xf32>
    %c7 = arith.constant 7 : index
    %c0_118 = arith.constant 0 : index
    %c0_119 = arith.constant 0 : index
    %190 = vector.load %arg7[%c7, %c0_118, %c0_119] : memref<24x32x8xf32, #tpu.memory_space<vmem>>, vector<1x32x8xf32>
    %191 = vector.shape_cast %190 : vector<1x32x8xf32> to vector<32x8xf32>
    %cst_120 = arith.constant dense<0.000000e+00> : vector<8x8xf32>
    %192 = tpu.matmul %47, %191, %cst_120 {dimension_numbers = #tpu.dot_dimension_numbers<[1], [0], [0], [1], [0, 0, 1, 1], [], []>} : vector<8x32xf32>, vector<32x8xf32>, vector<8x8xf32> -> vector<8x8xf32>
    %c7_121 = arith.constant 7 : index
    %c0_122 = arith.constant 0 : index
    %c0_123 = arith.constant 0 : index
    %193 = vector.load %arg8[%c7_121, %c0_122, %c0_123] : memref<24x1x8xf32, #tpu.memory_space<vmem>>, vector<1x1x8xf32>
    %194 = vector.shape_cast %193 : vector<1x1x8xf32> to vector<1x8xf32>
    %195 = vector.broadcast %194 : vector<1x8xf32> to vector<8x8xf32>
    %196 = arith.addf %192, %195 : vector<8x8xf32>
    %c11 = arith.constant 11 : index
    %c0_124 = arith.constant 0 : index
    %c0_125 = arith.constant 0 : index
    %197 = vector.load %arg7[%c11, %c0_124, %c0_125] : memref<24x32x8xf32, #tpu.memory_space<vmem>>, vector<1x32x8xf32>
    %198 = vector.shape_cast %197 : vector<1x32x8xf32> to vector<32x8xf32>
    %cst_126 = arith.constant dense<0.000000e+00> : vector<8x8xf32>
    %199 = tpu.matmul %47, %198, %cst_126 {dimension_numbers = #tpu.dot_dimension_numbers<[1], [0], [0], [1], [0, 0, 1, 1], [], []>} : vector<8x32xf32>, vector<32x8xf32>, vector<8x8xf32> -> vector<8x8xf32>
    %c11_127 = arith.constant 11 : index
    %c0_128 = arith.constant 0 : index
    %c0_129 = arith.constant 0 : index
    %200 = vector.load %arg8[%c11_127, %c0_128, %c0_129] : memref<24x1x8xf32, #tpu.memory_space<vmem>>, vector<1x1x8xf32>
    %201 = vector.shape_cast %200 : vector<1x1x8xf32> to vector<1x8xf32>
    %202 = vector.broadcast %201 : vector<1x8xf32> to vector<8x8xf32>
    %203 = arith.addf %199, %202 : vector<8x8xf32>
    %cst_130 = arith.constant dense<0.000000e+00> : vector<8x8xf32>
    %204 = tpu.matmul %189, %196, %cst_130 {dimension_numbers = #tpu.dot_dimension_numbers<[1], [1], [0], [0], [0, 0, 1, 0], [], []>} : vector<8x8xf32>, vector<8x8xf32>, vector<8x8xf32> -> vector<8x8xf32>
    %205 = vector.broadcast %56 : vector<1x8xf32> to vector<8x8xf32>
    %206 = arith.addf %204, %205 : vector<8x8xf32>
    %cst_131 = arith.constant dense<0xFF800000> : vector<8xf32>
    %207 = vector.multi_reduction <maximumf>, %206, %cst_131 [1] : vector<8x8xf32> to vector<8xf32>
    %208 = vector.shape_cast %207 : vector<8xf32> to vector<8x1xf32>
    %209 = vector.broadcast %208 : vector<8x1xf32> to vector<8x8xf32>
    %210 = arith.subf %206, %209 : vector<8x8xf32>
    %211 = math.exp %210 : vector<8x8xf32>
    %cst_132 = arith.constant dense<0.000000e+00> : vector<8xf32>
    %212 = vector.multi_reduction <add>, %211, %cst_132 [1] : vector<8x8xf32> to vector<8xf32>
    %213 = vector.shape_cast %212 : vector<8xf32> to vector<8x1xf32>
    %214 = tpu.reciprocal %213 {approx = true} : vector<8x1xf32> -> vector<8x1xf32>
    %215 = vector.broadcast %214 : vector<8x1xf32> to vector<8x8xf32>
    %216 = arith.mulf %211, %215 : vector<8x8xf32>
    %cst_133 = arith.constant dense<0.000000e+00> : vector<8x8xf32>
    %217 = tpu.matmul %216, %203, %cst_133 {dimension_numbers = #tpu.dot_dimension_numbers<[1], [0], [0], [1], [0, 0, 1, 1], [], []>} : vector<8x8xf32>, vector<8x8xf32>, vector<8x8xf32> -> vector<8x8xf32>
    %c3_134 = arith.constant 3 : index
    %c0_135 = arith.constant 0 : index
    %c0_136 = arith.constant 0 : index
    %218 = vector.load %arg9[%c3_134, %c0_135, %c0_136] : memref<8x8x32xf32, #tpu.memory_space<vmem>>, vector<1x8x32xf32>
    %219 = vector.shape_cast %218 : vector<1x8x32xf32> to vector<8x32xf32>
    %cst_137 = arith.constant dense<0.000000e+00> : vector<8x32xf32>
    %220 = tpu.matmul %217, %219, %cst_137 {dimension_numbers = #tpu.dot_dimension_numbers<[1], [0], [0], [1], [0, 0, 1, 1], [], []>} : vector<8x8xf32>, vector<8x32xf32>, vector<8x32xf32> -> vector<8x32xf32>
    %221 = arith.addf %182, %220 : vector<8x32xf32>
    %222 = vector.broadcast %59 : vector<1x32xf32> to vector<8x32xf32>
    %223 = arith.addf %221, %222 : vector<8x32xf32>
    %224 = arith.addf %223, %47 : vector<8x32xf32>
    %cst_138 = arith.constant dense<0.000000e+00> : vector<8xf32>
    %225 = vector.multi_reduction <add>, %224, %cst_138 [1] : vector<8x32xf32> to vector<8xf32>
    %226 = vector.shape_cast %225 : vector<8xf32> to vector<8x1xf32>
    %cst_139 = arith.constant 3.200000e+01 : f32
    %227 = vector.broadcast %cst_139 : f32 to vector<8x1xf32>
    %228 = arith.divf %226, %227 : vector<8x1xf32>
    %229 = vector.broadcast %228 : vector<8x1xf32> to vector<8x32xf32>
    %230 = arith.subf %224, %229 : vector<8x32xf32>
    %231 = vector.broadcast %228 : vector<8x1xf32> to vector<8x32xf32>
    %232 = arith.subf %224, %231 : vector<8x32xf32>
    %233 = arith.mulf %230, %232 : vector<8x32xf32>
    %cst_140 = arith.constant dense<0.000000e+00> : vector<8xf32>
    %234 = vector.multi_reduction <add>, %233, %cst_140 [1] : vector<8x32xf32> to vector<8xf32>
    %235 = vector.shape_cast %234 : vector<8xf32> to vector<8x1xf32>
    %cst_141 = arith.constant 3.200000e+01 : f32
    %236 = vector.broadcast %cst_141 : f32 to vector<8x1xf32>
    %237 = arith.divf %235, %236 : vector<8x1xf32>
    %238 = vector.broadcast %228 : vector<8x1xf32> to vector<8x32xf32>
    %239 = arith.subf %224, %238 : vector<8x32xf32>
    %cst_142 = arith.constant 9.99999996E-13 : f32
    %240 = vector.broadcast %cst_142 : f32 to vector<8x1xf32>
    %241 = arith.addf %237, %240 : vector<8x1xf32>
    %242 = math.rsqrt %241 : vector<8x1xf32>
    %243 = vector.broadcast %242 : vector<8x1xf32> to vector<8x32xf32>
    %244 = arith.mulf %239, %243 : vector<8x32xf32>
    %245 = vector.broadcast %60 : vector<1x32xf32> to vector<8x32xf32>
    %246 = arith.mulf %244, %245 : vector<8x32xf32>
    %247 = vector.broadcast %61 : vector<1x32xf32> to vector<8x32xf32>
    %248 = arith.addf %246, %247 : vector<8x32xf32>
    %c0_143 = arith.constant 0 : index
    %c0_144 = arith.constant 0 : index
    %c0_145 = arith.constant 0 : index
    %249 = vector.load %arg10[%c0_143, %c0_144, %c0_145] : memref<2x32x64xf32, #tpu.memory_space<vmem>>, vector<1x32x64xf32>
    %250 = vector.shape_cast %249 : vector<1x32x64xf32> to vector<32x64xf32>
    %cst_146 = arith.constant dense<0.000000e+00> : vector<8x64xf32>
    %251 = tpu.matmul %248, %250, %cst_146 {dimension_numbers = #tpu.dot_dimension_numbers<[1], [0], [0], [1], [0, 0, 1, 1], [], []>} : vector<8x32xf32>, vector<32x64xf32>, vector<8x64xf32> -> vector<8x64xf32>
    %c0_147 = arith.constant 0 : index
    %c0_148 = arith.constant 0 : index
    %c0_149 = arith.constant 0 : index
    %252 = vector.load %arg12[%c0_147, %c0_148, %c0_149] : memref<2x1x64xf32, #tpu.memory_space<vmem>>, vector<1x1x64xf32>
    %253 = vector.shape_cast %252 : vector<1x1x64xf32> to vector<1x64xf32>
    %254 = vector.broadcast %253 : vector<1x64xf32> to vector<8x64xf32>
    %255 = arith.addf %251, %254 : vector<8x64xf32>
    %cst_150 = arith.constant 5.000000e-01 : f32
    %256 = vector.broadcast %cst_150 : f32 to vector<8x64xf32>
    %257 = arith.mulf %256, %255 : vector<8x64xf32>
    %cst_151 = arith.constant 4.471500e-02 : f32
    %258 = vector.broadcast %cst_151 : f32 to vector<8x64xf32>
    %259 = arith.mulf %258, %255 : vector<8x64xf32>
    %260 = arith.mulf %259, %255 : vector<8x64xf32>
    %261 = arith.mulf %260, %255 : vector<8x64xf32>
    %262 = arith.addf %255, %261 : vector<8x64xf32>
    %cst_152 = arith.constant 0.797884583 : f32
    %263 = vector.broadcast %cst_152 : f32 to vector<8x64xf32>
    %264 = arith.mulf %263, %262 : vector<8x64xf32>
    %265 = math.tanh %264 : vector<8x64xf32>
    %cst_153 = arith.constant 1.000000e+00 : f32
    %266 = vector.broadcast %cst_153 : f32 to vector<8x64xf32>
    %267 = arith.addf %266, %265 : vector<8x64xf32>
    %268 = arith.mulf %257, %267 : vector<8x64xf32>
    %c0_154 = arith.constant 0 : index
    %c0_155 = arith.constant 0 : index
    %c0_156 = arith.constant 0 : index
    %269 = vector.load %arg11[%c0_154, %c0_155, %c0_156] : memref<2x64x32xf32, #tpu.memory_space<vmem>>, vector<1x64x32xf32>
    %270 = vector.shape_cast %269 : vector<1x64x32xf32> to vector<64x32xf32>
    %cst_157 = arith.constant dense<0.000000e+00> : vector<8x32xf32>
    %271 = tpu.matmul %268, %270, %cst_157 {dimension_numbers = #tpu.dot_dimension_numbers<[1], [0], [0], [1], [0, 0, 1, 1], [], []>} : vector<8x64xf32>, vector<64x32xf32>, vector<8x32xf32> -> vector<8x32xf32>
    %272 = vector.broadcast %62 : vector<1x32xf32> to vector<8x32xf32>
    %273 = arith.addf %271, %272 : vector<8x32xf32>
    %274 = arith.addf %273, %248 : vector<8x32xf32>
    %cst_158 = arith.constant dense<0.000000e+00> : vector<8xf32>
    %275 = vector.multi_reduction <add>, %274, %cst_158 [1] : vector<8x32xf32> to vector<8xf32>
    %276 = vector.shape_cast %275 : vector<8xf32> to vector<8x1xf32>
    %cst_159 = arith.constant 3.200000e+01 : f32
    %277 = vector.broadcast %cst_159 : f32 to vector<8x1xf32>
    %278 = arith.divf %276, %277 : vector<8x1xf32>
    %279 = vector.broadcast %278 : vector<8x1xf32> to vector<8x32xf32>
    %280 = arith.subf %274, %279 : vector<8x32xf32>
    %281 = vector.broadcast %278 : vector<8x1xf32> to vector<8x32xf32>
    %282 = arith.subf %274, %281 : vector<8x32xf32>
    %283 = arith.mulf %280, %282 : vector<8x32xf32>
    %cst_160 = arith.constant dense<0.000000e+00> : vector<8xf32>
    %284 = vector.multi_reduction <add>, %283, %cst_160 [1] : vector<8x32xf32> to vector<8xf32>
    %285 = vector.shape_cast %284 : vector<8xf32> to vector<8x1xf32>
    %cst_161 = arith.constant 3.200000e+01 : f32
    %286 = vector.broadcast %cst_161 : f32 to vector<8x1xf32>
    %287 = arith.divf %285, %286 : vector<8x1xf32>
    %288 = vector.broadcast %278 : vector<8x1xf32> to vector<8x32xf32>
    %289 = arith.subf %274, %288 : vector<8x32xf32>
    %cst_162 = arith.constant 9.99999996E-13 : f32
    %290 = vector.broadcast %cst_162 : f32 to vector<8x1xf32>
    %291 = arith.addf %287, %290 : vector<8x1xf32>
    %292 = math.rsqrt %291 : vector<8x1xf32>
    %293 = vector.broadcast %292 : vector<8x1xf32> to vector<8x32xf32>
    %294 = arith.mulf %289, %293 : vector<8x32xf32>
    %295 = vector.broadcast %63 : vector<1x32xf32> to vector<8x32xf32>
    %296 = arith.mulf %294, %295 : vector<8x32xf32>
    %297 = vector.broadcast %64 : vector<1x32xf32> to vector<8x32xf32>
    %298 = arith.addf %296, %297 : vector<8x32xf32>
    %c1_163 = arith.constant 1 : index
    %c0_164 = arith.constant 0 : index
    %c0_165 = arith.constant 0 : index
    %299 = vector.load %arg14[%c1_163, %c0_164, %c0_165] : memref<3x8x32xf32, #tpu.memory_space<vmem>>, vector<1x8x32xf32>
    %300 = vector.shape_cast %299 : vector<1x8x32xf32> to vector<8x32xf32>
    %301 = vector.shape_cast %298 : vector<8x32xf32> to vector<1x8x32xf32>
    tpu.vector_store %arg14[%c1_163, %c0_164, %c0_165], %301 {strides = array<i32>} : memref<3x8x32xf32, #tpu.memory_space<vmem>>, vector<1x8x32xf32>,
    %c1_166 = arith.constant 1 : index
    %c0_167 = arith.constant 0 : index
    %c0_168 = arith.constant 0 : index
    %302 = vector.load %arg13[%c1_166, %c0_167, %c0_168] : memref<2x6x32xf32, #tpu.memory_space<vmem>>, vector<1x6x32xf32>
    %303 = vector.shape_cast %302 : vector<1x6x32xf32> to vector<6x32xf32>
    %304 = vector.extract_strided_slice %303 {offsets = [0, 0], sizes = [1, 32], strides = [1, 1]} : vector<6x32xf32> to vector<1x32xf32>
    %305 = vector.extract_strided_slice %303 {offsets = [1, 0], sizes = [1, 32], strides = [1, 1]} : vector<6x32xf32> to vector<1x32xf32>
    %306 = vector.extract_strided_slice %303 {offsets = [2, 0], sizes = [1, 32], strides = [1, 1]} : vector<6x32xf32> to vector<1x32xf32>
    %307 = vector.extract_strided_slice %303 {offsets = [3, 0], sizes = [1, 32], strides = [1, 1]} : vector<6x32xf32> to vector<1x32xf32>
    %308 = vector.extract_strided_slice %303 {offsets = [4, 0], sizes = [1, 32], strides = [1, 1]} : vector<6x32xf32> to vector<1x32xf32>
    %309 = vector.extract_strided_slice %303 {offsets = [5, 0], sizes = [1, 32], strides = [1, 1]} : vector<6x32xf32> to vector<1x32xf32>
    %cst_169 = arith.constant 0.000000e+00 : f32
    %310 = vector.broadcast %cst_169 : f32 to vector<8x32xf32>
    %c12 = arith.constant 12 : index
    %c0_170 = arith.constant 0 : index
    %c0_171 = arith.constant 0 : index
    %311 = vector.load %arg7[%c12, %c0_170, %c0_171] : memref<24x32x8xf32, #tpu.memory_space<vmem>>, vector<1x32x8xf32>
    %312 = vector.shape_cast %311 : vector<1x32x8xf32> to vector<32x8xf32>
    %cst_172 = arith.constant dense<0.000000e+00> : vector<8x8xf32>
    %313 = tpu.matmul %298, %312, %cst_172 {dimension_numbers = #tpu.dot_dimension_numbers<[1], [0], [0], [1], [0, 0, 1, 1], [], []>} : vector<8x32xf32>, vector<32x8xf32>, vector<8x8xf32> -> vector<8x8xf32>
    %c12_173 = arith.constant 12 : index
    %c0_174 = arith.constant 0 : index
    %c0_175 = arith.constant 0 : index
    %314 = vector.load %arg8[%c12_173, %c0_174, %c0_175] : memref<24x1x8xf32, #tpu.memory_space<vmem>>, vector<1x1x8xf32>
    %315 = vector.shape_cast %314 : vector<1x1x8xf32> to vector<1x8xf32>
    %316 = vector.broadcast %315 : vector<1x8xf32> to vector<8x8xf32>
    %317 = arith.addf %313, %316 : vector<8x8xf32>
    %c16 = arith.constant 16 : index
    %c0_176 = arith.constant 0 : index
    %c0_177 = arith.constant 0 : index
    %318 = vector.load %arg7[%c16, %c0_176, %c0_177] : memref<24x32x8xf32, #tpu.memory_space<vmem>>, vector<1x32x8xf32>
    %319 = vector.shape_cast %318 : vector<1x32x8xf32> to vector<32x8xf32>
    %cst_178 = arith.constant dense<0.000000e+00> : vector<8x8xf32>
    %320 = tpu.matmul %298, %319, %cst_178 {dimension_numbers = #tpu.dot_dimension_numbers<[1], [0], [0], [1], [0, 0, 1, 1], [], []>} : vector<8x32xf32>, vector<32x8xf32>, vector<8x8xf32> -> vector<8x8xf32>
    %c16_179 = arith.constant 16 : index
    %c0_180 = arith.constant 0 : index
    %c0_181 = arith.constant 0 : index
    %321 = vector.load %arg8[%c16_179, %c0_180, %c0_181] : memref<24x1x8xf32, #tpu.memory_space<vmem>>, vector<1x1x8xf32>
    %322 = vector.shape_cast %321 : vector<1x1x8xf32> to vector<1x8xf32>
    %323 = vector.broadcast %322 : vector<1x8xf32> to vector<8x8xf32>
    %324 = arith.addf %320, %323 : vector<8x8xf32>
    %c20 = arith.constant 20 : index
    %c0_182 = arith.constant 0 : index
    %c0_183 = arith.constant 0 : index
    %325 = vector.load %arg7[%c20, %c0_182, %c0_183] : memref<24x32x8xf32, #tpu.memory_space<vmem>>, vector<1x32x8xf32>
    %326 = vector.shape_cast %325 : vector<1x32x8xf32> to vector<32x8xf32>
    %cst_184 = arith.constant dense<0.000000e+00> : vector<8x8xf32>
    %327 = tpu.matmul %298, %326, %cst_184 {dimension_numbers = #tpu.dot_dimension_numbers<[1], [0], [0], [1], [0, 0, 1, 1], [], []>} : vector<8x32xf32>, vector<32x8xf32>, vector<8x8xf32> -> vector<8x8xf32>
    %c20_185 = arith.constant 20 : index
    %c0_186 = arith.constant 0 : index
    %c0_187 = arith.constant 0 : index
    %328 = vector.load %arg8[%c20_185, %c0_186, %c0_187] : memref<24x1x8xf32, #tpu.memory_space<vmem>>, vector<1x1x8xf32>
    %329 = vector.shape_cast %328 : vector<1x1x8xf32> to vector<1x8xf32>
    %330 = vector.broadcast %329 : vector<1x8xf32> to vector<8x8xf32>
    %331 = arith.addf %327, %330 : vector<8x8xf32>
    %cst_188 = arith.constant dense<0.000000e+00> : vector<8x8xf32>
    %332 = tpu.matmul %317, %324, %cst_188 {dimension_numbers = #tpu.dot_dimension_numbers<[1], [1], [0], [0], [0, 0, 1, 0], [], []>} : vector<8x8xf32>, vector<8x8xf32>, vector<8x8xf32> -> vector<8x8xf32>
    %333 = vector.broadcast %56 : vector<1x8xf32> to vector<8x8xf32>
    %334 = arith.addf %332, %333 : vector<8x8xf32>
    %cst_189 = arith.constant dense<0xFF800000> : vector<8xf32>
    %335 = vector.multi_reduction <maximumf>, %334, %cst_189 [1] : vector<8x8xf32> to vector<8xf32>
    %336 = vector.shape_cast %335 : vector<8xf32> to vector<8x1xf32>
    %337 = vector.broadcast %336 : vector<8x1xf32> to vector<8x8xf32>
    %338 = arith.subf %334, %337 : vector<8x8xf32>
    %339 = math.exp %338 : vector<8x8xf32>
    %cst_190 = arith.constant dense<0.000000e+00> : vector<8xf32>
    %340 = vector.multi_reduction <add>, %339, %cst_190 [1] : vector<8x8xf32> to vector<8xf32>
    %341 = vector.shape_cast %340 : vector<8xf32> to vector<8x1xf32>
    %342 = tpu.reciprocal %341 {approx = true} : vector<8x1xf32> -> vector<8x1xf32>
    %343 = vector.broadcast %342 : vector<8x1xf32> to vector<8x8xf32>
    %344 = arith.mulf %339, %343 : vector<8x8xf32>
    %cst_191 = arith.constant dense<0.000000e+00> : vector<8x8xf32>
    %345 = tpu.matmul %344, %331, %cst_191 {dimension_numbers = #tpu.dot_dimension_numbers<[1], [0], [0], [1], [0, 0, 1, 1], [], []>} : vector<8x8xf32>, vector<8x8xf32>, vector<8x8xf32> -> vector<8x8xf32>
    %c4_192 = arith.constant 4 : index
    %c0_193 = arith.constant 0 : index
    %c0_194 = arith.constant 0 : index
    %346 = vector.load %arg9[%c4_192, %c0_193, %c0_194] : memref<8x8x32xf32, #tpu.memory_space<vmem>>, vector<1x8x32xf32>
    %347 = vector.shape_cast %346 : vector<1x8x32xf32> to vector<8x32xf32>
    %cst_195 = arith.constant dense<0.000000e+00> : vector<8x32xf32>
    %348 = tpu.matmul %345, %347, %cst_195 {dimension_numbers = #tpu.dot_dimension_numbers<[1], [0], [0], [1], [0, 0, 1, 1], [], []>} : vector<8x8xf32>, vector<8x32xf32>, vector<8x32xf32> -> vector<8x32xf32>
    %349 = arith.addf %310, %348 : vector<8x32xf32>
    %c13 = arith.constant 13 : index
    %c0_196 = arith.constant 0 : index
    %c0_197 = arith.constant 0 : index
    %350 = vector.load %arg7[%c13, %c0_196, %c0_197] : memref<24x32x8xf32, #tpu.memory_space<vmem>>, vector<1x32x8xf32>
    %351 = vector.shape_cast %350 : vector<1x32x8xf32> to vector<32x8xf32>
    %cst_198 = arith.constant dense<0.000000e+00> : vector<8x8xf32>
    %352 = tpu.matmul %298, %351, %cst_198 {dimension_numbers = #tpu.dot_dimension_numbers<[1], [0], [0], [1], [0, 0, 1, 1], [], []>} : vector<8x32xf32>, vector<32x8xf32>, vector<8x8xf32> -> vector<8x8xf32>
    %c13_199 = arith.constant 13 : index
    %c0_200 = arith.constant 0 : index
    %c0_201 = arith.constant 0 : index
    %353 = vector.load %arg8[%c13_199, %c0_200, %c0_201] : memref<24x1x8xf32, #tpu.memory_space<vmem>>, vector<1x1x8xf32>
    %354 = vector.shape_cast %353 : vector<1x1x8xf32> to vector<1x8xf32>
    %355 = vector.broadcast %354 : vector<1x8xf32> to vector<8x8xf32>
    %356 = arith.addf %352, %355 : vector<8x8xf32>
    %c17 = arith.constant 17 : index
    %c0_202 = arith.constant 0 : index
    %c0_203 = arith.constant 0 : index
    %357 = vector.load %arg7[%c17, %c0_202, %c0_203] : memref<24x32x8xf32, #tpu.memory_space<vmem>>, vector<1x32x8xf32>
    %358 = vector.shape_cast %357 : vector<1x32x8xf32> to vector<32x8xf32>
    %cst_204 = arith.constant dense<0.000000e+00> : vector<8x8xf32>
    %359 = tpu.matmul %298, %358, %cst_204 {dimension_numbers = #tpu.dot_dimension_numbers<[1], [0], [0], [1], [0, 0, 1, 1], [], []>} : vector<8x32xf32>, vector<32x8xf32>, vector<8x8xf32> -> vector<8x8xf32>
    %c17_205 = arith.constant 17 : index
    %c0_206 = arith.constant 0 : index
    %c0_207 = arith.constant 0 : index
    %360 = vector.load %arg8[%c17_205, %c0_206, %c0_207] : memref<24x1x8xf32, #tpu.memory_space<vmem>>, vector<1x1x8xf32>
    %361 = vector.shape_cast %360 : vector<1x1x8xf32> to vector<1x8xf32>
    %362 = vector.broadcast %361 : vector<1x8xf32> to vector<8x8xf32>
    %363 = arith.addf %359, %362 : vector<8x8xf32>
    %c21 = arith.constant 21 : index
    %c0_208 = arith.constant 0 : index
    %c0_209 = arith.constant 0 : index
    %364 = vector.load %arg7[%c21, %c0_208, %c0_209] : memref<24x32x8xf32, #tpu.memory_space<vmem>>, vector<1x32x8xf32>
    %365 = vector.shape_cast %364 : vector<1x32x8xf32> to vector<32x8xf32>
    %cst_210 = arith.constant dense<0.000000e+00> : vector<8x8xf32>
    %366 = tpu.matmul %298, %365, %cst_210 {dimension_numbers = #tpu.dot_dimension_numbers<[1], [0], [0], [1], [0, 0, 1, 1], [], []>} : vector<8x32xf32>, vector<32x8xf32>, vector<8x8xf32> -> vector<8x8xf32>
    %c21_211 = arith.constant 21 : index
    %c0_212 = arith.constant 0 : index
    %c0_213 = arith.constant 0 : index
    %367 = vector.load %arg8[%c21_211, %c0_212, %c0_213] : memref<24x1x8xf32, #tpu.memory_space<vmem>>, vector<1x1x8xf32>
    %368 = vector.shape_cast %367 : vector<1x1x8xf32> to vector<1x8xf32>
    %369 = vector.broadcast %368 : vector<1x8xf32> to vector<8x8xf32>
    %370 = arith.addf %366, %369 : vector<8x8xf32>
    %cst_214 = arith.constant dense<0.000000e+00> : vector<8x8xf32>
    %371 = tpu.matmul %356, %363, %cst_214 {dimension_numbers = #tpu.dot_dimension_numbers<[1], [1], [0], [0], [0, 0, 1, 0], [], []>} : vector<8x8xf32>, vector<8x8xf32>, vector<8x8xf32> -> vector<8x8xf32>
    %372 = vector.broadcast %56 : vector<1x8xf32> to vector<8x8xf32>
    %373 = arith.addf %371, %372 : vector<8x8xf32>
    %cst_215 = arith.constant dense<0xFF800000> : vector<8xf32>
    %374 = vector.multi_reduction <maximumf>, %373, %cst_215 [1] : vector<8x8xf32> to vector<8xf32>
    %375 = vector.shape_cast %374 : vector<8xf32> to vector<8x1xf32>
    %376 = vector.broadcast %375 : vector<8x1xf32> to vector<8x8xf32>
    %377 = arith.subf %373, %376 : vector<8x8xf32>
    %378 = math.exp %377 : vector<8x8xf32>
    %cst_216 = arith.constant dense<0.000000e+00> : vector<8xf32>
    %379 = vector.multi_reduction <add>, %378, %cst_216 [1] : vector<8x8xf32> to vector<8xf32>
    %380 = vector.shape_cast %379 : vector<8xf32> to vector<8x1xf32>
    %381 = tpu.reciprocal %380 {approx = true} : vector<8x1xf32> -> vector<8x1xf32>
    %382 = vector.broadcast %381 : vector<8x1xf32> to vector<8x8xf32>
    %383 = arith.mulf %378, %382 : vector<8x8xf32>
    %cst_217 = arith.constant dense<0.000000e+00> : vector<8x8xf32>
    %384 = tpu.matmul %383, %370, %cst_217 {dimension_numbers = #tpu.dot_dimension_numbers<[1], [0], [0], [1], [0, 0, 1, 1], [], []>} : vector<8x8xf32>, vector<8x8xf32>, vector<8x8xf32> -> vector<8x8xf32>
    %c5_218 = arith.constant 5 : index
    %c0_219 = arith.constant 0 : index
    %c0_220 = arith.constant 0 : index
    %385 = vector.load %arg9[%c5_218, %c0_219, %c0_220] : memref<8x8x32xf32, #tpu.memory_space<vmem>>, vector<1x8x32xf32>
    %386 = vector.shape_cast %385 : vector<1x8x32xf32> to vector<8x32xf32>
    %cst_221 = arith.constant dense<0.000000e+00> : vector<8x32xf32>
    %387 = tpu.matmul %384, %386, %cst_221 {dimension_numbers = #tpu.dot_dimension_numbers<[1], [0], [0], [1], [0, 0, 1, 1], [], []>} : vector<8x8xf32>, vector<8x32xf32>, vector<8x32xf32> -> vector<8x32xf32>
    %388 = arith.addf %349, %387 : vector<8x32xf32>
    %c14 = arith.constant 14 : index
    %c0_222 = arith.constant 0 : index
    %c0_223 = arith.constant 0 : index
    %389 = vector.load %arg7[%c14, %c0_222, %c0_223] : memref<24x32x8xf32, #tpu.memory_space<vmem>>, vector<1x32x8xf32>
    %390 = vector.shape_cast %389 : vector<1x32x8xf32> to vector<32x8xf32>
    %cst_224 = arith.constant dense<0.000000e+00> : vector<8x8xf32>
    %391 = tpu.matmul %298, %390, %cst_224 {dimension_numbers = #tpu.dot_dimension_numbers<[1], [0], [0], [1], [0, 0, 1, 1], [], []>} : vector<8x32xf32>, vector<32x8xf32>, vector<8x8xf32> -> vector<8x8xf32>
    %c14_225 = arith.constant 14 : index
    %c0_226 = arith.constant 0 : index
    %c0_227 = arith.constant 0 : index
    %392 = vector.load %arg8[%c14_225, %c0_226, %c0_227] : memref<24x1x8xf32, #tpu.memory_space<vmem>>, vector<1x1x8xf32>
    %393 = vector.shape_cast %392 : vector<1x1x8xf32> to vector<1x8xf32>
    %394 = vector.broadcast %393 : vector<1x8xf32> to vector<8x8xf32>
    %395 = arith.addf %391, %394 : vector<8x8xf32>
    %c18 = arith.constant 18 : index
    %c0_228 = arith.constant 0 : index
    %c0_229 = arith.constant 0 : index
    %396 = vector.load %arg7[%c18, %c0_228, %c0_229] : memref<24x32x8xf32, #tpu.memory_space<vmem>>, vector<1x32x8xf32>
    %397 = vector.shape_cast %396 : vector<1x32x8xf32> to vector<32x8xf32>
    %cst_230 = arith.constant dense<0.000000e+00> : vector<8x8xf32>
    %398 = tpu.matmul %298, %397, %cst_230 {dimension_numbers = #tpu.dot_dimension_numbers<[1], [0], [0], [1], [0, 0, 1, 1], [], []>} : vector<8x32xf32>, vector<32x8xf32>, vector<8x8xf32> -> vector<8x8xf32>
    %c18_231 = arith.constant 18 : index
    %c0_232 = arith.constant 0 : index
    %c0_233 = arith.constant 0 : index
    %399 = vector.load %arg8[%c18_231, %c0_232, %c0_233] : memref<24x1x8xf32, #tpu.memory_space<vmem>>, vector<1x1x8xf32>
    %400 = vector.shape_cast %399 : vector<1x1x8xf32> to vector<1x8xf32>
    %401 = vector.broadcast %400 : vector<1x8xf32> to vector<8x8xf32>
    %402 = arith.addf %398, %401 : vector<8x8xf32>
    %c22 = arith.constant 22 : index
    %c0_234 = arith.constant 0 : index
    %c0_235 = arith.constant 0 : index
    %403 = vector.load %arg7[%c22, %c0_234, %c0_235] : memref<24x32x8xf32, #tpu.memory_space<vmem>>, vector<1x32x8xf32>
    %404 = vector.shape_cast %403 : vector<1x32x8xf32> to vector<32x8xf32>
    %cst_236 = arith.constant dense<0.000000e+00> : vector<8x8xf32>
    %405 = tpu.matmul %298, %404, %cst_236 {dimension_numbers = #tpu.dot_dimension_numbers<[1], [0], [0], [1], [0, 0, 1, 1], [], []>} : vector<8x32xf32>, vector<32x8xf32>, vector<8x8xf32> -> vector<8x8xf32>
    %c22_237 = arith.constant 22 : index
    %c0_238 = arith.constant 0 : index
    %c0_239 = arith.constant 0 : index
    %406 = vector.load %arg8[%c22_237, %c0_238, %c0_239] : memref<24x1x8xf32, #tpu.memory_space<vmem>>, vector<1x1x8xf32>
    %407 = vector.shape_cast %406 : vector<1x1x8xf32> to vector<1x8xf32>
    %408 = vector.broadcast %407 : vector<1x8xf32> to vector<8x8xf32>
    %409 = arith.addf %405, %408 : vector<8x8xf32>
    %cst_240 = arith.constant dense<0.000000e+00> : vector<8x8xf32>
    %410 = tpu.matmul %395, %402, %cst_240 {dimension_numbers = #tpu.dot_dimension_numbers<[1], [1], [0], [0], [0, 0, 1, 0], [], []>} : vector<8x8xf32>, vector<8x8xf32>, vector<8x8xf32> -> vector<8x8xf32>
    %411 = vector.broadcast %56 : vector<1x8xf32> to vector<8x8xf32>
    %412 = arith.addf %410, %411 : vector<8x8xf32>
    %cst_241 = arith.constant dense<0xFF800000> : vector<8xf32>
    %413 = vector.multi_reduction <maximumf>, %412, %cst_241 [1] : vector<8x8xf32> to vector<8xf32>
    %414 = vector.shape_cast %413 : vector<8xf32> to vector<8x1xf32>
    %415 = vector.broadcast %414 : vector<8x1xf32> to vector<8x8xf32>
    %416 = arith.subf %412, %415 : vector<8x8xf32>
    %417 = math.exp %416 : vector<8x8xf32>
    %cst_242 = arith.constant dense<0.000000e+00> : vector<8xf32>
    %418 = vector.multi_reduction <add>, %417, %cst_242 [1] : vector<8x8xf32> to vector<8xf32>
    %419 = vector.shape_cast %418 : vector<8xf32> to vector<8x1xf32>
    %420 = tpu.reciprocal %419 {approx = true} : vector<8x1xf32> -> vector<8x1xf32>
    %421 = vector.broadcast %420 : vector<8x1xf32> to vector<8x8xf32>
    %422 = arith.mulf %417, %421 : vector<8x8xf32>
    %cst_243 = arith.constant dense<0.000000e+00> : vector<8x8xf32>
    %423 = tpu.matmul %422, %409, %cst_243 {dimension_numbers = #tpu.dot_dimension_numbers<[1], [0], [0], [1], [0, 0, 1, 1], [], []>} : vector<8x8xf32>, vector<8x8xf32>, vector<8x8xf32> -> vector<8x8xf32>
    %c6_244 = arith.constant 6 : index
    %c0_245 = arith.constant 0 : index
    %c0_246 = arith.constant 0 : index
    %424 = vector.load %arg9[%c6_244, %c0_245, %c0_246] : memref<8x8x32xf32, #tpu.memory_space<vmem>>, vector<1x8x32xf32>
    %425 = vector.shape_cast %424 : vector<1x8x32xf32> to vector<8x32xf32>
    %cst_247 = arith.constant dense<0.000000e+00> : vector<8x32xf32>
    %426 = tpu.matmul %423, %425, %cst_247 {dimension_numbers = #tpu.dot_dimension_numbers<[1], [0], [0], [1], [0, 0, 1, 1], [], []>} : vector<8x8xf32>, vector<8x32xf32>, vector<8x32xf32> -> vector<8x32xf32>
    %427 = arith.addf %388, %426 : vector<8x32xf32>
    %c15 = arith.constant 15 : index
    %c0_248 = arith.constant 0 : index
    %c0_249 = arith.constant 0 : index
    %428 = vector.load %arg7[%c15, %c0_248, %c0_249] : memref<24x32x8xf32, #tpu.memory_space<vmem>>, vector<1x32x8xf32>
    %429 = vector.shape_cast %428 : vector<1x32x8xf32> to vector<32x8xf32>
    %cst_250 = arith.constant dense<0.000000e+00> : vector<8x8xf32>
    %430 = tpu.matmul %298, %429, %cst_250 {dimension_numbers = #tpu.dot_dimension_numbers<[1], [0], [0], [1], [0, 0, 1, 1], [], []>} : vector<8x32xf32>, vector<32x8xf32>, vector<8x8xf32> -> vector<8x8xf32>
    %c15_251 = arith.constant 15 : index
    %c0_252 = arith.constant 0 : index
    %c0_253 = arith.constant 0 : index
    %431 = vector.load %arg8[%c15_251, %c0_252, %c0_253] : memref<24x1x8xf32, #tpu.memory_space<vmem>>, vector<1x1x8xf32>
    %432 = vector.shape_cast %431 : vector<1x1x8xf32> to vector<1x8xf32>
    %433 = vector.broadcast %432 : vector<1x8xf32> to vector<8x8xf32>
    %434 = arith.addf %430, %433 : vector<8x8xf32>
    %c19 = arith.constant 19 : index
    %c0_254 = arith.constant 0 : index
    %c0_255 = arith.constant 0 : index
    %435 = vector.load %arg7[%c19, %c0_254, %c0_255] : memref<24x32x8xf32, #tpu.memory_space<vmem>>, vector<1x32x8xf32>
    %436 = vector.shape_cast %435 : vector<1x32x8xf32> to vector<32x8xf32>
    %cst_256 = arith.constant dense<0.000000e+00> : vector<8x8xf32>
    %437 = tpu.matmul %298, %436, %cst_256 {dimension_numbers = #tpu.dot_dimension_numbers<[1], [0], [0], [1], [0, 0, 1, 1], [], []>} : vector<8x32xf32>, vector<32x8xf32>, vector<8x8xf32> -> vector<8x8xf32>
    %c19_257 = arith.constant 19 : index
    %c0_258 = arith.constant 0 : index
    %c0_259 = arith.constant 0 : index
    %438 = vector.load %arg8[%c19_257, %c0_258, %c0_259] : memref<24x1x8xf32, #tpu.memory_space<vmem>>, vector<1x1x8xf32>
    %439 = vector.shape_cast %438 : vector<1x1x8xf32> to vector<1x8xf32>
    %440 = vector.broadcast %439 : vector<1x8xf32> to vector<8x8xf32>
    %441 = arith.addf %437, %440 : vector<8x8xf32>
    %c23 = arith.constant 23 : index
    %c0_260 = arith.constant 0 : index
    %c0_261 = arith.constant 0 : index
    %442 = vector.load %arg7[%c23, %c0_260, %c0_261] : memref<24x32x8xf32, #tpu.memory_space<vmem>>, vector<1x32x8xf32>
    %443 = vector.shape_cast %442 : vector<1x32x8xf32> to vector<32x8xf32>
    %cst_262 = arith.constant dense<0.000000e+00> : vector<8x8xf32>
    %444 = tpu.matmul %298, %443, %cst_262 {dimension_numbers = #tpu.dot_dimension_numbers<[1], [0], [0], [1], [0, 0, 1, 1], [], []>} : vector<8x32xf32>, vector<32x8xf32>, vector<8x8xf32> -> vector<8x8xf32>
    %c23_263 = arith.constant 23 : index
    %c0_264 = arith.constant 0 : index
    %c0_265 = arith.constant 0 : index
    %445 = vector.load %arg8[%c23_263, %c0_264, %c0_265] : memref<24x1x8xf32, #tpu.memory_space<vmem>>, vector<1x1x8xf32>
    %446 = vector.shape_cast %445 : vector<1x1x8xf32> to vector<1x8xf32>
    %447 = vector.broadcast %446 : vector<1x8xf32> to vector<8x8xf32>
    %448 = arith.addf %444, %447 : vector<8x8xf32>
    %cst_266 = arith.constant dense<0.000000e+00> : vector<8x8xf32>
    %449 = tpu.matmul %434, %441, %cst_266 {dimension_numbers = #tpu.dot_dimension_numbers<[1], [1], [0], [0], [0, 0, 1, 0], [], []>} : vector<8x8xf32>, vector<8x8xf32>, vector<8x8xf32> -> vector<8x8xf32>
    %450 = vector.broadcast %56 : vector<1x8xf32> to vector<8x8xf32>
    %451 = arith.addf %449, %450 : vector<8x8xf32>
    %cst_267 = arith.constant dense<0xFF800000> : vector<8xf32>
    %452 = vector.multi_reduction <maximumf>, %451, %cst_267 [1] : vector<8x8xf32> to vector<8xf32>
    %453 = vector.shape_cast %452 : vector<8xf32> to vector<8x1xf32>
    %454 = vector.broadcast %453 : vector<8x1xf32> to vector<8x8xf32>
    %455 = arith.subf %451, %454 : vector<8x8xf32>
    %456 = math.exp %455 : vector<8x8xf32>
    %cst_268 = arith.constant dense<0.000000e+00> : vector<8xf32>
    %457 = vector.multi_reduction <add>, %456, %cst_268 [1] : vector<8x8xf32> to vector<8xf32>
    %458 = vector.shape_cast %457 : vector<8xf32> to vector<8x1xf32>
    %459 = tpu.reciprocal %458 {approx = true} : vector<8x1xf32> -> vector<8x1xf32>
    %460 = vector.broadcast %459 : vector<8x1xf32> to vector<8x8xf32>
    %461 = arith.mulf %456, %460 : vector<8x8xf32>
    %cst_269 = arith.constant dense<0.000000e+00> : vector<8x8xf32>
    %462 = tpu.matmul %461, %448, %cst_269 {dimension_numbers = #tpu.dot_dimension_numbers<[1], [0], [0], [1], [0, 0, 1, 1], [], []>} : vector<8x8xf32>, vector<8x8xf32>, vector<8x8xf32> -> vector<8x8xf32>
    %c7_270 = arith.constant 7 : index
    %c0_271 = arith.constant 0 : index
    %c0_272 = arith.constant 0 : index
    %463 = vector.load %arg9[%c7_270, %c0_271, %c0_272] : memref<8x8x32xf32, #tpu.memory_space<vmem>>, vector<1x8x32xf32>
    %464 = vector.shape_cast %463 : vector<1x8x32xf32> to vector<8x32xf32>
    %cst_273 = arith.constant dense<0.000000e+00> : vector<8x32xf32>
    %465 = tpu.matmul %462, %464, %cst_273 {dimension_numbers = #tpu.dot_dimension_numbers<[1], [0], [0], [1], [0, 0, 1, 1], [], []>} : vector<8x8xf32>, vector<8x32xf32>, vector<8x32xf32> -> vector<8x32xf32>
    %466 = arith.addf %427, %465 : vector<8x32xf32>
    %467 = vector.broadcast %304 : vector<1x32xf32> to vector<8x32xf32>
    %468 = arith.addf %466, %467 : vector<8x32xf32>
    %469 = arith.addf %468, %298 : vector<8x32xf32>
    %cst_274 = arith.constant dense<0.000000e+00> : vector<8xf32>
    %470 = vector.multi_reduction <add>, %469, %cst_274 [1] : vector<8x32xf32> to vector<8xf32>
    %471 = vector.shape_cast %470 : vector<8xf32> to vector<8x1xf32>
    %cst_275 = arith.constant 3.200000e+01 : f32
    %472 = vector.broadcast %cst_275 : f32 to vector<8x1xf32>
    %473 = arith.divf %471, %472 : vector<8x1xf32>
    %474 = vector.broadcast %473 : vector<8x1xf32> to vector<8x32xf32>
    %475 = arith.subf %469, %474 : vector<8x32xf32>
    %476 = vector.broadcast %473 : vector<8x1xf32> to vector<8x32xf32>
    %477 = arith.subf %469, %476 : vector<8x32xf32>
    %478 = arith.mulf %475, %477 : vector<8x32xf32>
    %cst_276 = arith.constant dense<0.000000e+00> : vector<8xf32>
    %479 = vector.multi_reduction <add>, %478, %cst_276 [1] : vector<8x32xf32> to vector<8xf32>
    %480 = vector.shape_cast %479 : vector<8xf32> to vector<8x1xf32>
    %cst_277 = arith.constant 3.200000e+01 : f32
    %481 = vector.broadcast %cst_277 : f32 to vector<8x1xf32>
    %482 = arith.divf %480, %481 : vector<8x1xf32>
    %483 = vector.broadcast %473 : vector<8x1xf32> to vector<8x32xf32>
    %484 = arith.subf %469, %483 : vector<8x32xf32>
    %cst_278 = arith.constant 9.99999996E-13 : f32
    %485 = vector.broadcast %cst_278 : f32 to vector<8x1xf32>
    %486 = arith.addf %482, %485 : vector<8x1xf32>
    %487 = math.rsqrt %486 : vector<8x1xf32>
    %488 = vector.broadcast %487 : vector<8x1xf32> to vector<8x32xf32>
    %489 = arith.mulf %484, %488 : vector<8x32xf32>
    %490 = vector.broadcast %305 : vector<1x32xf32> to vector<8x32xf32>
    %491 = arith.mulf %489, %490 : vector<8x32xf32>
    %492 = vector.broadcast %306 : vector<1x32xf32> to vector<8x32xf32>
    %493 = arith.addf %491, %492 : vector<8x32xf32>
    %c1_279 = arith.constant 1 : index
    %c0_280 = arith.constant 0 : index
    %c0_281 = arith.constant 0 : index
    %494 = vector.load %arg10[%c1_279, %c0_280, %c0_281] : memref<2x32x64xf32, #tpu.memory_space<vmem>>, vector<1x32x64xf32>
    %495 = vector.shape_cast %494 : vector<1x32x64xf32> to vector<32x64xf32>
    %cst_282 = arith.constant dense<0.000000e+00> : vector<8x64xf32>
    %496 = tpu.matmul %493, %495, %cst_282 {dimension_numbers = #tpu.dot_dimension_numbers<[1], [0], [0], [1], [0, 0, 1, 1], [], []>} : vector<8x32xf32>, vector<32x64xf32>, vector<8x64xf32> -> vector<8x64xf32>
    %c1_283 = arith.constant 1 : index
    %c0_284 = arith.constant 0 : index
    %c0_285 = arith.constant 0 : index
    %497 = vector.load %arg12[%c1_283, %c0_284, %c0_285] : memref<2x1x64xf32, #tpu.memory_space<vmem>>, vector<1x1x64xf32>
    %498 = vector.shape_cast %497 : vector<1x1x64xf32> to vector<1x64xf32>
    %499 = vector.broadcast %498 : vector<1x64xf32> to vector<8x64xf32>
    %500 = arith.addf %496, %499 : vector<8x64xf32>
    %cst_286 = arith.constant 5.000000e-01 : f32
    %501 = vector.broadcast %cst_286 : f32 to vector<8x64xf32>
    %502 = arith.mulf %501, %500 : vector<8x64xf32>
    %cst_287 = arith.constant 4.471500e-02 : f32
    %503 = vector.broadcast %cst_287 : f32 to vector<8x64xf32>
    %504 = arith.mulf %503, %500 : vector<8x64xf32>
    %505 = arith.mulf %504, %500 : vector<8x64xf32>
    %506 = arith.mulf %505, %500 : vector<8x64xf32>
    %507 = arith.addf %500, %506 : vector<8x64xf32>
    %cst_288 = arith.constant 0.797884583 : f32
    %508 = vector.broadcast %cst_288 : f32 to vector<8x64xf32>
    %509 = arith.mulf %508, %507 : vector<8x64xf32>
    %510 = math.tanh %509 : vector<8x64xf32>
    %cst_289 = arith.constant 1.000000e+00 : f32
    %511 = vector.broadcast %cst_289 : f32 to vector<8x64xf32>
    %512 = arith.addf %511, %510 : vector<8x64xf32>
    %513 = arith.mulf %502, %512 : vector<8x64xf32>
    %c1_290 = arith.constant 1 : index
    %c0_291 = arith.constant 0 : index
    %c0_292 = arith.constant 0 : index
    %514 = vector.load %arg11[%c1_290, %c0_291, %c0_292] : memref<2x64x32xf32, #tpu.memory_space<vmem>>, vector<1x64x32xf32>
    %515 = vector.shape_cast %514 : vector<1x64x32xf32> to vector<64x32xf32>
    %cst_293 = arith.constant dense<0.000000e+00> : vector<8x32xf32>
    %516 = tpu.matmul %513, %515, %cst_293 {dimension_numbers = #tpu.dot_dimension_numbers<[1], [0], [0], [1], [0, 0, 1, 1], [], []>} : vector<8x64xf32>, vector<64x32xf32>, vector<8x32xf32> -> vector<8x32xf32>
    %517 = vector.broadcast %307 : vector<1x32xf32> to vector<8x32xf32>
    %518 = arith.addf %516, %517 : vector<8x32xf32>
    %519 = arith.addf %518, %493 : vector<8x32xf32>
    %cst_294 = arith.constant dense<0.000000e+00> : vector<8xf32>
    %520 = vector.multi_reduction <add>, %519, %cst_294 [1] : vector<8x32xf32> to vector<8xf32>
    %521 = vector.shape_cast %520 : vector<8xf32> to vector<8x1xf32>
    %cst_295 = arith.constant 3.200000e+01 : f32
    %522 = vector.broadcast %cst_295 : f32 to vector<8x1xf32>
    %523 = arith.divf %521, %522 : vector<8x1xf32>
    %524 = vector.broadcast %523 : vector<8x1xf32> to vector<8x32xf32>
    %525 = arith.subf %519, %524 : vector<8x32xf32>
    %526 = vector.broadcast %523 : vector<8x1xf32> to vector<8x32xf32>
    %527 = arith.subf %519, %526 : vector<8x32xf32>
    %528 = arith.mulf %525, %527 : vector<8x32xf32>
    %cst_296 = arith.constant dense<0.000000e+00> : vector<8xf32>
    %529 = vector.multi_reduction <add>, %528, %cst_296 [1] : vector<8x32xf32> to vector<8xf32>
    %530 = vector.shape_cast %529 : vector<8xf32> to vector<8x1xf32>
    %cst_297 = arith.constant 3.200000e+01 : f32
    %531 = vector.broadcast %cst_297 : f32 to vector<8x1xf32>
    %532 = arith.divf %530, %531 : vector<8x1xf32>
    %533 = vector.broadcast %523 : vector<8x1xf32> to vector<8x32xf32>
    %534 = arith.subf %519, %533 : vector<8x32xf32>
    %cst_298 = arith.constant 9.99999996E-13 : f32
    %535 = vector.broadcast %cst_298 : f32 to vector<8x1xf32>
    %536 = arith.addf %532, %535 : vector<8x1xf32>
    %537 = math.rsqrt %536 : vector<8x1xf32>
    %538 = vector.broadcast %537 : vector<8x1xf32> to vector<8x32xf32>
    %539 = arith.mulf %534, %538 : vector<8x32xf32>
    %540 = vector.broadcast %308 : vector<1x32xf32> to vector<8x32xf32>
    %541 = arith.mulf %539, %540 : vector<8x32xf32>
    %542 = vector.broadcast %309 : vector<1x32xf32> to vector<8x32xf32>
    %543 = arith.addf %541, %542 : vector<8x32xf32>
    %c2_299 = arith.constant 2 : index
    %c0_300 = arith.constant 0 : index
    %c0_301 = arith.constant 0 : index
    %544 = vector.load %arg14[%c2_299, %c0_300, %c0_301] : memref<3x8x32xf32, #tpu.memory_space<vmem>>, vector<1x8x32xf32>
    %545 = vector.shape_cast %544 : vector<1x8x32xf32> to vector<8x32xf32>
    %546 = vector.shape_cast %543 : vector<8x32xf32> to vector<1x8x32xf32>
    tpu.vector_store %arg14[%c2_299, %c0_300, %c0_301], %546 {strides = array<i32>} : memref<3x8x32xf32, #tpu.memory_space<vmem>>, vector<1x8x32xf32>,
    return
  }
}

</mosaic_0001>

<llo_original>
// kernel: encode.1
$region0: #{encode.1}
  #allocation0 [shape = 'u32[]', space=smem, size = 0x4, offset = 0x4, fixed_abs, tag = 'smem constant byte address 0x4 - core index']
  #allocation1 [shape = 'u32[144,128]{1,0:T(1,128)}', space=vmem, size = 0x12000, scoped, tag = 'internal scratch']
  %s0 = inlined_call_operand.vmem [shape: s32[8,1], index: 0, kind: input, shape index: {}]
  %s1 = inlined_call_operand.vmem [shape: s32[8,1], index: 1, kind: input, shape index: {}]
  %s2 = inlined_call_operand.vmem [shape: s32[1,8], index: 2, kind: input, shape index: {}]
  %s3 = inlined_call_operand.vmem [shape: f32[128,32], index: 3, kind: input, shape index: {}]
  %s4 = inlined_call_operand.vmem [shape: f32[2,32], index: 4, kind: input, shape index: {}]
  %s5 = inlined_call_operand.vmem [shape: f32[8,32], index: 5, kind: input, shape index: {}]
  %s6 = inlined_call_operand.vmem [shape: f32[2,32], index: 6, kind: input, shape index: {}]
  %s7 = inlined_call_operand.vmem [shape: f32[24,32,8], index: 7, kind: input, shape index: {}]
  %s8 = inlined_call_operand.vmem [shape: f32[24,1,8], index: 8, kind: input, shape index: {}]
  %s9 = inlined_call_operand.vmem [shape: f32[8,8,32], index: 9, kind: input, shape index: {}]
  %s10 = inlined_call_operand.vmem [shape: f32[2,32,64], index: 10, kind: input, shape index: {}]
  %s11 = inlined_call_operand.vmem [shape: f32[2,64,32], index: 11, kind: input, shape index: {}]
  %s12 = inlined_call_operand.vmem [shape: f32[2,1,64], index: 12, kind: input, shape index: {}]
  %s13 = inlined_call_operand.vmem [shape: f32[2,6,32], index: 13, kind: input, shape index: {}]
  %s14 = inlined_call_operand.vmem [shape: f32[3,8,32], index: 14, kind: output, shape index: {}]
  %s15 = sld [smem:[#allocation0]]
  $region66: #{encode.1} parent=0
    _
  %s17 = ssub.s32 1, %s15
  %s18 = scalar_select 0, %s17, %s15
  // Predicated region
  $region2: #{encode.1} parent=0 // pred_check
    _
  $region3: #{encode.1} parent=0 // pred_check_branch
    %20 = sbr.rel (0) target = $region5
  $region4: #{encode.1} parent=0 // pred_region
    _
  $region5: #{encode.1} parent=0 // pred_fallthru
    _
  // Predicated region
  $region6: #{encode.1} parent=0 // pred_check
    _
  $region7: #{encode.1} parent=0 // pred_check_branch
    %22 = sbr.rel (0) target = $region9
  $region8: #{encode.1} parent=0 // pred_region
    _
  $region9: #{encode.1} parent=0 // pred_fallthru
    _
  // Predicated region
  $region10: #{encode.1} parent=0 // pred_check
    _
  $region11: #{encode.1} parent=0 // pred_check_branch
    %24 = sbr.rel (0) target = $region13
  $region12: #{encode.1} parent=0 // pred_region
    _
  $region13: #{encode.1} parent=0 // pred_fallthru
    _
  // Predicated region
  $region14: #{encode.1} parent=0 // pred_check
    _
  $region15: #{encode.1} parent=0 // pred_check_branch
    %26 = sbr.rel (0) target = $region17
  $region16: #{encode.1} parent=0 // pred_region
    _
  $region17: #{encode.1} parent=0 // pred_fallthru
    _
  // Predicated region
  $region18: #{encode.1} parent=0 // pred_check
    _
  $region19: #{encode.1} parent=0 // pred_check_branch
    %28 = sbr.rel (0) target = $region21
  $region20: #{encode.1} parent=0 // pred_region
    _
  $region21: #{encode.1} parent=0 // pred_fallthru
    _
  // Predicated region
  $region22: #{encode.1} parent=0 // pred_check
    _
  $region23: #{encode.1} parent=0 // pred_check_branch
    %30 = sbr.rel (0) target = $region25
  $region24: #{encode.1} parent=0 // pred_region
    _
  $region25: #{encode.1} parent=0 // pred_fallthru
    _
  // Predicated region
  $region26: #{encode.1} parent=0 // pred_check
    _
  $region27: #{encode.1} parent=0 // pred_check_branch
    %32 = sbr.rel (0) target = $region29
  $region28: #{encode.1} parent=0 // pred_region
    _
  $region29: #{encode.1} parent=0 // pred_fallthru
    _
  // Predicated region
  $region30: #{encode.1} parent=0 // pred_check
    _
  $region31: #{encode.1} parent=0 // pred_check_branch
    %34 = sbr.rel (0) target = $region33
  $region32: #{encode.1} parent=0 // pred_region
    _
  $region33: #{encode.1} parent=0 // pred_fallthru
    _
  // Predicated region
  $region34: #{encode.1} parent=0 // pred_check
    _
  $region35: #{encode.1} parent=0 // pred_check_branch
    %36 = sbr.rel (0) target = $region37
  $region36: #{encode.1} parent=0 // pred_region
    _
  $region37: #{encode.1} parent=0 // pred_fallthru
    _
  // Predicated region
  $region38: #{encode.1} parent=0 // pred_check
    _
  $region39: #{encode.1} parent=0 // pred_check_branch
    %38 = sbr.rel (0) target = $region41
  $region40: #{encode.1} parent=0 // pred_region
    _
  $region41: #{encode.1} parent=0 // pred_fallthru
    _
  // Predicated region
  $region42: #{encode.1} parent=0 // pred_check
    _
  $region43: #{encode.1} parent=0 // pred_check_branch
    %40 = sbr.rel (0) target = $region45
  $region44: #{encode.1} parent=0 // pred_region
    _
  $region45: #{encode.1} parent=0 // pred_fallthru
    _
  // Predicated region
  $region46: #{encode.1} parent=0 // pred_check
    _
  $region47: #{encode.1} parent=0 // pred_check_branch
    %42 = sbr.rel (0) target = $region49
  $region48: #{encode.1} parent=0 // pred_region
    _
  $region49: #{encode.1} parent=0 // pred_fallthru
    _
  // Predicated region
  $region50: #{encode.1} parent=0 // pred_check
    _
  $region51: #{encode.1} parent=0 // pred_check_branch
    %44 = sbr.rel (0) target = $region53
  $region52: #{encode.1} parent=0 // pred_region
    _
  $region53: #{encode.1} parent=0 // pred_fallthru
    _
  // Predicated region
  $region54: #{encode.1} parent=0 // pred_check
    _
  $region55: #{encode.1} parent=0 // pred_check_branch
    %46 = sbr.rel (0) target = $region57
  $region56: #{encode.1} parent=0 // pred_region
    _
  $region57: #{encode.1} parent=0 // pred_fallthru
    _
  %v47 = vld [vmem:[%s0] sm:$0xff]
  %v48 = vlaneseq
  %v49 = vand.u32 %v48, 127
  %50 = vset.pattern.permute.xlu0 0
  %51 = vperm.xlu0 %50, %v47
  %v52 = vpop.permute.xlu0 %51
  %vm53 = vcmp.eq.s32.totalorder %v52, %v49
  %v54 = vsel %vm53, 1, 0
  %v55 = vcvt.s32.f32 %v54
  %v56 = vld [vmem:[%s3] sm:$0xff]
  %v57 = vld [vmem:[%s3 + $0x8] sm:$0xff]
  %v58 = vld [vmem:[%s3 + $0x10] sm:$0xff]
  %v59 = vld [vmem:[%s3 + $0x18] sm:$0xff]
  %v60 = vld [vmem:[%s3 + $0x20] sm:$0xff]
  %v61 = vld [vmem:[%s3 + $0x28] sm:$0xff]
  %v62 = vld [vmem:[%s3 + $0x30] sm:$0xff]
  %v63 = vld [vmem:[%s3 + $0x38] sm:$0xff]
  %v64 = vld [vmem:[%s3 + $0x40] sm:$0xff]
  %v65 = vld [vmem:[%s3 + $0x48] sm:$0xff]
  %v66 = vld [vmem:[%s3 + $0x50] sm:$0xff]
  %v67 = vld [vmem:[%s3 + $0x58] sm:$0xff]
  %v68 = vld [vmem:[%s3 + $0x60] sm:$0xff]
  %v69 = vld [vmem:[%s3 + $0x68] sm:$0xff]
  %v70 = vld [vmem:[%s3 + $0x70] sm:$0xff]
  %v71 = vld [vmem:[%s3 + $0x78] sm:$0xff]
  %v72 = vld [vmem:[%s1] sm:$0xff]
  %v73 = vcvt.s32.f32 %v72
  %v74 = vld [vmem:[%s4] sm:$0x1]
  %v75 = vlaneseq
  %v76 = vshrl.u32 %v75, 7
  %v77 = vsub.s32 0, %v76
  %v78 = vrot.slane %v74, %v77
  %79 = vmatprep.subr.mxu0 0.0
  %80 = vmatpush1.msra.mxu0 %v56
  %81 = vmatprep.subr.mxu0 0.0
  %82 = vmatpush1.msra.mxu0 %v57
  %83 = vmatprep.subr.mxu0 0.0
  %84 = vmatpush1.msra.mxu0 %v58
  %85 = vmatprep.subr.mxu0 0.0
  %86 = vmatpush1.msra.mxu0 %v59
  %87 = vmatprep.subr.mxu0 0.0
  %88 = vmatpush1.msra.mxu0 %v60
  %89 = vmatprep.subr.mxu0 0.0
  %90 = vmatpush1.msra.mxu0 %v61
  %91 = vmatprep.subr.mxu0 0.0
  %92 = vmatpush1.msra.mxu0 %v62
  %93 = vmatprep.subr.mxu0 0.0
  %94 = vmatpush1.msra.mxu0 %v63
  %95 = vmatprep.subr.mxu0 0.0
  %96 = vmatpush1.msra.mxu0 %v64
  %97 = vmatprep.subr.mxu0 0.0
  %98 = vmatpush1.msra.mxu0 %v65
  %99 = vmatprep.subr.mxu0 0.0
  %100 = vmatpush1.msra.mxu0 %v66
  %101 = vmatprep.subr.mxu0 0.0
  %102 = vmatpush1.msra.mxu0 %v67
  %103 = vmatprep.subr.mxu0 0.0
  %104 = vmatpush1.msra.mxu0 %v68
  %105 = vmatprep.subr.mxu0 0.0
  %106 = vmatpush1.msra.mxu0 %v69
  %107 = vmatprep.subr.mxu0 0.0
  %108 = vmatpush1.msra.mxu0 %v70
  %109 = vmatprep.subr.mxu0 0.0
  %110 = vmatpush1.msra.mxu0 %v71
  %111 = vmatprep.subr.mxu0 0.0
  %112 = vmatpush1.msra.mxu0 0.0
  %113 = vmatprep.subr.mxu0 0.0
  %114 = vmatpush1.msra.mxu0 0.0
  %115 = vmatprep.subr.mxu0 0.0
  %116 = vmatpush1.msra.mxu0 0.0
  %117 = vmatprep.subr.mxu0 0.0
  %118 = vmatpush1.msra.mxu0 0.0
  %119 = vmatprep.subr.mxu0 0.0
  %120 = vmatpush1.msra.mxu0 0.0
  %121 = vmatprep.subr.mxu0 0.0
  %122 = vmatpush1.msra.mxu0 0.0
  %123 = vmatprep.subr.mxu0 0.0
  %124 = vmatpush1.msra.mxu0 0.0
  %125 = vmatprep.subr.mxu0 0.0
  %126 = vmatpush1.msra.mxu0 0.0
  %127 = vmatprep.subr.mxu0 0.0
  %128 = vmatpush1.msra.mxu0 0.0
  %129 = vmatprep.subr.mxu0 0.0
  %130 = vmatpush1.msra.mxu0 0.0
  %131 = vmatprep.subr.mxu0 0.0
  %132 = vmatpush1.msra.mxu0 0.0
  %133 = vmatprep.subr.mxu0 0.0
  %134 = vmatpush1.msra.mxu0 0.0
  %135 = vmatprep.subr.mxu0 0.0
  %136 = vmatpush1.msra.mxu0 0.0
  %137 = vmatprep.subr.mxu0 0.0
  %138 = vmatpush1.msra.mxu0 0.0
  %139 = vmatprep.subr.mxu0 0.0
  %140 = vmatpush1.msra.mxu0 0.0
  %141 = vmatprep.subr.mxu0 0.0
  %142 = vmatpush1.msra.mxu0 0.0
  %143 = vmatprep.mubr.f32.mxu0 0.0
  %144 = vmatmul.mubr.f32.gmra.mrb[0].mxu0 %v55
  %v145 = vpop.f32.mrb[0].mxu0
  %v146 = vadd.f32 %v78, %v145
  %v147 = vpop.f32.mrb[0].mxu0
  %148 = vdwg.mxu0
  %v149 = vld [vmem:[%s4 + $0x1] sm:$0x1]
  %v150 = vsub.f32 %v149, %v74
  %152 = vset.pattern.permute.xlu0 0
  %153 = vperm.xlu0 %152, %v73
  %v154 = vpop.permute.xlu0 %153
  %v156 = vlaneseq
  %v157 = vshrl.u32 %v156, 7
  %v158 = vsub.s32 0, %v157
  %v159 = vrot.slane %v150, %v158
  %v160 = vmul.f32 %v154, %v159
  %v161 = vadd.f32 %v146, %v160
  %v162 = vld [vmem:[%s5] sm:$0xff]
  %v163 = vadd.f32 %v161, %v162
  %v164 = vld [vmem:[%s6] sm:$0x1]
  %v165 = vld [vmem:[%s6 + $0x1] sm:$0x1]
  %vm166 = vcmask 261120
  %v167 = vsel %vm166, %v163, 0.0
  %168 = vadd.xlane.f32.xlu0 %v167
  %v169 = vpop.xlane.xlu0 %168
  %v170 = vrcp.pop 32.0
  %v171 = vmul.f32 %v169, %v170
  %v172 = vsub.f32 %v163, %v171
  %v173 = vmul.f32 %v172, %v172
  %v174 = vsel %vm166, %v173, 0.0
  %175 = vadd.xlane.f32.xlu0 %v174
  %v176 = vpop.xlane.xlu0 %175
  %v177 = vmul.f32 %v176, %v170
  %v178 = vadd.f32 %v177, 1e-12
  %v179 = vrsqrt.pop %v178
  %v180 = vmul.f32 %v172, %v179
  %v181 = vlaneseq
  %v182 = vshrl.u32 %v181, 7
  %v183 = vsub.s32 0, %v182
  %v184 = vrot.slane %v164, %v183
  %v185 = vmul.f32 %v180, %v184
  %v186 = vlaneseq
  %v187 = vshrl.u32 %v186, 7
  %v188 = vsub.s32 0, %v187
  %v189 = vrot.slane %v165, %v188
  %v190 = vadd.f32 %v185, %v189
  %191 = vst.msk [vmem:[%s14] sm:$0xff] %vm166, %v190
  %v192 = vld [vmem:[%s2] sm:$0x1]
  %v193 = vcvt.s32.f32 %v192
  %v194 = vsub.f32 1.0, %v193
  %v195 = vmul.f32 %v194, -10000.0
  %v196 = vld [vmem:[%s13] sm:$0x3f]
  %v197 = vld [vmem:[%s7] sm:$0xff]
  %v198 = vld [vmem:[%s7 + $0x8] sm:$0xff]
  %v199 = vld [vmem:[%s7 + $0x10] sm:$0xff]
  %v200 = vld [vmem:[%s7 + $0x18] sm:$0xff]
  %v201 = vld [vmem:[%s8] sm:$0x1]
  %v203 = vlaneseq
  %v204 = vshrl.u32 %v203, 7
  %v205 = vsub.s32 0, %v204
  %v206 = vrot.slane %v201, %v205
  %v209 = vsel %vm166, %v190, 0
  %211 = vmatprep.subr.mxu0 0.0
  %212 = vmatpush1.msra.mxu0 %v197
  %213 = vmatprep.subr.mxu0 0.0
  %214 = vmatpush1.msra.mxu0 %v198
  %215 = vmatprep.subr.mxu0 0.0
  %216 = vmatpush1.msra.mxu0 %v199
  %217 = vmatprep.subr.mxu0 0.0
  %218 = vmatpush1.msra.mxu0 %v200
  %219 = vmatprep.subr.mxu0 0.0
  %220 = vmatpush1.msra.mxu0 0.0
  %221 = vmatprep.subr.mxu0 0.0
  %222 = vmatpush1.msra.mxu0 0.0
  %223 = vmatprep.subr.mxu0 0.0
  %224 = vmatpush1.msra.mxu0 0.0
  %225 = vmatprep.subr.mxu0 0.0
  %226 = vmatpush1.msra.mxu0 0.0
  %227 = vmatprep.subr.mxu0 0.0
  %228 = vmatpush1.msra.mxu0 0.0
  %229 = vmatprep.subr.mxu0 0.0
  %230 = vmatpush1.msra.mxu0 0.0
  %231 = vmatprep.subr.mxu0 0.0
  %232 = vmatpush1.msra.mxu0 0.0
  %233 = vmatprep.subr.mxu0 0.0
  %234 = vmatpush1.msra.mxu0 0.0
  %235 = vmatprep.subr.mxu0 0.0
  %236 = vmatpush1.msra.mxu0 0.0
  %237 = vmatprep.subr.mxu0 0.0
  %238 = vmatpush1.msra.mxu0 0.0
  %239 = vmatprep.subr.mxu0 0.0
  %240 = vmatpush1.msra.mxu0 0.0
  %241 = vmatprep.subr.mxu0 0.0
  %242 = vmatpush1.msra.mxu0 0.0
  %243 = vmatprep.subr.mxu0 0.0
  %244 = vmatpush1.msra.mxu0 0.0
  %245 = vmatprep.subr.mxu0 0.0
  %246 = vmatpush1.msra.mxu0 0.0
  %247 = vmatprep.subr.mxu0 0.0
  %248 = vmatpush1.msra.mxu0 0.0
  %249 = vmatprep.subr.mxu0 0.0
  %250 = vmatpush1.msra.mxu0 0.0
  %251 = vmatprep.subr.mxu0 0.0
  %252 = vmatpush1.msra.mxu0 0.0
  %253 = vmatprep.subr.mxu0 0.0
  %254 = vmatpush1.msra.mxu0 0.0
  %255 = vmatprep.subr.mxu0 0.0
  %256 = vmatpush1.msra.mxu0 0.0
  %257 = vmatprep.subr.mxu0 0.0
  %258 = vmatpush1.msra.mxu0 0.0
  %259 = vmatprep.subr.mxu0 0.0
  %260 = vmatpush1.msra.mxu0 0.0
  %261 = vmatprep.subr.mxu0 0.0
  %262 = vmatpush1.msra.mxu0 0.0
  %263 = vmatprep.subr.mxu0 0.0
  %264 = vmatpush1.msra.mxu0 0.0
  %265 = vmatprep.subr.mxu0 0.0
  %266 = vmatpush1.msra.mxu0 0.0
  %267 = vmatprep.subr.mxu0 0.0
  %268 = vmatpush1.msra.mxu0 0.0
  %269 = vmatprep.subr.mxu0 0.0
  %270 = vmatpush1.msra.mxu0 0.0
  %271 = vmatprep.subr.mxu0 0.0
  %272 = vmatpush1.msra.mxu0 0.0
  %273 = vmatprep.subr.mxu0 0.0
  %274 = vmatpush1.msra.mxu0 0.0
  %275 = vmatprep.mubr.f32.mxu0 0.0
  %276 = vmatmul.mubr.f32.gmra.mrb[0].mxu0 %v209
  %v277 = vpop.f32.mrb[0].mxu0
  %v278 = vadd.f32 %v206, %v277
  %v279 = vpop.f32.mrb[0].mxu0
  %280 = vdwg.mxu0
  %s281 = scalar_lea.vmem %s7, 128
  %v282 = vld [vmem:[%s281] sm:$0xff]
  %v283 = vld [vmem:[%s281 + $0x8] sm:$0xff]
  %v284 = vld [vmem:[%s281 + $0x10] sm:$0xff]
  %v285 = vld [vmem:[%s281 + $0x18] sm:$0xff]
  %s286 = scalar_lea.vmem %s8, 4
  %v287 = vld [vmem:[%s286] sm:$0x1]
  %v289 = vlaneseq
  %v290 = vshrl.u32 %v289, 7
  %v291 = vsub.s32 0, %v290
  %v292 = vrot.slane %v287, %v291
  %294 = vmatprep.subr.mxu0 0.0
  %295 = vmatpush1.msra.mxu0 %v282
  %296 = vmatprep.subr.mxu0 0.0
  %297 = vmatpush1.msra.mxu0 %v283
  %298 = vmatprep.subr.mxu0 0.0
  %299 = vmatpush1.msra.mxu0 %v284
  %300 = vmatprep.subr.mxu0 0.0
  %301 = vmatpush1.msra.mxu0 %v285
  %302 = vmatprep.subr.mxu0 0.0
  %303 = vmatpush1.msra.mxu0 0.0
  %304 = vmatprep.subr.mxu0 0.0
  %305 = vmatpush1.msra.mxu0 0.0
  %306 = vmatprep.subr.mxu0 0.0
  %307 = vmatpush1.msra.mxu0 0.0
  %308 = vmatprep.subr.mxu0 0.0
  %309 = vmatpush1.msra.mxu0 0.0
  %310 = vmatprep.subr.mxu0 0.0
  %311 = vmatpush1.msra.mxu0 0.0
  %312 = vmatprep.subr.mxu0 0.0
  %313 = vmatpush1.msra.mxu0 0.0
  %314 = vmatprep.subr.mxu0 0.0
  %315 = vmatpush1.msra.mxu0 0.0
  %316 = vmatprep.subr.mxu0 0.0
  %317 = vmatpush1.msra.mxu0 0.0
  %318 = vmatprep.subr.mxu0 0.0
  %319 = vmatpush1.msra.mxu0 0.0
  %320 = vmatprep.subr.mxu0 0.0
  %321 = vmatpush1.msra.mxu0 0.0
  %322 = vmatprep.subr.mxu0 0.0
  %323 = vmatpush1.msra.mxu0 0.0
  %324 = vmatprep.subr.mxu0 0.0
  %325 = vmatpush1.msra.mxu0 0.0
  %326 = vmatprep.subr.mxu0 0.0
  %327 = vmatpush1.msra.mxu0 0.0
  %328 = vmatprep.subr.mxu0 0.0
  %329 = vmatpush1.msra.mxu0 0.0
  %330 = vmatprep.subr.mxu0 0.0
  %331 = vmatpush1.msra.mxu0 0.0
  %332 = vmatprep.subr.mxu0 0.0
  %333 = vmatpush1.msra.mxu0 0.0
  %334 = vmatprep.subr.mxu0 0.0
  %335 = vmatpush1.msra.mxu0 0.0
  %336 = vmatprep.subr.mxu0 0.0
  %337 = vmatpush1.msra.mxu0 0.0
  %338 = vmatprep.subr.mxu0 0.0
  %339 = vmatpush1.msra.mxu0 0.0
  %340 = vmatprep.subr.mxu0 0.0
  %341 = vmatpush1.msra.mxu0 0.0
  %342 = vmatprep.subr.mxu0 0.0
  %343 = vmatpush1.msra.mxu0 0.0
  %344 = vmatprep.subr.mxu0 0.0
  %345 = vmatpush1.msra.mxu0 0.0
  %346 = vmatprep.subr.mxu0 0.0
  %347 = vmatpush1.msra.mxu0 0.0
  %348 = vmatprep.subr.mxu0 0.0
  %349 = vmatpush1.msra.mxu0 0.0
  %350 = vmatprep.subr.mxu0 0.0
  %351 = vmatpush1.msra.mxu0 0.0
  %352 = vmatprep.subr.mxu0 0.0
  %353 = vmatpush1.msra.mxu0 0.0
  %354 = vmatprep.subr.mxu0 0.0
  %355 = vmatpush1.msra.mxu0 0.0
  %356 = vmatprep.subr.mxu0 0.0
  %357 = vmatpush1.msra.mxu0 0.0
  %358 = vmatprep.mubr.f32.mxu0 0.0
  %359 = vmatmul.mubr.f32.gmra.mrb[0].mxu0 %v209
  %v360 = vpop.f32.mrb[0].mxu0
  %v361 = vadd.f32 %v292, %v360
  %v362 = vpop.f32.mrb[0].mxu0
  %363 = vdwg.mxu0
  %s364 = scalar_lea.vmem %s7, 256
  %v365 = vld [vmem:[%s364] sm:$0xff]
  %v366 = vld [vmem:[%s364 + $0x8] sm:$0xff]
  %v367 = vld [vmem:[%s364 + $0x10] sm:$0xff]
  %v368 = vld [vmem:[%s364 + $0x18] sm:$0xff]
  %s369 = scalar_lea.vmem %s8, 8
  %v370 = vld [vmem:[%s369] sm:$0x1]
  %v372 = vlaneseq
  %v373 = vshrl.u32 %v372, 7
  %v374 = vsub.s32 0, %v373
  %v375 = vrot.slane %v370, %v374
  %377 = vmatprep.subr.mxu0 0.0
  %378 = vmatpush1.msra.mxu0 %v365
  %379 = vmatprep.subr.mxu0 0.0
  %380 = vmatpush1.msra.mxu0 %v366
  %381 = vmatprep.subr.mxu0 0.0
  %382 = vmatpush1.msra.mxu0 %v367
  %383 = vmatprep.subr.mxu0 0.0
  %384 = vmatpush1.msra.mxu0 %v368
  %385 = vmatprep.subr.mxu0 0.0
  %386 = vmatpush1.msra.mxu0 0.0
  %387 = vmatprep.subr.mxu0 0.0
  %388 = vmatpush1.msra.mxu0 0.0
  %389 = vmatprep.subr.mxu0 0.0
  %390 = vmatpush1.msra.mxu0 0.0
  %391 = vmatprep.subr.mxu0 0.0
  %392 = vmatpush1.msra.mxu0 0.0
  %393 = vmatprep.subr.mxu0 0.0
  %394 = vmatpush1.msra.mxu0 0.0
  %395 = vmatprep.subr.mxu0 0.0
  %396 = vmatpush1.msra.mxu0 0.0
  %397 = vmatprep.subr.mxu0 0.0
  %398 = vmatpush1.msra.mxu0 0.0
  %399 = vmatprep.subr.mxu0 0.0
  %400 = vmatpush1.msra.mxu0 0.0
  %401 = vmatprep.subr.mxu0 0.0
  %402 = vmatpush1.msra.mxu0 0.0
  %403 = vmatprep.subr.mxu0 0.0
  %404 = vmatpush1.msra.mxu0 0.0
  %405 = vmatprep.subr.mxu0 0.0
  %406 = vmatpush1.msra.mxu0 0.0
  %407 = vmatprep.subr.mxu0 0.0
  %408 = vmatpush1.msra.mxu0 0.0
  %409 = vmatprep.subr.mxu0 0.0
  %410 = vmatpush1.msra.mxu0 0.0
  %411 = vmatprep.subr.mxu0 0.0
  %412 = vmatpush1.msra.mxu0 0.0
  %413 = vmatprep.subr.mxu0 0.0
  %414 = vmatpush1.msra.mxu0 0.0
  %415 = vmatprep.subr.mxu0 0.0
  %416 = vmatpush1.msra.mxu0 0.0
  %417 = vmatprep.subr.mxu0 0.0
  %418 = vmatpush1.msra.mxu0 0.0
  %419 = vmatprep.subr.mxu0 0.0
  %420 = vmatpush1.msra.mxu0 0.0
  %421 = vmatprep.subr.mxu0 0.0
  %422 = vmatpush1.msra.mxu0 0.0
  %423 = vmatprep.subr.mxu0 0.0
  %424 = vmatpush1.msra.mxu0 0.0
  %425 = vmatprep.subr.mxu0 0.0
  %426 = vmatpush1.msra.mxu0 0.0
  %427 = vmatprep.subr.mxu0 0.0
  %428 = vmatpush1.msra.mxu0 0.0
  %429 = vmatprep.subr.mxu0 0.0
  %430 = vmatpush1.msra.mxu0 0.0
  %431 = vmatprep.subr.mxu0 0.0
  %432 = vmatpush1.msra.mxu0 0.0
  %433 = vmatprep.subr.mxu0 0.0
  %434 = vmatpush1.msra.mxu0 0.0
  %435 = vmatprep.subr.mxu0 0.0
  %436 = vmatpush1.msra.mxu0 0.0
  %437 = vmatprep.subr.mxu0 0.0
  %438 = vmatpush1.msra.mxu0 0.0
  %439 = vmatprep.subr.mxu0 0.0
  %440 = vmatpush1.msra.mxu0 0.0
  %441 = vmatprep.mubr.f32.mxu0 0.0
  %442 = vmatmul.mubr.f32.gmra.mrb[0].mxu0 %v209
  %v443 = vpop.f32.mrb[0].mxu0
  %v444 = vadd.f32 %v375, %v443
  %v445 = vpop.f32.mrb[0].mxu0
  %446 = vdwg.mxu0
  %v448 = vlaneseq
  %v449 = vshrl.u32 %v448, 7
  %v450 = vsub.s32 0, %v449
  %v451 = vrot.slane %v195, %v450
  %vm453 = vcmask 64512
  %v455 = vsel %vm453, %v278, 0
  %v458 = vsel %vm453, %v361, 0
  %460 = vmatprep.subr.mxu0 0.0
  %461 = vmatpush1.xpose.msra.mxu0 %v458
  %462 = vmatprep.subr.mxu0 0.0
  %463 = vmatpush1.xpose.msra.mxu0 0.0
  %464 = vmatprep.subr.mxu0 0.0
  %465 = vmatpush1.xpose.msra.mxu0 0.0
  %466 = vmatprep.subr.mxu0 0.0
  %467 = vmatpush1.xpose.msra.mxu0 0.0
  %468 = vmatprep.subr.mxu0 0.0
  %469 = vmatpush1.xpose.msra.mxu0 0.0
  %470 = vmatprep.subr.mxu0 0.0
  %471 = vmatpush1.xpose.msra.mxu0 0.0
  %472 = vmatprep.subr.mxu0 0.0
  %473 = vmatpush1.xpose.msra.mxu0 0.0
  %474 = vmatprep.subr.mxu0 0.0
  %475 = vmatpush1.xpose.msra.mxu0 0.0
  %476 = vmatprep.subr.mxu0 0.0
  %477 = vmatpush1.xpose.msra.mxu0 0.0
  %478 = vmatprep.subr.mxu0 0.0
  %479 = vmatpush1.xpose.msra.mxu0 0.0
  %480 = vmatprep.subr.mxu0 0.0
  %481 = vmatpush1.xpose.msra.mxu0 0.0
  %482 = vmatprep.subr.mxu0 0.0
  %483 = vmatpush1.xpose.msra.mxu0 0.0
  %484 = vmatprep.subr.mxu0 0.0
  %485 = vmatpush1.xpose.msra.mxu0 0.0
  %486 = vmatprep.subr.mxu0 0.0
  %487 = vmatpush1.xpose.msra.mxu0 0.0
  %488 = vmatprep.subr.mxu0 0.0
  %489 = vmatpush1.xpose.msra.mxu0 0.0
  %490 = vmatprep.subr.mxu0 0.0
  %491 = vmatpush1.xpose.msra.mxu0 0.0
  %492 = vmatprep.subr.mxu0 0.0
  %493 = vmatpush1.xpose.msra.mxu0 0.0
  %494 = vmatprep.subr.mxu0 0.0
  %495 = vmatpush1.xpose.msra.mxu0 0.0
  %496 = vmatprep.subr.mxu0 0.0
  %497 = vmatpush1.xpose.msra.mxu0 0.0
  %498 = vmatprep.subr.mxu0 0.0
  %499 = vmatpush1.xpose.msra.mxu0 0.0
  %500 = vmatprep.subr.mxu0 0.0
  %501 = vmatpush1.xpose.msra.mxu0 0.0
  %502 = vmatprep.subr.mxu0 0.0
  %503 = vmatpush1.xpose.msra.mxu0 0.0
  %504 = vmatprep.subr.mxu0 0.0
  %505 = vmatpush1.xpose.msra.mxu0 0.0
  %506 = vmatprep.subr.mxu0 0.0
  %507 = vmatpush1.xpose.msra.mxu0 0.0
  %508 = vmatprep.subr.mxu0 0.0
  %509 = vmatpush1.xpose.msra.mxu0 0.0
  %510 = vmatprep.subr.mxu0 0.0
  %511 = vmatpush1.xpose.msra.mxu0 0.0
  %512 = vmatprep.subr.mxu0 0.0
  %513 = vmatpush1.xpose.msra.mxu0 0.0
  %514 = vmatprep.subr.mxu0 0.0
  %515 = vmatpush1.xpose.msra.mxu0 0.0
  %516 = vmatprep.subr.mxu0 0.0
  %517 = vmatpush1.xpose.msra.mxu0 0.0
  %518 = vmatprep.subr.mxu0 0.0
  %519 = vmatpush1.xpose.msra.mxu0 0.0
  %520 = vmatprep.subr.mxu0 0.0
  %521 = vmatpush1.xpose.msra.mxu0 0.0
  %522 = vmatprep.subr.mxu0 0.0
  %523 = vmatpush1.xpose.msra.mxu0 0.0
  %524 = vmatprep.mubr.f32.mxu0 0.0
  %525 = vmatmul.mubr.f32.gmra.mrb[0].mxu0 %v455
  %v526 = vpop.f32.mrb[0].mxu0
  %v527 = vadd.f32 %v451, %v526
  %v528 = vpop.f32.mrb[0].mxu0
  %529 = vdwg.mxu0
  %v530 = vsel %vm453, %v527, -inf
  %531 = vmax.xlane.f32.xlu0 %v530
  %v532 = vpop.xlane.xlu0 %531
  %v533 = vsub.f32 %v527, %v532
  %v534 = vmul.f32 %v533, 1.442695
  %v535 = vpow.pop %v534
  %v536 = vsel %vm453, %v535, 0.0
  %537 = vadd.xlane.f32.xlu0 %v536
  %v538 = vpop.xlane.xlu0 %537
  %v539 = vrcp.pop %v538
  %v540 = vmul.f32 %v535, %v539
  %v542 = vsel %vm453, %v540, 0
  %544 = vmatprep.subr.mxu0 0.0
  %545 = vmatpush1.msra.mxu0 %v444
  %546 = vmatprep.subr.mxu0 0.0
  %547 = vmatpush1.msra.mxu0 0.0
  %548 = vmatprep.subr.mxu0 0.0
  %549 = vmatpush1.msra.mxu0 0.0
  %550 = vmatprep.subr.mxu0 0.0
  %551 = vmatpush1.msra.mxu0 0.0
  %552 = vmatprep.subr.mxu0 0.0
  %553 = vmatpush1.msra.mxu0 0.0
  %554 = vmatprep.subr.mxu0 0.0
  %555 = vmatpush1.msra.mxu0 0.0
  %556 = vmatprep.subr.mxu0 0.0
  %557 = vmatpush1.msra.mxu0 0.0
  %558 = vmatprep.subr.mxu0 0.0
  %559 = vmatpush1.msra.mxu0 0.0
  %560 = vmatprep.subr.mxu0 0.0
  %561 = vmatpush1.msra.mxu0 0.0
  %562 = vmatprep.subr.mxu0 0.0
  %563 = vmatpush1.msra.mxu0 0.0
  %564 = vmatprep.subr.mxu0 0.0
  %565 = vmatpush1.msra.mxu0 0.0
  %566 = vmatprep.subr.mxu0 0.0
  %567 = vmatpush1.msra.mxu0 0.0
  %568 = vmatprep.subr.mxu0 0.0
  %569 = vmatpush1.msra.mxu0 0.0
  %570 = vmatprep.subr.mxu0 0.0
  %571 = vmatpush1.msra.mxu0 0.0
  %572 = vmatprep.subr.mxu0 0.0
  %573 = vmatpush1.msra.mxu0 0.0
  %574 = vmatprep.subr.mxu0 0.0
  %575 = vmatpush1.msra.mxu0 0.0
  %576 = vmatprep.subr.mxu0 0.0
  %577 = vmatpush1.msra.mxu0 0.0
  %578 = vmatprep.subr.mxu0 0.0
  %579 = vmatpush1.msra.mxu0 0.0
  %580 = vmatprep.subr.mxu0 0.0
  %581 = vmatpush1.msra.mxu0 0.0
  %582 = vmatprep.subr.mxu0 0.0
  %583 = vmatpush1.msra.mxu0 0.0
  %584 = vmatprep.subr.mxu0 0.0
  %585 = vmatpush1.msra.mxu0 0.0
  %586 = vmatprep.subr.mxu0 0.0
  %587 = vmatpush1.msra.mxu0 0.0
  %588 = vmatprep.subr.mxu0 0.0
  %589 = vmatpush1.msra.mxu0 0.0
  %590 = vmatprep.subr.mxu0 0.0
  %591 = vmatpush1.msra.mxu0 0.0
  %592 = vmatprep.subr.mxu0 0.0
  %593 = vmatpush1.msra.mxu0 0.0
  %594 = vmatprep.subr.mxu0 0.0
  %595 = vmatpush1.msra.mxu0 0.0
  %596 = vmatprep.subr.mxu0 0.0
  %597 = vmatpush1.msra.mxu0 0.0
  %598 = vmatprep.subr.mxu0 0.0
  %599 = vmatpush1.msra.mxu0 0.0
  %600 = vmatprep.subr.mxu0 0.0
  %601 = vmatpush1.msra.mxu0 0.0
  %602 = vmatprep.subr.mxu0 0.0
  %603 = vmatpush1.msra.mxu0 0.0
  %604 = vmatprep.subr.mxu0 0.0
  %605 = vmatpush1.msra.mxu0 0.0
  %606 = vmatprep.subr.mxu0 0.0
  %607 = vmatpush1.msra.mxu0 0.0
  %608 = vmatprep.mubr.f32.mxu0 0.0
  %609 = vmatmul.mubr.f32.gmra.mrb[0].mxu0 %v542
  %v610 = vpop.f32.mrb[0].mxu0
  %v611 = vadd.f32 0.0, %v610
  %v612 = vpop.f32.mrb[0].mxu0
  %613 = vdwg.mxu0
  %v614 = vld [vmem:[%s9] sm:$0xff]
  %s615 = scalar_lea.vmem %s7, 32
  %v616 = vld [vmem:[%s615] sm:$0xff]
  %v617 = vld [vmem:[%s615 + $0x8] sm:$0xff]
  %v618 = vld [vmem:[%s615 + $0x10] sm:$0xff]
  %v619 = vld [vmem:[%s615 + $0x18] sm:$0xff]
  %s620 = scalar_lea.vmem %s8, 1
  %v621 = vld [vmem:[%s620] sm:$0x1]
  %v623 = vlaneseq
  %v624 = vshrl.u32 %v623, 7
  %v625 = vsub.s32 0, %v624
  %v626 = vrot.slane %v621, %v625
  %628 = vmatprep.subr.mxu0 0.0
  %629 = vmatpush1.msra.mxu0 %v616
  %630 = vmatprep.subr.mxu0 0.0
  %631 = vmatpush1.msra.mxu0 %v617
  %632 = vmatprep.subr.mxu0 0.0
  %633 = vmatpush1.msra.mxu0 %v618
  %634 = vmatprep.subr.mxu0 0.0
  %635 = vmatpush1.msra.mxu0 %v619
  %636 = vmatprep.subr.mxu0 0.0
  %637 = vmatpush1.msra.mxu0 0.0
  %638 = vmatprep.subr.mxu0 0.0
  %639 = vmatpush1.msra.mxu0 0.0
  %640 = vmatprep.subr.mxu0 0.0
  %641 = vmatpush1.msra.mxu0 0.0
  %642 = vmatprep.subr.mxu0 0.0
  %643 = vmatpush1.msra.mxu0 0.0
  %644 = vmatprep.subr.mxu0 0.0
  %645 = vmatpush1.msra.mxu0 0.0
  %646 = vmatprep.subr.mxu0 0.0
  %647 = vmatpush1.msra.mxu0 0.0
  %648 = vmatprep.subr.mxu0 0.0
  %649 = vmatpush1.msra.mxu0 0.0
  %650 = vmatprep.subr.mxu0 0.0
  %651 = vmatpush1.msra.mxu0 0.0
  %652 = vmatprep.subr.mxu0 0.0
  %653 = vmatpush1.msra.mxu0 0.0
  %654 = vmatprep.subr.mxu0 0.0
  %655 = vmatpush1.msra.mxu0 0.0
  %656 = vmatprep.subr.mxu0 0.0
  %657 = vmatpush1.msra.mxu0 0.0
  %658 = vmatprep.subr.mxu0 0.0
  %659 = vmatpush1.msra.mxu0 0.0
  %660 = vmatprep.subr.mxu0 0.0
  %661 = vmatpush1.msra.mxu0 0.0
  %662 = vmatprep.subr.mxu0 0.0
  %663 = vmatpush1.msra.mxu0 0.0
  %664 = vmatprep.subr.mxu0 0.0
  %665 = vmatpush1.msra.mxu0 0.0
  %666 = vmatprep.subr.mxu0 0.0
  %667 = vmatpush1.msra.mxu0 0.0
  %668 = vmatprep.subr.mxu0 0.0
  %669 = vmatpush1.msra.mxu0 0.0
  %670 = vmatprep.subr.mxu0 0.0
  %671 = vmatpush1.msra.mxu0 0.0
  %672 = vmatprep.subr.mxu0 0.0
  %673 = vmatpush1.msra.mxu0 0.0
  %674 = vmatprep.subr.mxu0 0.0
  %675 = vmatpush1.msra.mxu0 0.0
  %676 = vmatprep.subr.mxu0 0.0
  %677 = vmatpush1.msra.mxu0 0.0
  %678 = vmatprep.subr.mxu0 0.0
  %679 = vmatpush1.msra.mxu0 0.0
  %680 = vmatprep.subr.mxu0 0.0
  %681 = vmatpush1.msra.mxu0 0.0
  %682 = vmatprep.subr.mxu0 0.0
  %683 = vmatpush1.msra.mxu0 0.0
  %684 = vmatprep.subr.mxu0 0.0
  %685 = vmatpush1.msra.mxu0 0.0
  %686 = vmatprep.subr.mxu0 0.0
  %687 = vmatpush1.msra.mxu0 0.0
  %688 = vmatprep.subr.mxu0 0.0
  %689 = vmatpush1.msra.mxu0 0.0
  %690 = vmatprep.subr.mxu0 0.0
  %691 = vmatpush1.msra.mxu0 0.0
  %692 = vmatprep.mubr.f32.mxu0 0.0
  %693 = vmatmul.mubr.f32.gmra.mrb[0].mxu0 %v209
  %v694 = vpop.f32.mrb[0].mxu0
  %v695 = vadd.f32 %v626, %v694
  %v696 = vpop.f32.mrb[0].mxu0
  %697 = vdwg.mxu0
  %s698 = scalar_lea.vmem %s7, 160
  %v699 = vld [vmem:[%s698] sm:$0xff]
  %v700 = vld [vmem:[%s698 + $0x8] sm:$0xff]
  %v701 = vld [vmem:[%s698 + $0x10] sm:$0xff]
  %v702 = vld [vmem:[%s698 + $0x18] sm:$0xff]
  %s703 = scalar_lea.vmem %s8, 5
  %v704 = vld [vmem:[%s703] sm:$0x1]
  %v706 = vlaneseq
  %v707 = vshrl.u32 %v706, 7
  %v708 = vsub.s32 0, %v707
  %v709 = vrot.slane %v704, %v708
  %711 = vmatprep.subr.mxu0 0.0
  %712 = vmatpush1.msra.mxu0 %v699
  %713 = vmatprep.subr.mxu0 0.0
  %714 = vmatpush1.msra.mxu0 %v700
  %715 = vmatprep.subr.mxu0 0.0
  %716 = vmatpush1.msra.mxu0 %v701
  %717 = vmatprep.subr.mxu0 0.0
  %718 = vmatpush1.msra.mxu0 %v702
  %719 = vmatprep.subr.mxu0 0.0
  %720 = vmatpush1.msra.mxu0 0.0
  %721 = vmatprep.subr.mxu0 0.0
  %722 = vmatpush1.msra.mxu0 0.0
  %723 = vmatprep.subr.mxu0 0.0
  %724 = vmatpush1.msra.mxu0 0.0
  %725 = vmatprep.subr.mxu0 0.0
  %726 = vmatpush1.msra.mxu0 0.0
  %727 = vmatprep.subr.mxu0 0.0
  %728 = vmatpush1.msra.mxu0 0.0
  %729 = vmatprep.subr.mxu0 0.0
  %730 = vmatpush1.msra.mxu0 0.0
  %731 = vmatprep.subr.mxu0 0.0
  %732 = vmatpush1.msra.mxu0 0.0
  %733 = vmatprep.subr.mxu0 0.0
  %734 = vmatpush1.msra.mxu0 0.0
  %735 = vmatprep.subr.mxu0 0.0
  %736 = vmatpush1.msra.mxu0 0.0
  %737 = vmatprep.subr.mxu0 0.0
  %738 = vmatpush1.msra.mxu0 0.0
  %739 = vmatprep.subr.mxu0 0.0
  %740 = vmatpush1.msra.mxu0 0.0
  %741 = vmatprep.subr.mxu0 0.0
  %742 = vmatpush1.msra.mxu0 0.0
  %743 = vmatprep.subr.mxu0 0.0
  %744 = vmatpush1.msra.mxu0 0.0
  %745 = vmatprep.subr.mxu0 0.0
  %746 = vmatpush1.msra.mxu0 0.0
  %747 = vmatprep.subr.mxu0 0.0
  %748 = vmatpush1.msra.mxu0 0.0
  %749 = vmatprep.subr.mxu0 0.0
  %750 = vmatpush1.msra.mxu0 0.0
  %751 = vmatprep.subr.mxu0 0.0
  %752 = vmatpush1.msra.mxu0 0.0
  %753 = vmatprep.subr.mxu0 0.0
  %754 = vmatpush1.msra.mxu0 0.0
  %755 = vmatprep.subr.mxu0 0.0
  %756 = vmatpush1.msra.mxu0 0.0
  %757 = vmatprep.subr.mxu0 0.0
  %758 = vmatpush1.msra.mxu0 0.0
  %759 = vmatprep.subr.mxu0 0.0
  %760 = vmatpush1.msra.mxu0 0.0
  %761 = vmatprep.subr.mxu0 0.0
  %762 = vmatpush1.msra.mxu0 0.0
  %763 = vmatprep.subr.mxu0 0.0
  %764 = vmatpush1.msra.mxu0 0.0
  %765 = vmatprep.subr.mxu0 0.0
  %766 = vmatpush1.msra.mxu0 0.0
  %767 = vmatprep.subr.mxu0 0.0
  %768 = vmatpush1.msra.mxu0 0.0
  %769 = vmatprep.subr.mxu0 0.0
  %770 = vmatpush1.msra.mxu0 0.0
  %771 = vmatprep.subr.mxu0 0.0
  %772 = vmatpush1.msra.mxu0 0.0
  %773 = vmatprep.subr.mxu0 0.0
  %774 = vmatpush1.msra.mxu0 0.0
  %775 = vmatprep.mubr.f32.mxu0 0.0
  %776 = vmatmul.mubr.f32.gmra.mrb[0].mxu0 %v209
  %v777 = vpop.f32.mrb[0].mxu0
  %v778 = vadd.f32 %v709, %v777
  %v779 = vpop.f32.mrb[0].mxu0
  %780 = vdwg.mxu0
  %s781 = scalar_lea.vmem %s7, 288
  %v782 = vld [vmem:[%s781] sm:$0xff]
  %v783 = vld [vmem:[%s781 + $0x8] sm:$0xff]
  %v784 = vld [vmem:[%s781 + $0x10] sm:$0xff]
  %v785 = vld [vmem:[%s781 + $0x18] sm:$0xff]
  %s786 = scalar_lea.vmem %s8, 9
  %v787 = vld [vmem:[%s786] sm:$0x1]
  %v789 = vlaneseq
  %v790 = vshrl.u32 %v789, 7
  %v791 = vsub.s32 0, %v790
  %v792 = vrot.slane %v787, %v791
  %794 = vmatprep.subr.mxu0 0.0
  %795 = vmatpush1.msra.mxu0 %v782
  %796 = vmatprep.subr.mxu0 0.0
  %797 = vmatpush1.msra.mxu0 %v783
  %798 = vmatprep.subr.mxu0 0.0
  %799 = vmatpush1.msra.mxu0 %v784
  %800 = vmatprep.subr.mxu0 0.0
  %801 = vmatpush1.msra.mxu0 %v785
  %802 = vmatprep.subr.mxu0 0.0
  %803 = vmatpush1.msra.mxu0 0.0
  %804 = vmatprep.subr.mxu0 0.0
  %805 = vmatpush1.msra.mxu0 0.0
  %806 = vmatprep.subr.mxu0 0.0
  %807 = vmatpush1.msra.mxu0 0.0
  %808 = vmatprep.subr.mxu0 0.0
  %809 = vmatpush1.msra.mxu0 0.0
  %810 = vmatprep.subr.mxu0 0.0
  %811 = vmatpush1.msra.mxu0 0.0
  %812 = vmatprep.subr.mxu0 0.0
  %813 = vmatpush1.msra.mxu0 0.0
  %814 = vmatprep.subr.mxu0 0.0
  %815 = vmatpush1.msra.mxu0 0.0
  %816 = vmatprep.subr.mxu0 0.0
  %817 = vmatpush1.msra.mxu0 0.0
  %818 = vmatprep.subr.mxu0 0.0
  %819 = vmatpush1.msra.mxu0 0.0
  %820 = vmatprep.subr.mxu0 0.0
  %821 = vmatpush1.msra.mxu0 0.0
  %822 = vmatprep.subr.mxu0 0.0
  %823 = vmatpush1.msra.mxu0 0.0
  %824 = vmatprep.subr.mxu0 0.0
  %825 = vmatpush1.msra.mxu0 0.0
  %826 = vmatprep.subr.mxu0 0.0
  %827 = vmatpush1.msra.mxu0 0.0
  %828 = vmatprep.subr.mxu0 0.0
  %829 = vmatpush1.msra.mxu0 0.0
  %830 = vmatprep.subr.mxu0 0.0
  %831 = vmatpush1.msra.mxu0 0.0
  %832 = vmatprep.subr.mxu0 0.0
  %833 = vmatpush1.msra.mxu0 0.0
  %834 = vmatprep.subr.mxu0 0.0
  %835 = vmatpush1.msra.mxu0 0.0
  %836 = vmatprep.subr.mxu0 0.0
  %837 = vmatpush1.msra.mxu0 0.0
  %838 = vmatprep.subr.mxu0 0.0
  %839 = vmatpush1.msra.mxu0 0.0
  %840 = vmatprep.subr.mxu0 0.0
  %841 = vmatpush1.msra.mxu0 0.0
  %842 = vmatprep.subr.mxu0 0.0
  %843 = vmatpush1.msra.mxu0 0.0
  %844 = vmatprep.subr.mxu0 0.0
  %845 = vmatpush1.msra.mxu0 0.0
  %846 = vmatprep.subr.mxu0 0.0
  %847 = vmatpush1.msra.mxu0 0.0
  %848 = vmatprep.subr.mxu0 0.0
  %849 = vmatpush1.msra.mxu0 0.0
  %850 = vmatprep.subr.mxu0 0.0
  %851 = vmatpush1.msra.mxu0 0.0
  %852 = vmatprep.subr.mxu0 0.0
  %853 = vmatpush1.msra.mxu0 0.0
  %854 = vmatprep.subr.mxu0 0.0
  %855 = vmatpush1.msra.mxu0 0.0
  %856 = vmatprep.subr.mxu0 0.0
  %857 = vmatpush1.msra.mxu0 0.0
  %858 = vmatprep.mubr.f32.mxu0 0.0
  %859 = vmatmul.mubr.f32.gmra.mrb[0].mxu0 %v209
  %v860 = vpop.f32.mrb[0].mxu0
  %v861 = vadd.f32 %v792, %v860
  %v862 = vpop.f32.mrb[0].mxu0
  %863 = vdwg.mxu0
  %v865 = vsel %vm453, %v695, 0
  %v868 = vsel %vm453, %v778, 0
  %870 = vmatprep.subr.mxu0 0.0
  %871 = vmatpush1.xpose.msra.mxu0 %v868
  %872 = vmatprep.subr.mxu0 0.0
  %873 = vmatpush1.xpose.msra.mxu0 0.0
  %874 = vmatprep.subr.mxu0 0.0
  %875 = vmatpush1.xpose.msra.mxu0 0.0
  %876 = vmatprep.subr.mxu0 0.0
  %877 = vmatpush1.xpose.msra.mxu0 0.0
  %878 = vmatprep.subr.mxu0 0.0
  %879 = vmatpush1.xpose.msra.mxu0 0.0
  %880 = vmatprep.subr.mxu0 0.0
  %881 = vmatpush1.xpose.msra.mxu0 0.0
  %882 = vmatprep.subr.mxu0 0.0
  %883 = vmatpush1.xpose.msra.mxu0 0.0
  %884 = vmatprep.subr.mxu0 0.0
  %885 = vmatpush1.xpose.msra.mxu0 0.0
  %886 = vmatprep.subr.mxu0 0.0
  %887 = vmatpush1.xpose.msra.mxu0 0.0
  %888 = vmatprep.subr.mxu0 0.0
  %889 = vmatpush1.xpose.msra.mxu0 0.0
  %890 = vmatprep.subr.mxu0 0.0
  %891 = vmatpush1.xpose.msra.mxu0 0.0
  %892 = vmatprep.subr.mxu0 0.0
  %893 = vmatpush1.xpose.msra.mxu0 0.0
  %894 = vmatprep.subr.mxu0 0.0
  %895 = vmatpush1.xpose.msra.mxu0 0.0
  %896 = vmatprep.subr.mxu0 0.0
  %897 = vmatpush1.xpose.msra.mxu0 0.0
  %898 = vmatprep.subr.mxu0 0.0
  %899 = vmatpush1.xpose.msra.mxu0 0.0
  %900 = vmatprep.subr.mxu0 0.0
  %901 = vmatpush1.xpose.msra.mxu0 0.0
  %902 = vmatprep.subr.mxu0 0.0
  %903 = vmatpush1.xpose.msra.mxu0 0.0
  %904 = vmatprep.subr.mxu0 0.0
  %905 = vmatpush1.xpose.msra.mxu0 0.0
  %906 = vmatprep.subr.mxu0 0.0
  %907 = vmatpush1.xpose.msra.mxu0 0.0
  %908 = vmatprep.subr.mxu0 0.0
  %909 = vmatpush1.xpose.msra.mxu0 0.0
  %910 = vmatprep.subr.mxu0 0.0
  %911 = vmatpush1.xpose.msra.mxu0 0.0
  %912 = vmatprep.subr.mxu0 0.0
  %913 = vmatpush1.xpose.msra.mxu0 0.0
  %914 = vmatprep.subr.mxu0 0.0
  %915 = vmatpush1.xpose.msra.mxu0 0.0
  %916 = vmatprep.subr.mxu0 0.0
  %917 = vmatpush1.xpose.msra.mxu0 0.0
  %918 = vmatprep.subr.mxu0 0.0
  %919 = vmatpush1.xpose.msra.mxu0 0.0
  %920 = vmatprep.subr.mxu0 0.0
  %921 = vmatpush1.xpose.msra.mxu0 0.0
  %922 = vmatprep.subr.mxu0 0.0
  %923 = vmatpush1.xpose.msra.mxu0 0.0
  %924 = vmatprep.subr.mxu0 0.0
  %925 = vmatpush1.xpose.msra.mxu0 0.0
  %926 = vmatprep.subr.mxu0 0.0
  %927 = vmatpush1.xpose.msra.mxu0 0.0
  %928 = vmatprep.subr.mxu0 0.0
  %929 = vmatpush1.xpose.msra.mxu0 0.0
  %930 = vmatprep.subr.mxu0 0.0
  %931 = vmatpush1.xpose.msra.mxu0 0.0
  %932 = vmatprep.subr.mxu0 0.0
  %933 = vmatpush1.xpose.msra.mxu0 0.0
  %934 = vmatprep.mubr.f32.mxu0 0.0
  %935 = vmatmul.mubr.f32.gmra.mrb[0].mxu0 %v865
  %v936 = vpop.f32.mrb[0].mxu0
  %v937 = vadd.f32 %v451, %v936
  %v938 = vpop.f32.mrb[0].mxu0
  %939 = vdwg.mxu0
  %v940 = vsel %vm453, %v937, -inf
  %941 = vmax.xlane.f32.xlu0 %v940
  %v942 = vpop.xlane.xlu0 %941
  %v943 = vsub.f32 %v937, %v942
  %v944 = vmul.f32 %v943, 1.442695
  %v945 = vpow.pop %v944
  %v946 = vsel %vm453, %v945, 0.0
  %947 = vadd.xlane.f32.xlu0 %v946
  %v948 = vpop.xlane.xlu0 %947
  %v949 = vrcp.pop %v948
  %v950 = vmul.f32 %v945, %v949
  %v952 = vsel %vm453, %v950, 0
  %954 = vmatprep.subr.mxu0 0.0
  %955 = vmatpush1.msra.mxu0 %v861
  %956 = vmatprep.subr.mxu0 0.0
  %957 = vmatpush1.msra.mxu0 0.0
  %958 = vmatprep.subr.mxu0 0.0
  %959 = vmatpush1.msra.mxu0 0.0
  %960 = vmatprep.subr.mxu0 0.0
  %961 = vmatpush1.msra.mxu0 0.0
  %962 = vmatprep.subr.mxu0 0.0
  %963 = vmatpush1.msra.mxu0 0.0
  %964 = vmatprep.subr.mxu0 0.0
  %965 = vmatpush1.msra.mxu0 0.0
  %966 = vmatprep.subr.mxu0 0.0
  %967 = vmatpush1.msra.mxu0 0.0
  %968 = vmatprep.subr.mxu0 0.0
  %969 = vmatpush1.msra.mxu0 0.0
  %970 = vmatprep.subr.mxu0 0.0
  %971 = vmatpush1.msra.mxu0 0.0
  %972 = vmatprep.subr.mxu0 0.0
  %973 = vmatpush1.msra.mxu0 0.0
  %974 = vmatprep.subr.mxu0 0.0
  %975 = vmatpush1.msra.mxu0 0.0
  %976 = vmatprep.subr.mxu0 0.0
  %977 = vmatpush1.msra.mxu0 0.0
  %978 = vmatprep.subr.mxu0 0.0
  %979 = vmatpush1.msra.mxu0 0.0
  %980 = vmatprep.subr.mxu0 0.0
  %981 = vmatpush1.msra.mxu0 0.0
  %982 = vmatprep.subr.mxu0 0.0
  %983 = vmatpush1.msra.mxu0 0.0
  %984 = vmatprep.subr.mxu0 0.0
  %985 = vmatpush1.msra.mxu0 0.0
  %986 = vmatprep.subr.mxu0 0.0
  %987 = vmatpush1.msra.mxu0 0.0
  %988 = vmatprep.subr.mxu0 0.0
  %989 = vmatpush1.msra.mxu0 0.0
  %990 = vmatprep.subr.mxu0 0.0
  %991 = vmatpush1.msra.mxu0 0.0
  %992 = vmatprep.subr.mxu0 0.0
  %993 = vmatpush1.msra.mxu0 0.0
  %994 = vmatprep.subr.mxu0 0.0
  %995 = vmatpush1.msra.mxu0 0.0
  %996 = vmatprep.subr.mxu0 0.0
  %997 = vmatpush1.msra.mxu0 0.0
  %998 = vmatprep.subr.mxu0 0.0
  %999 = vmatpush1.msra.mxu0 0.0
  %1000 = vmatprep.subr.mxu0 0.0
  %1001 = vmatpush1.msra.mxu0 0.0
  %1002 = vmatprep.subr.mxu0 0.0
  %1003 = vmatpush1.msra.mxu0 0.0
  %1004 = vmatprep.subr.mxu0 0.0
  %1005 = vmatpush1.msra.mxu0 0.0
  %1006 = vmatprep.subr.mxu0 0.0
  %1007 = vmatpush1.msra.mxu0 0.0
  %1008 = vmatprep.subr.mxu0 0.0
  %1009 = vmatpush1.msra.mxu0 0.0
  %1010 = vmatprep.subr.mxu0 0.0
  %1011 = vmatpush1.msra.mxu0 0.0
  %1012 = vmatprep.subr.mxu0 0.0
  %1013 = vmatpush1.msra.mxu0 0.0
  %1014 = vmatprep.subr.mxu0 0.0
  %1015 = vmatpush1.msra.mxu0 0.0
  %1016 = vmatprep.subr.mxu0 0.0
  %1017 = vmatpush1.msra.mxu0 0.0
  %1018 = vmatprep.mubr.f32.mxu0 0.0
  %1019 = vmatmul.mubr.f32.gmra.mrb[0].mxu0 %v952
  %v1020 = vpop.f32.mrb[0].mxu0
  %v1021 = vadd.f32 0.0, %v1020
  %v1022 = vpop.f32.mrb[0].mxu0
  %1023 = vdwg.mxu0
  %s1024 = scalar_lea.vmem %s9, 8
  %v1025 = vld [vmem:[%s1024] sm:$0xff]
  %v1027 = vsel %vm453, %v1021, 0
  %1029 = vmatprep.subr.mxu0 0.0
  %1030 = vmatpush1.msra.mxu0 %v1025
  %1031 = vmatprep.subr.mxu0 0.0
  %1032 = vmatpush1.msra.mxu0 0.0
  %1033 = vmatprep.subr.mxu0 0.0
  %1034 = vmatpush1.msra.mxu0 0.0
  %1035 = vmatprep.subr.mxu0 0.0
  %1036 = vmatpush1.msra.mxu0 0.0
  %1037 = vmatprep.subr.mxu0 0.0
  %1038 = vmatpush1.msra.mxu0 0.0
  %1039 = vmatprep.subr.mxu0 0.0
  %1040 = vmatpush1.msra.mxu0 0.0
  %1041 = vmatprep.subr.mxu0 0.0
  %1042 = vmatpush1.msra.mxu0 0.0
  %1043 = vmatprep.subr.mxu0 0.0
  %1044 = vmatpush1.msra.mxu0 0.0
  %1045 = vmatprep.subr.mxu0 0.0
  %1046 = vmatpush1.msra.mxu0 0.0
  %1047 = vmatprep.subr.mxu0 0.0
  %1048 = vmatpush1.msra.mxu0 0.0
  %1049 = vmatprep.subr.mxu0 0.0
  %1050 = vmatpush1.msra.mxu0 0.0
  %1051 = vmatprep.subr.mxu0 0.0
  %1052 = vmatpush1.msra.mxu0 0.0
  %1053 = vmatprep.subr.mxu0 0.0
  %1054 = vmatpush1.msra.mxu0 0.0
  %1055 = vmatprep.subr.mxu0 0.0
  %1056 = vmatpush1.msra.mxu0 0.0
  %1057 = vmatprep.subr.mxu0 0.0
  %1058 = vmatpush1.msra.mxu0 0.0
  %1059 = vmatprep.subr.mxu0 0.0
  %1060 = vmatpush1.msra.mxu0 0.0
  %1061 = vmatprep.subr.mxu0 0.0
  %1062 = vmatpush1.msra.mxu0 0.0
  %1063 = vmatprep.subr.mxu0 0.0
  %1064 = vmatpush1.msra.mxu0 0.0
  %1065 = vmatprep.subr.mxu0 0.0
  %1066 = vmatpush1.msra.mxu0 0.0
  %1067 = vmatprep.subr.mxu0 0.0
  %1068 = vmatpush1.msra.mxu0 0.0
  %1069 = vmatprep.subr.mxu0 0.0
  %1070 = vmatpush1.msra.mxu0 0.0
  %1071 = vmatprep.subr.mxu0 0.0
  %1072 = vmatpush1.msra.mxu0 0.0
  %1073 = vmatprep.subr.mxu0 0.0
  %1074 = vmatpush1.msra.mxu0 0.0
  %1075 = vmatprep.subr.mxu0 0.0
  %1076 = vmatpush1.msra.mxu0 0.0
  %1077 = vmatprep.subr.mxu0 0.0
  %1078 = vmatpush1.msra.mxu0 0.0
  %1079 = vmatprep.subr.mxu0 0.0
  %1080 = vmatpush1.msra.mxu0 0.0
  %1081 = vmatprep.subr.mxu0 0.0
  %1082 = vmatpush1.msra.mxu0 0.0
  %1083 = vmatprep.subr.mxu0 0.0
  %1084 = vmatpush1.msra.mxu0 0.0
  %1085 = vmatprep.subr.mxu0 0.0
  %1086 = vmatpush1.msra.mxu0 0.0
  %1087 = vmatprep.subr.mxu0 0.0
  %1088 = vmatpush1.msra.mxu0 0.0
  %1089 = vmatprep.subr.mxu0 0.0
  %1090 = vmatpush1.msra.mxu0 0.0
  %1091 = vmatprep.subr.mxu0 0.0
  %1092 = vmatpush1.msra.mxu0 0.0
  %1093 = vmatprep.mubr.f32.mxu0 0.0
  %1094 = vmatmul.mubr.f32.gmra.mrb[0].mxu0 %v1027
  %v1095 = vpop.f32.mrb[0].mxu0
  %v1096 = vadd.f32 0.0, %v1095
  %v1097 = vpop.f32.mrb[0].mxu0
  %1098 = vdwg.mxu0
  %v1100 = vsel %vm453, %v611, 0
  %1102 = vmatprep.subr.mxu0 0.0
  %1103 = vmatpush1.msra.mxu0 %v614
  %1104 = vmatprep.subr.mxu0 0.0
  %1105 = vmatpush1.msra.mxu0 0.0
  %1106 = vmatprep.subr.mxu0 0.0
  %1107 = vmatpush1.msra.mxu0 0.0
  %1108 = vmatprep.subr.mxu0 0.0
  %1109 = vmatpush1.msra.mxu0 0.0
  %1110 = vmatprep.subr.mxu0 0.0
  %1111 = vmatpush1.msra.mxu0 0.0
  %1112 = vmatprep.subr.mxu0 0.0
  %1113 = vmatpush1.msra.mxu0 0.0
  %1114 = vmatprep.subr.mxu0 0.0
  %1115 = vmatpush1.msra.mxu0 0.0
  %1116 = vmatprep.subr.mxu0 0.0
  %1117 = vmatpush1.msra.mxu0 0.0
  %1118 = vmatprep.subr.mxu0 0.0
  %1119 = vmatpush1.msra.mxu0 0.0
  %1120 = vmatprep.subr.mxu0 0.0
  %1121 = vmatpush1.msra.mxu0 0.0
  %1122 = vmatprep.subr.mxu0 0.0
  %1123 = vmatpush1.msra.mxu0 0.0
  %1124 = vmatprep.subr.mxu0 0.0
  %1125 = vmatpush1.msra.mxu0 0.0
  %1126 = vmatprep.subr.mxu0 0.0
  %1127 = vmatpush1.msra.mxu0 0.0
  %1128 = vmatprep.subr.mxu0 0.0
  %1129 = vmatpush1.msra.mxu0 0.0
  %1130 = vmatprep.subr.mxu0 0.0
  %1131 = vmatpush1.msra.mxu0 0.0
  %1132 = vmatprep.subr.mxu0 0.0
  %1133 = vmatpush1.msra.mxu0 0.0
  %1134 = vmatprep.subr.mxu0 0.0
  %1135 = vmatpush1.msra.mxu0 0.0
  %1136 = vmatprep.subr.mxu0 0.0
  %1137 = vmatpush1.msra.mxu0 0.0
  %1138 = vmatprep.subr.mxu0 0.0
  %1139 = vmatpush1.msra.mxu0 0.0
  %1140 = vmatprep.subr.mxu0 0.0
  %1141 = vmatpush1.msra.mxu0 0.0
  %1142 = vmatprep.subr.mxu0 0.0
  %1143 = vmatpush1.msra.mxu0 0.0
  %1144 = vmatprep.subr.mxu0 0.0
  %1145 = vmatpush1.msra.mxu0 0.0
  %1146 = vmatprep.subr.mxu0 0.0
  %1147 = vmatpush1.msra.mxu0 0.0
  %1148 = vmatprep.subr.mxu0 0.0
  %1149 = vmatpush1.msra.mxu0 0.0
  %1150 = vmatprep.subr.mxu0 0.0
  %1151 = vmatpush1.msra.mxu0 0.0
  %1152 = vmatprep.subr.mxu0 0.0
  %1153 = vmatpush1.msra.mxu0 0.0
  %1154 = vmatprep.subr.mxu0 0.0
  %1155 = vmatpush1.msra.mxu0 0.0
  %1156 = vmatprep.subr.mxu0 0.0
  %1157 = vmatpush1.msra.mxu0 0.0
  %1158 = vmatprep.subr.mxu0 0.0
  %1159 = vmatpush1.msra.mxu0 0.0
  %1160 = vmatprep.subr.mxu0 0.0
  %1161 = vmatpush1.msra.mxu0 0.0
  %1162 = vmatprep.subr.mxu0 0.0
  %1163 = vmatpush1.msra.mxu0 0.0
  %1164 = vmatprep.subr.mxu0 0.0
  %1165 = vmatpush1.msra.mxu0 0.0
  %1166 = vmatprep.mubr.f32.mxu0 0.0
  %1167 = vmatmul.mubr.f32.gmra.mrb[0].mxu0 %v1100
  %v1168 = vpop.f32.mrb[0].mxu0
  %v1169 = vadd.f32 %v1096, %v1168
  %v1170 = vpop.f32.mrb[0].mxu0
  %1171 = vdwg.mxu0
  %s1172 = scalar_lea.vmem %s7, 64
  %v1173 = vld [vmem:[%s1172] sm:$0xff]
  %v1174 = vld [vmem:[%s1172 + $0x8] sm:$0xff]
  %v1175 = vld [vmem:[%s1172 + $0x10] sm:$0xff]
  %v1176 = vld [vmem:[%s1172 + $0x18] sm:$0xff]
  %s1177 = scalar_lea.vmem %s8, 2
  %v1178 = vld [vmem:[%s1177] sm:$0x1]
  %v1180 = vlaneseq
  %v1181 = vshrl.u32 %v1180, 7
  %v1182 = vsub.s32 0, %v1181
  %v1183 = vrot.slane %v1178, %v1182
  %1185 = vmatprep.subr.mxu0 0.0
  %1186 = vmatpush1.msra.mxu0 %v1173
  %1187 = vmatprep.subr.mxu0 0.0
  %1188 = vmatpush1.msra.mxu0 %v1174
  %1189 = vmatprep.subr.mxu0 0.0
  %1190 = vmatpush1.msra.mxu0 %v1175
  %1191 = vmatprep.subr.mxu0 0.0
  %1192 = vmatpush1.msra.mxu0 %v1176
  %1193 = vmatprep.subr.mxu0 0.0
  %1194 = vmatpush1.msra.mxu0 0.0
  %1195 = vmatprep.subr.mxu0 0.0
  %1196 = vmatpush1.msra.mxu0 0.0
  %1197 = vmatprep.subr.mxu0 0.0
  %1198 = vmatpush1.msra.mxu0 0.0
  %1199 = vmatprep.subr.mxu0 0.0
  %1200 = vmatpush1.msra.mxu0 0.0
  %1201 = vmatprep.subr.mxu0 0.0
  %1202 = vmatpush1.msra.mxu0 0.0
  %1203 = vmatprep.subr.mxu0 0.0
  %1204 = vmatpush1.msra.mxu0 0.0
  %1205 = vmatprep.subr.mxu0 0.0
  %1206 = vmatpush1.msra.mxu0 0.0
  %1207 = vmatprep.subr.mxu0 0.0
  %1208 = vmatpush1.msra.mxu0 0.0
  %1209 = vmatprep.subr.mxu0 0.0
  %1210 = vmatpush1.msra.mxu0 0.0
  %1211 = vmatprep.subr.mxu0 0.0
  %1212 = vmatpush1.msra.mxu0 0.0
  %1213 = vmatprep.subr.mxu0 0.0
  %1214 = vmatpush1.msra.mxu0 0.0
  %1215 = vmatprep.subr.mxu0 0.0
  %1216 = vmatpush1.msra.mxu0 0.0
  %1217 = vmatprep.subr.mxu0 0.0
  %1218 = vmatpush1.msra.mxu0 0.0
  %1219 = vmatprep.subr.mxu0 0.0
  %1220 = vmatpush1.msra.mxu0 0.0
  %1221 = vmatprep.subr.mxu0 0.0
  %1222 = vmatpush1.msra.mxu0 0.0
  %1223 = vmatprep.subr.mxu0 0.0
  %1224 = vmatpush1.msra.mxu0 0.0
  %1225 = vmatprep.subr.mxu0 0.0
  %1226 = vmatpush1.msra.mxu0 0.0
  %1227 = vmatprep.subr.mxu0 0.0
  %1228 = vmatpush1.msra.mxu0 0.0
  %1229 = vmatprep.subr.mxu0 0.0
  %1230 = vmatpush1.msra.mxu0 0.0
  %1231 = vmatprep.subr.mxu0 0.0
  %1232 = vmatpush1.msra.mxu0 0.0
  %1233 = vmatprep.subr.mxu0 0.0
  %1234 = vmatpush1.msra.mxu0 0.0
  %1235 = vmatprep.subr.mxu0 0.0
  %1236 = vmatpush1.msra.mxu0 0.0
  %1237 = vmatprep.subr.mxu0 0.0
  %1238 = vmatpush1.msra.mxu0 0.0
  %1239 = vmatprep.subr.mxu0 0.0
  %1240 = vmatpush1.msra.mxu0 0.0
  %1241 = vmatprep.subr.mxu0 0.0
  %1242 = vmatpush1.msra.mxu0 0.0
  %1243 = vmatprep.subr.mxu0 0.0
  %1244 = vmatpush1.msra.mxu0 0.0
  %1245 = vmatprep.subr.mxu0 0.0
  %1246 = vmatpush1.msra.mxu0 0.0
  %1247 = vmatprep.subr.mxu0 0.0
  %1248 = vmatpush1.msra.mxu0 0.0
  %1249 = vmatprep.mubr.f32.mxu0 0.0
  %1250 = vmatmul.mubr.f32.gmra.mrb[0].mxu0 %v209
  %v1251 = vpop.f32.mrb[0].mxu0
  %v1252 = vadd.f32 %v1183, %v1251
  %v1253 = vpop.f32.mrb[0].mxu0
  %1254 = vdwg.mxu0
  %s1255 = scalar_lea.vmem %s7, 192
  %v1256 = vld [vmem:[%s1255] sm:$0xff]
  %v1257 = vld [vmem:[%s1255 + $0x8] sm:$0xff]
  %v1258 = vld [vmem:[%s1255 + $0x10] sm:$0xff]
  %v1259 = vld [vmem:[%s1255 + $0x18] sm:$0xff]
  %s1260 = scalar_lea.vmem %s8, 6
  %v1261 = vld [vmem:[%s1260] sm:$0x1]
  %v1263 = vlaneseq
  %v1264 = vshrl.u32 %v1263, 7
  %v1265 = vsub.s32 0, %v1264
  %v1266 = vrot.slane %v1261, %v1265
  %1268 = vmatprep.subr.mxu0 0.0
  %1269 = vmatpush1.msra.mxu0 %v1256
  %1270 = vmatprep.subr.mxu0 0.0
  %1271 = vmatpush1.msra.mxu0 %v1257
  %1272 = vmatprep.subr.mxu0 0.0
  %1273 = vmatpush1.msra.mxu0 %v1258
  %1274 = vmatprep.subr.mxu0 0.0
  %1275 = vmatpush1.msra.mxu0 %v1259
  %1276 = vmatprep.subr.mxu0 0.0
  %1277 = vmatpush1.msra.mxu0 0.0
  %1278 = vmatprep.subr.mxu0 0.0
  %1279 = vmatpush1.msra.mxu0 0.0
  %1280 = vmatprep.subr.mxu0 0.0
  %1281 = vmatpush1.msra.mxu0 0.0
  %1282 = vmatprep.subr.mxu0 0.0
  %1283 = vmatpush1.msra.mxu0 0.0
  %1284 = vmatprep.subr.mxu0 0.0
  %1285 = vmatpush1.msra.mxu0 0.0
  %1286 = vmatprep.subr.mxu0 0.0
  %1287 = vmatpush1.msra.mxu0 0.0
  %1288 = vmatprep.subr.mxu0 0.0
  %1289 = vmatpush1.msra.mxu0 0.0
  %1290 = vmatprep.subr.mxu0 0.0
  %1291 = vmatpush1.msra.mxu0 0.0
  %1292 = vmatprep.subr.mxu0 0.0
  %1293 = vmatpush1.msra.mxu0 0.0
  %1294 = vmatprep.subr.mxu0 0.0
  %1295 = vmatpush1.msra.mxu0 0.0
  %1296 = vmatprep.subr.mxu0 0.0
  %1297 = vmatpush1.msra.mxu0 0.0
  %1298 = vmatprep.subr.mxu0 0.0
  %1299 = vmatpush1.msra.mxu0 0.0
  %1300 = vmatprep.subr.mxu0 0.0
  %1301 = vmatpush1.msra.mxu0 0.0
  %1302 = vmatprep.subr.mxu0 0.0
  %1303 = vmatpush1.msra.mxu0 0.0
  %1304 = vmatprep.subr.mxu0 0.0
  %1305 = vmatpush1.msra.mxu0 0.0
  %1306 = vmatprep.subr.mxu0 0.0
  %1307 = vmatpush1.msra.mxu0 0.0
  %1308 = vmatprep.subr.mxu0 0.0
  %1309 = vmatpush1.msra.mxu0 0.0
  %1310 = vmatprep.subr.mxu0 0.0
  %1311 = vmatpush1.msra.mxu0 0.0
  %1312 = vmatprep.subr.mxu0 0.0
  %1313 = vmatpush1.msra.mxu0 0.0
  %1314 = vmatprep.subr.mxu0 0.0
  %1315 = vmatpush1.msra.mxu0 0.0
  %1316 = vmatprep.subr.mxu0 0.0
  %1317 = vmatpush1.msra.mxu0 0.0
  %1318 = vmatprep.subr.mxu0 0.0
  %1319 = vmatpush1.msra.mxu0 0.0
  %1320 = vmatprep.subr.mxu0 0.0
  %1321 = vmatpush1.msra.mxu0 0.0
  %1322 = vmatprep.subr.mxu0 0.0
  %1323 = vmatpush1.msra.mxu0 0.0
  %1324 = vmatprep.subr.mxu0 0.0
  %1325 = vmatpush1.msra.mxu0 0.0
  %1326 = vmatprep.subr.mxu0 0.0
  %1327 = vmatpush1.msra.mxu0 0.0
  %1328 = vmatprep.subr.mxu0 0.0
  %1329 = vmatpush1.msra.mxu0 0.0
  %1330 = vmatprep.subr.mxu0 0.0
  %1331 = vmatpush1.msra.mxu0 0.0
  %1332 = vmatprep.mubr.f32.mxu0 0.0
  %1333 = vmatmul.mubr.f32.gmra.mrb[0].mxu0 %v209
  %v1334 = vpop.f32.mrb[0].mxu0
  %v1335 = vadd.f32 %v1266, %v1334
  %v1336 = vpop.f32.mrb[0].mxu0
  %1337 = vdwg.mxu0
  %s1338 = scalar_lea.vmem %s7, 320
  %v1339 = vld [vmem:[%s1338] sm:$0xff]
  %v1340 = vld [vmem:[%s1338 + $0x8] sm:$0xff]
  %v1341 = vld [vmem:[%s1338 + $0x10] sm:$0xff]
  %v1342 = vld [vmem:[%s1338 + $0x18] sm:$0xff]
  %s1343 = scalar_lea.vmem %s8, 10
  %v1344 = vld [vmem:[%s1343] sm:$0x1]
  %v1346 = vlaneseq
  %v1347 = vshrl.u32 %v1346, 7
  %v1348 = vsub.s32 0, %v1347
  %v1349 = vrot.slane %v1344, %v1348
  %1351 = vmatprep.subr.mxu0 0.0
  %1352 = vmatpush1.msra.mxu0 %v1339
  %1353 = vmatprep.subr.mxu0 0.0
  %1354 = vmatpush1.msra.mxu0 %v1340
  %1355 = vmatprep.subr.mxu0 0.0
  %1356 = vmatpush1.msra.mxu0 %v1341
  %1357 = vmatprep.subr.mxu0 0.0
  %1358 = vmatpush1.msra.mxu0 %v1342
  %1359 = vmatprep.subr.mxu0 0.0
  %1360 = vmatpush1.msra.mxu0 0.0
  %1361 = vmatprep.subr.mxu0 0.0
  %1362 = vmatpush1.msra.mxu0 0.0
  %1363 = vmatprep.subr.mxu0 0.0
  %1364 = vmatpush1.msra.mxu0 0.0
  %1365 = vmatprep.subr.mxu0 0.0
  %1366 = vmatpush1.msra.mxu0 0.0
  %1367 = vmatprep.subr.mxu0 0.0
  %1368 = vmatpush1.msra.mxu0 0.0
  %1369 = vmatprep.subr.mxu0 0.0
  %1370 = vmatpush1.msra.mxu0 0.0
  %1371 = vmatprep.subr.mxu0 0.0
  %1372 = vmatpush1.msra.mxu0 0.0
  %1373 = vmatprep.subr.mxu0 0.0
  %1374 = vmatpush1.msra.mxu0 0.0
  %1375 = vmatprep.subr.mxu0 0.0
  %1376 = vmatpush1.msra.mxu0 0.0
  %1377 = vmatprep.subr.mxu0 0.0
  %1378 = vmatpush1.msra.mxu0 0.0
  %1379 = vmatprep.subr.mxu0 0.0
  %1380 = vmatpush1.msra.mxu0 0.0
  %1381 = vmatprep.subr.mxu0 0.0
  %1382 = vmatpush1.msra.mxu0 0.0
  %1383 = vmatprep.subr.mxu0 0.0
  %1384 = vmatpush1.msra.mxu0 0.0
  %1385 = vmatprep.subr.mxu0 0.0
  %1386 = vmatpush1.msra.mxu0 0.0
  %1387 = vmatprep.subr.mxu0 0.0
  %1388 = vmatpush1.msra.mxu0 0.0
  %1389 = vmatprep.subr.mxu0 0.0
  %1390 = vmatpush1.msra.mxu0 0.0
  %1391 = vmatprep.subr.mxu0 0.0
  %1392 = vmatpush1.msra.mxu0 0.0
  %1393 = vmatprep.subr.mxu0 0.0
  %1394 = vmatpush1.msra.mxu0 0.0
  %1395 = vmatprep.subr.mxu0 0.0
  %1396 = vmatpush1.msra.mxu0 0.0
  %1397 = vmatprep.subr.mxu0 0.0
  %1398 = vmatpush1.msra.mxu0 0.0
  %1399 = vmatprep.subr.mxu0 0.0
  %1400 = vmatpush1.msra.mxu0 0.0
  %1401 = vmatprep.subr.mxu0 0.0
  %1402 = vmatpush1.msra.mxu0 0.0
  %1403 = vmatprep.subr.mxu0 0.0
  %1404 = vmatpush1.msra.mxu0 0.0
  %1405 = vmatprep.subr.mxu0 0.0
  %1406 = vmatpush1.msra.mxu0 0.0
  %1407 = vmatprep.subr.mxu0 0.0
  %1408 = vmatpush1.msra.mxu0 0.0
  %1409 = vmatprep.subr.mxu0 0.0
  %1410 = vmatpush1.msra.mxu0 0.0
  %1411 = vmatprep.subr.mxu0 0.0
  %1412 = vmatpush1.msra.mxu0 0.0
  %1413 = vmatprep.subr.mxu0 0.0
  %1414 = vmatpush1.msra.mxu0 0.0
  %1415 = vmatprep.mubr.f32.mxu0 0.0
  %1416 = vmatmul.mubr.f32.gmra.mrb[0].mxu0 %v209
  %v1417 = vpop.f32.mrb[0].mxu0
  %v1418 = vadd.f32 %v1349, %v1417
  %v1419 = vpop.f32.mrb[0].mxu0
  %1420 = vdwg.mxu0
  %v1422 = vsel %vm453, %v1252, 0
  %v1425 = vsel %vm453, %v1335, 0
  %1427 = vmatprep.subr.mxu0 0.0
  %1428 = vmatpush1.xpose.msra.mxu0 %v1425
  %1429 = vmatprep.subr.mxu0 0.0
  %1430 = vmatpush1.xpose.msra.mxu0 0.0
  %1431 = vmatprep.subr.mxu0 0.0
  %1432 = vmatpush1.xpose.msra.mxu0 0.0
  %1433 = vmatprep.subr.mxu0 0.0
  %1434 = vmatpush1.xpose.msra.mxu0 0.0
  %1435 = vmatprep.subr.mxu0 0.0
  %1436 = vmatpush1.xpose.msra.mxu0 0.0
  %1437 = vmatprep.subr.mxu0 0.0
  %1438 = vmatpush1.xpose.msra.mxu0 0.0
  %1439 = vmatprep.subr.mxu0 0.0
  %1440 = vmatpush1.xpose.msra.mxu0 0.0
  %1441 = vmatprep.subr.mxu0 0.0
  %1442 = vmatpush1.xpose.msra.mxu0 0.0
  %1443 = vmatprep.subr.mxu0 0.0
  %1444 = vmatpush1.xpose.msra.mxu0 0.0
  %1445 = vmatprep.subr.mxu0 0.0
  %1446 = vmatpush1.xpose.msra.mxu0 0.0
  %1447 = vmatprep.subr.mxu0 0.0
  %1448 = vmatpush1.xpose.msra.mxu0 0.0
  %1449 = vmatprep.subr.mxu0 0.0
  %1450 = vmatpush1.xpose.msra.mxu0 0.0
  %1451 = vmatprep.subr.mxu0 0.0
  %1452 = vmatpush1.xpose.msra.mxu0 0.0
  %1453 = vmatprep.subr.mxu0 0.0
  %1454 = vmatpush1.xpose.msra.mxu0 0.0
  %1455 = vmatprep.subr.mxu0 0.0
  %1456 = vmatpush1.xpose.msra.mxu0 0.0
  %1457 = vmatprep.subr.mxu0 0.0
  %1458 = vmatpush1.xpose.msra.mxu0 0.0
  %1459 = vmatprep.subr.mxu0 0.0
  %1460 = vmatpush1.xpose.msra.mxu0 0.0
  %1461 = vmatprep.subr.mxu0 0.0
  %1462 = vmatpush1.xpose.msra.mxu0 0.0
  %1463 = vmatprep.subr.mxu0 0.0
  %1464 = vmatpush1.xpose.msra.mxu0 0.0
  %1465 = vmatprep.subr.mxu0 0.0
  %1466 = vmatpush1.xpose.msra.mxu0 0.0
  %1467 = vmatprep.subr.mxu0 0.0
  %1468 = vmatpush1.xpose.msra.mxu0 0.0
  %1469 = vmatprep.subr.mxu0 0.0
  %1470 = vmatpush1.xpose.msra.mxu0 0.0
  %1471 = vmatprep.subr.mxu0 0.0
  %1472 = vmatpush1.xpose.msra.mxu0 0.0
  %1473 = vmatprep.subr.mxu0 0.0
  %1474 = vmatpush1.xpose.msra.mxu0 0.0
  %1475 = vmatprep.subr.mxu0 0.0
  %1476 = vmatpush1.xpose.msra.mxu0 0.0
  %1477 = vmatprep.subr.mxu0 0.0
  %1478 = vmatpush1.xpose.msra.mxu0 0.0
  %1479 = vmatprep.subr.mxu0 0.0
  %1480 = vmatpush1.xpose.msra.mxu0 0.0
  %1481 = vmatprep.subr.mxu0 0.0
  %1482 = vmatpush1.xpose.msra.mxu0 0.0
  %1483 = vmatprep.subr.mxu0 0.0
  %1484 = vmatpush1.xpose.msra.mxu0 0.0
  %1485 = vmatprep.subr.mxu0 0.0
  %1486 = vmatpush1.xpose.msra.mxu0 0.0
  %1487 = vmatprep.subr.mxu0 0.0
  %1488 = vmatpush1.xpose.msra.mxu0 0.0
  %1489 = vmatprep.subr.mxu0 0.0
  %1490 = vmatpush1.xpose.msra.mxu0 0.0
  %1491 = vmatprep.mubr.f32.mxu0 0.0
  %1492 = vmatmul.mubr.f32.gmra.mrb[0].mxu0 %v1422
  %v1493 = vpop.f32.mrb[0].mxu0
  %v1494 = vadd.f32 %v451, %v1493
  %v1495 = vpop.f32.mrb[0].mxu0
  %1496 = vdwg.mxu0
  %v1497 = vsel %vm453, %v1494, -inf
  %1498 = vmax.xlane.f32.xlu0 %v1497
  %v1499 = vpop.xlane.xlu0 %1498
  %v1500 = vsub.f32 %v1494, %v1499
  %v1501 = vmul.f32 %v1500, 1.442695
  %v1502 = vpow.pop %v1501
  %v1503 = vsel %vm453, %v1502, 0.0
  %1504 = vadd.xlane.f32.xlu0 %v1503
  %v1505 = vpop.xlane.xlu0 %1504
  %v1506 = vrcp.pop %v1505
  %v1507 = vmul.f32 %v1502, %v1506
  %v1509 = vsel %vm453, %v1507, 0
  %1511 = vmatprep.subr.mxu0 0.0
  %1512 = vmatpush1.msra.mxu0 %v1418
  %1513 = vmatprep.subr.mxu0 0.0
  %1514 = vmatpush1.msra.mxu0 0.0
  %1515 = vmatprep.subr.mxu0 0.0
  %1516 = vmatpush1.msra.mxu0 0.0
  %1517 = vmatprep.subr.mxu0 0.0
  %1518 = vmatpush1.msra.mxu0 0.0
  %1519 = vmatprep.subr.mxu0 0.0
  %1520 = vmatpush1.msra.mxu0 0.0
  %1521 = vmatprep.subr.mxu0 0.0
  %1522 = vmatpush1.msra.mxu0 0.0
  %1523 = vmatprep.subr.mxu0 0.0
  %1524 = vmatpush1.msra.mxu0 0.0
  %1525 = vmatprep.subr.mxu0 0.0
  %1526 = vmatpush1.msra.mxu0 0.0
  %1527 = vmatprep.subr.mxu0 0.0
  %1528 = vmatpush1.msra.mxu0 0.0
  %1529 = vmatprep.subr.mxu0 0.0
  %1530 = vmatpush1.msra.mxu0 0.0
  %1531 = vmatprep.subr.mxu0 0.0
  %1532 = vmatpush1.msra.mxu0 0.0
  %1533 = vmatprep.subr.mxu0 0.0
  %1534 = vmatpush1.msra.mxu0 0.0
  %1535 = vmatprep.subr.mxu0 0.0
  %1536 = vmatpush1.msra.mxu0 0.0
  %1537 = vmatprep.subr.mxu0 0.0
  %1538 = vmatpush1.msra.mxu0 0.0
  %1539 = vmatprep.subr.mxu0 0.0
  %1540 = vmatpush1.msra.mxu0 0.0
  %1541 = vmatprep.subr.mxu0 0.0
  %1542 = vmatpush1.msra.mxu0 0.0
  %1543 = vmatprep.subr.mxu0 0.0
  %1544 = vmatpush1.msra.mxu0 0.0
  %1545 = vmatprep.subr.mxu0 0.0
  %1546 = vmatpush1.msra.mxu0 0.0
  %1547 = vmatprep.subr.mxu0 0.0
  %1548 = vmatpush1.msra.mxu0 0.0
  %1549 = vmatprep.subr.mxu0 0.0
  %1550 = vmatpush1.msra.mxu0 0.0
  %1551 = vmatprep.subr.mxu0 0.0
  %1552 = vmatpush1.msra.mxu0 0.0
  %1553 = vmatprep.subr.mxu0 0.0
  %1554 = vmatpush1.msra.mxu0 0.0
  %1555 = vmatprep.subr.mxu0 0.0
  %1556 = vmatpush1.msra.mxu0 0.0
  %1557 = vmatprep.subr.mxu0 0.0
  %1558 = vmatpush1.msra.mxu0 0.0
  %1559 = vmatprep.subr.mxu0 0.0
  %1560 = vmatpush1.msra.mxu0 0.0
  %1561 = vmatprep.subr.mxu0 0.0
  %1562 = vmatpush1.msra.mxu0 0.0
  %1563 = vmatprep.subr.mxu0 0.0
  %1564 = vmatpush1.msra.mxu0 0.0
  %1565 = vmatprep.subr.mxu0 0.0
  %1566 = vmatpush1.msra.mxu0 0.0
  %1567 = vmatprep.subr.mxu0 0.0
  %1568 = vmatpush1.msra.mxu0 0.0
  %1569 = vmatprep.subr.mxu0 0.0
  %1570 = vmatpush1.msra.mxu0 0.0
  %1571 = vmatprep.subr.mxu0 0.0
  %1572 = vmatpush1.msra.mxu0 0.0
  %1573 = vmatprep.subr.mxu0 0.0
  %1574 = vmatpush1.msra.mxu0 0.0
  %1575 = vmatprep.mubr.f32.mxu0 0.0
  %1576 = vmatmul.mubr.f32.gmra.mrb[0].mxu0 %v1509
  %v1577 = vpop.f32.mrb[0].mxu0
  %v1578 = vadd.f32 0.0, %v1577
  %v1579 = vpop.f32.mrb[0].mxu0
  %1580 = vdwg.mxu0
  %s1581 = scalar_lea.vmem %s9, 16
  %v1582 = vld [vmem:[%s1581] sm:$0xff]
  %v1584 = vsel %vm453, %v1578, 0
  %1586 = vmatprep.subr.mxu0 0.0
  %1587 = vmatpush1.msra.mxu0 %v1582
  %1588 = vmatprep.subr.mxu0 0.0
  %1589 = vmatpush1.msra.mxu0 0.0
  %1590 = vmatprep.subr.mxu0 0.0
  %1591 = vmatpush1.msra.mxu0 0.0
  %1592 = vmatprep.subr.mxu0 0.0
  %1593 = vmatpush1.msra.mxu0 0.0
  %1594 = vmatprep.subr.mxu0 0.0
  %1595 = vmatpush1.msra.mxu0 0.0
  %1596 = vmatprep.subr.mxu0 0.0
  %1597 = vmatpush1.msra.mxu0 0.0
  %1598 = vmatprep.subr.mxu0 0.0
  %1599 = vmatpush1.msra.mxu0 0.0
  %1600 = vmatprep.subr.mxu0 0.0
  %1601 = vmatpush1.msra.mxu0 0.0
  %1602 = vmatprep.subr.mxu0 0.0
  %1603 = vmatpush1.msra.mxu0 0.0
  %1604 = vmatprep.subr.mxu0 0.0
  %1605 = vmatpush1.msra.mxu0 0.0
  %1606 = vmatprep.subr.mxu0 0.0
  %1607 = vmatpush1.msra.mxu0 0.0
  %1608 = vmatprep.subr.mxu0 0.0
  %1609 = vmatpush1.msra.mxu0 0.0
  %1610 = vmatprep.subr.mxu0 0.0
  %1611 = vmatpush1.msra.mxu0 0.0
  %1612 = vmatprep.subr.mxu0 0.0
  %1613 = vmatpush1.msra.mxu0 0.0
  %1614 = vmatprep.subr.mxu0 0.0
  %1615 = vmatpush1.msra.mxu0 0.0
  %1616 = vmatprep.subr.mxu0 0.0
  %1617 = vmatpush1.msra.mxu0 0.0
  %1618 = vmatprep.subr.mxu0 0.0
  %1619 = vmatpush1.msra.mxu0 0.0
  %1620 = vmatprep.subr.mxu0 0.0
  %1621 = vmatpush1.msra.mxu0 0.0
  %1622 = vmatprep.subr.mxu0 0.0
  %1623 = vmatpush1.msra.mxu0 0.0
  %1624 = vmatprep.subr.mxu0 0.0
  %1625 = vmatpush1.msra.mxu0 0.0
  %1626 = vmatprep.subr.mxu0 0.0
  %1627 = vmatpush1.msra.mxu0 0.0
  %1628 = vmatprep.subr.mxu0 0.0
  %1629 = vmatpush1.msra.mxu0 0.0
  %1630 = vmatprep.subr.mxu0 0.0
  %1631 = vmatpush1.msra.mxu0 0.0
  %1632 = vmatprep.subr.mxu0 0.0
  %1633 = vmatpush1.msra.mxu0 0.0
  %1634 = vmatprep.subr.mxu0 0.0
  %1635 = vmatpush1.msra.mxu0 0.0
  %1636 = vmatprep.subr.mxu0 0.0
  %1637 = vmatpush1.msra.mxu0 0.0
  %1638 = vmatprep.subr.mxu0 0.0
  %1639 = vmatpush1.msra.mxu0 0.0
  %1640 = vmatprep.subr.mxu0 0.0
  %1641 = vmatpush1.msra.mxu0 0.0
  %1642 = vmatprep.subr.mxu0 0.0
  %1643 = vmatpush1.msra.mxu0 0.0
  %1644 = vmatprep.subr.mxu0 0.0
  %1645 = vmatpush1.msra.mxu0 0.0
  %1646 = vmatprep.subr.mxu0 0.0
  %1647 = vmatpush1.msra.mxu0 0.0
  %1648 = vmatprep.subr.mxu0 0.0
  %1649 = vmatpush1.msra.mxu0 0.0
  %1650 = vmatprep.mubr.f32.mxu0 0.0
  %1651 = vmatmul.mubr.f32.gmra.mrb[0].mxu0 %v1584
  %v1652 = vpop.f32.mrb[0].mxu0
  %v1653 = vadd.f32 0.0, %v1652
  %v1654 = vpop.f32.mrb[0].mxu0
  %1655 = vdwg.mxu0
  %v1656 = vadd.f32 %v1169, %v1653
  %s1657 = scalar_lea.vmem %s7, 96
  %v1658 = vld [vmem:[%s1657] sm:$0xff]
  %v1659 = vld [vmem:[%s1657 + $0x8] sm:$0xff]
  %v1660 = vld [vmem:[%s1657 + $0x10] sm:$0xff]
  %v1661 = vld [vmem:[%s1657 + $0x18] sm:$0xff]
  %s1662 = scalar_lea.vmem %s8, 3
  %v1663 = vld [vmem:[%s1662] sm:$0x1]
  %v1665 = vlaneseq
  %v1666 = vshrl.u32 %v1665, 7
  %v1667 = vsub.s32 0, %v1666
  %v1668 = vrot.slane %v1663, %v1667
  %1670 = vmatprep.subr.mxu0 0.0
  %1671 = vmatpush1.msra.mxu0 %v1658
  %1672 = vmatprep.subr.mxu0 0.0
  %1673 = vmatpush1.msra.mxu0 %v1659
  %1674 = vmatprep.subr.mxu0 0.0
  %1675 = vmatpush1.msra.mxu0 %v1660
  %1676 = vmatprep.subr.mxu0 0.0
  %1677 = vmatpush1.msra.mxu0 %v1661
  %1678 = vmatprep.subr.mxu0 0.0
  %1679 = vmatpush1.msra.mxu0 0.0
  %1680 = vmatprep.subr.mxu0 0.0
  %1681 = vmatpush1.msra.mxu0 0.0
  %1682 = vmatprep.subr.mxu0 0.0
  %1683 = vmatpush1.msra.mxu0 0.0
  %1684 = vmatprep.subr.mxu0 0.0
  %1685 = vmatpush1.msra.mxu0 0.0
  %1686 = vmatprep.subr.mxu0 0.0
  %1687 = vmatpush1.msra.mxu0 0.0
  %1688 = vmatprep.subr.mxu0 0.0
  %1689 = vmatpush1.msra.mxu0 0.0
  %1690 = vmatprep.subr.mxu0 0.0
  %1691 = vmatpush1.msra.mxu0 0.0
  %1692 = vmatprep.subr.mxu0 0.0
  %1693 = vmatpush1.msra.mxu0 0.0
  %1694 = vmatprep.subr.mxu0 0.0
  %1695 = vmatpush1.msra.mxu0 0.0
  %1696 = vmatprep.subr.mxu0 0.0
  %1697 = vmatpush1.msra.mxu0 0.0
  %1698 = vmatprep.subr.mxu0 0.0
  %1699 = vmatpush1.msra.mxu0 0.0
  %1700 = vmatprep.subr.mxu0 0.0
  %1701 = vmatpush1.msra.mxu0 0.0
  %1702 = vmatprep.subr.mxu0 0.0
  %1703 = vmatpush1.msra.mxu0 0.0
  %1704 = vmatprep.subr.mxu0 0.0
  %1705 = vmatpush1.msra.mxu0 0.0
  %1706 = vmatprep.subr.mxu0 0.0
  %1707 = vmatpush1.msra.mxu0 0.0
  %1708 = vmatprep.subr.mxu0 0.0
  %1709 = vmatpush1.msra.mxu0 0.0
  %1710 = vmatprep.subr.mxu0 0.0
  %1711 = vmatpush1.msra.mxu0 0.0
  %1712 = vmatprep.subr.mxu0 0.0
  %1713 = vmatpush1.msra.mxu0 0.0
  %1714 = vmatprep.subr.mxu0 0.0
  %1715 = vmatpush1.msra.mxu0 0.0
  %1716 = vmatprep.subr.mxu0 0.0
  %1717 = vmatpush1.msra.mxu0 0.0
  %1718 = vmatprep.subr.mxu0 0.0
  %1719 = vmatpush1.msra.mxu0 0.0
  %1720 = vmatprep.subr.mxu0 0.0
  %1721 = vmatpush1.msra.mxu0 0.0
  %1722 = vmatprep.subr.mxu0 0.0
  %1723 = vmatpush1.msra.mxu0 0.0
  %1724 = vmatprep.subr.mxu0 0.0
  %1725 = vmatpush1.msra.mxu0 0.0
  %1726 = vmatprep.subr.mxu0 0.0
  %1727 = vmatpush1.msra.mxu0 0.0
  %1728 = vmatprep.subr.mxu0 0.0
  %1729 = vmatpush1.msra.mxu0 0.0
  %1730 = vmatprep.subr.mxu0 0.0
  %1731 = vmatpush1.msra.mxu0 0.0
  %1732 = vmatprep.subr.mxu0 0.0
  %1733 = vmatpush1.msra.mxu0 0.0
  %1734 = vmatprep.mubr.f32.mxu0 0.0
  %1735 = vmatmul.mubr.f32.gmra.mrb[0].mxu0 %v209
  %v1736 = vpop.f32.mrb[0].mxu0
  %v1737 = vadd.f32 %v1668, %v1736
  %v1738 = vpop.f32.mrb[0].mxu0
  %1739 = vdwg.mxu0
  %s1740 = scalar_lea.vmem %s7, 224
  %v1741 = vld [vmem:[%s1740] sm:$0xff]
  %v1742 = vld [vmem:[%s1740 + $0x8] sm:$0xff]
  %v1743 = vld [vmem:[%s1740 + $0x10] sm:$0xff]
  %v1744 = vld [vmem:[%s1740 + $0x18] sm:$0xff]
  %s1745 = scalar_lea.vmem %s8, 7
  %v1746 = vld [vmem:[%s1745] sm:$0x1]
  %v1748 = vlaneseq
  %v1749 = vshrl.u32 %v1748, 7
  %v1750 = vsub.s32 0, %v1749
  %v1751 = vrot.slane %v1746, %v1750
  %1753 = vmatprep.subr.mxu0 0.0
  %1754 = vmatpush1.msra.mxu0 %v1741
  %1755 = vmatprep.subr.mxu0 0.0
  %1756 = vmatpush1.msra.mxu0 %v1742
  %1757 = vmatprep.subr.mxu0 0.0
  %1758 = vmatpush1.msra.mxu0 %v1743
  %1759 = vmatprep.subr.mxu0 0.0
  %1760 = vmatpush1.msra.mxu0 %v1744
  %1761 = vmatprep.subr.mxu0 0.0
  %1762 = vmatpush1.msra.mxu0 0.0
  %1763 = vmatprep.subr.mxu0 0.0
  %1764 = vmatpush1.msra.mxu0 0.0
  %1765 = vmatprep.subr.mxu0 0.0
  %1766 = vmatpush1.msra.mxu0 0.0
  %1767 = vmatprep.subr.mxu0 0.0
  %1768 = vmatpush1.msra.mxu0 0.0
  %1769 = vmatprep.subr.mxu0 0.0
  %1770 = vmatpush1.msra.mxu0 0.0
  %1771 = vmatprep.subr.mxu0 0.0
  %1772 = vmatpush1.msra.mxu0 0.0
  %1773 = vmatprep.subr.mxu0 0.0
  %1774 = vmatpush1.msra.mxu0 0.0
  %1775 = vmatprep.subr.mxu0 0.0
  %1776 = vmatpush1.msra.mxu0 0.0
  %1777 = vmatprep.subr.mxu0 0.0
  %1778 = vmatpush1.msra.mxu0 0.0
  %1779 = vmatprep.subr.mxu0 0.0
  %1780 = vmatpush1.msra.mxu0 0.0
  %1781 = vmatprep.subr.mxu0 0.0
  %1782 = vmatpush1.msra.mxu0 0.0
  %1783 = vmatprep.subr.mxu0 0.0
  %1784 = vmatpush1.msra.mxu0 0.0
  %1785 = vmatprep.subr.mxu0 0.0
  %1786 = vmatpush1.msra.mxu0 0.0
  %1787 = vmatprep.subr.mxu0 0.0
  %1788 = vmatpush1.msra.mxu0 0.0
  %1789 = vmatprep.subr.mxu0 0.0
  %1790 = vmatpush1.msra.mxu0 0.0
  %1791 = vmatprep.subr.mxu0 0.0
  %1792 = vmatpush1.msra.mxu0 0.0
  %1793 = vmatprep.subr.mxu0 0.0
  %1794 = vmatpush1.msra.mxu0 0.0
  %1795 = vmatprep.subr.mxu0 0.0
  %1796 = vmatpush1.msra.mxu0 0.0
  %1797 = vmatprep.subr.mxu0 0.0
  %1798 = vmatpush1.msra.mxu0 0.0
  %1799 = vmatprep.subr.mxu0 0.0
  %1800 = vmatpush1.msra.mxu0 0.0
  %1801 = vmatprep.subr.mxu0 0.0
  %1802 = vmatpush1.msra.mxu0 0.0
  %1803 = vmatprep.subr.mxu0 0.0
  %1804 = vmatpush1.msra.mxu0 0.0
  %1805 = vmatprep.subr.mxu0 0.0
  %1806 = vmatpush1.msra.mxu0 0.0
  %1807 = vmatprep.subr.mxu0 0.0
  %1808 = vmatpush1.msra.mxu0 0.0
  %1809 = vmatprep.subr.mxu0 0.0
  %1810 = vmatpush1.msra.mxu0 0.0
  %1811 = vmatprep.subr.mxu0 0.0
  %1812 = vmatpush1.msra.mxu0 0.0
  %1813 = vmatprep.subr.mxu0 0.0
  %1814 = vmatpush1.msra.mxu0 0.0
  %1815 = vmatprep.subr.mxu0 0.0
  %1816 = vmatpush1.msra.mxu0 0.0
  %1817 = vmatprep.mubr.f32.mxu0 0.0
  %1818 = vmatmul.mubr.f32.gmra.mrb[0].mxu0 %v209
  %v1819 = vpop.f32.mrb[0].mxu0
  %v1820 = vadd.f32 %v1751, %v1819
  %v1821 = vpop.f32.mrb[0].mxu0
  %1822 = vdwg.mxu0
  %s1823 = scalar_lea.vmem %s7, 352
  %v1824 = vld [vmem:[%s1823] sm:$0xff]
  %v1825 = vld [vmem:[%s1823 + $0x8] sm:$0xff]
  %v1826 = vld [vmem:[%s1823 + $0x10] sm:$0xff]
  %v1827 = vld [vmem:[%s1823 + $0x18] sm:$0xff]
  %s1828 = scalar_lea.vmem %s8, 11
  %v1829 = vld [vmem:[%s1828] sm:$0x1]
  %v1831 = vlaneseq
  %v1832 = vshrl.u32 %v1831, 7
  %v1833 = vsub.s32 0, %v1832
  %v1834 = vrot.slane %v1829, %v1833
  %1836 = vmatprep.subr.mxu0 0.0
  %1837 = vmatpush1.msra.mxu0 %v1824
  %1838 = vmatprep.subr.mxu0 0.0
  %1839 = vmatpush1.msra.mxu0 %v1825
  %1840 = vmatprep.subr.mxu0 0.0
  %1841 = vmatpush1.msra.mxu0 %v1826
  %1842 = vmatprep.subr.mxu0 0.0
  %1843 = vmatpush1.msra.mxu0 %v1827
  %1844 = vmatprep.subr.mxu0 0.0
  %1845 = vmatpush1.msra.mxu0 0.0
  %1846 = vmatprep.subr.mxu0 0.0
  %1847 = vmatpush1.msra.mxu0 0.0
  %1848 = vmatprep.subr.mxu0 0.0
  %1849 = vmatpush1.msra.mxu0 0.0
  %1850 = vmatprep.subr.mxu0 0.0
  %1851 = vmatpush1.msra.mxu0 0.0
  %1852 = vmatprep.subr.mxu0 0.0
  %1853 = vmatpush1.msra.mxu0 0.0
  %1854 = vmatprep.subr.mxu0 0.0
  %1855 = vmatpush1.msra.mxu0 0.0
  %1856 = vmatprep.subr.mxu0 0.0
  %1857 = vmatpush1.msra.mxu0 0.0
  %1858 = vmatprep.subr.mxu0 0.0
  %1859 = vmatpush1.msra.mxu0 0.0
  %1860 = vmatprep.subr.mxu0 0.0
  %1861 = vmatpush1.msra.mxu0 0.0
  %1862 = vmatprep.subr.mxu0 0.0
  %1863 = vmatpush1.msra.mxu0 0.0
  %1864 = vmatprep.subr.mxu0 0.0
  %1865 = vmatpush1.msra.mxu0 0.0
  %1866 = vmatprep.subr.mxu0 0.0
  %1867 = vmatpush1.msra.mxu0 0.0
  %1868 = vmatprep.subr.mxu0 0.0
  %1869 = vmatpush1.msra.mxu0 0.0
  %1870 = vmatprep.subr.mxu0 0.0
  %1871 = vmatpush1.msra.mxu0 0.0
  %1872 = vmatprep.subr.mxu0 0.0
  %1873 = vmatpush1.msra.mxu0 0.0
  %1874 = vmatprep.subr.mxu0 0.0
  %1875 = vmatpush1.msra.mxu0 0.0
  %1876 = vmatprep.subr.mxu0 0.0
  %1877 = vmatpush1.msra.mxu0 0.0
  %1878 = vmatprep.subr.mxu0 0.0
  %1879 = vmatpush1.msra.mxu0 0.0
  %1880 = vmatprep.subr.mxu0 0.0
  %1881 = vmatpush1.msra.mxu0 0.0
  %1882 = vmatprep.subr.mxu0 0.0
  %1883 = vmatpush1.msra.mxu0 0.0
  %1884 = vmatprep.subr.mxu0 0.0
  %1885 = vmatpush1.msra.mxu0 0.0
  %1886 = vmatprep.subr.mxu0 0.0
  %1887 = vmatpush1.msra.mxu0 0.0
  %1888 = vmatprep.subr.mxu0 0.0
  %1889 = vmatpush1.msra.mxu0 0.0
  %1890 = vmatprep.subr.mxu0 0.0
  %1891 = vmatpush1.msra.mxu0 0.0
  %1892 = vmatprep.subr.mxu0 0.0
  %1893 = vmatpush1.msra.mxu0 0.0
  %1894 = vmatprep.subr.mxu0 0.0
  %1895 = vmatpush1.msra.mxu0 0.0
  %1896 = vmatprep.subr.mxu0 0.0
  %1897 = vmatpush1.msra.mxu0 0.0
  %1898 = vmatprep.subr.mxu0 0.0
  %1899 = vmatpush1.msra.mxu0 0.0
  %1900 = vmatprep.mubr.f32.mxu0 0.0
  %1901 = vmatmul.mubr.f32.gmra.mrb[0].mxu0 %v209
  %v1902 = vpop.f32.mrb[0].mxu0
  %v1903 = vadd.f32 %v1834, %v1902
  %v1904 = vpop.f32.mrb[0].mxu0
  %1905 = vdwg.mxu0
  %v1907 = vsel %vm453, %v1737, 0
  %v1910 = vsel %vm453, %v1820, 0
  %1912 = vmatprep.subr.mxu0 0.0
  %1913 = vmatpush1.xpose.msra.mxu0 %v1910
  %1914 = vmatprep.subr.mxu0 0.0
  %1915 = vmatpush1.xpose.msra.mxu0 0.0
  %1916 = vmatprep.subr.mxu0 0.0
  %1917 = vmatpush1.xpose.msra.mxu0 0.0
  %1918 = vmatprep.subr.mxu0 0.0
  %1919 = vmatpush1.xpose.msra.mxu0 0.0
  %1920 = vmatprep.subr.mxu0 0.0
  %1921 = vmatpush1.xpose.msra.mxu0 0.0
  %1922 = vmatprep.subr.mxu0 0.0
  %1923 = vmatpush1.xpose.msra.mxu0 0.0
  %1924 = vmatprep.subr.mxu0 0.0
  %1925 = vmatpush1.xpose.msra.mxu0 0.0
  %1926 = vmatprep.subr.mxu0 0.0
  %1927 = vmatpush1.xpose.msra.mxu0 0.0
  %1928 = vmatprep.subr.mxu0 0.0
  %1929 = vmatpush1.xpose.msra.mxu0 0.0
  %1930 = vmatprep.subr.mxu0 0.0
  %1931 = vmatpush1.xpose.msra.mxu0 0.0
  %1932 = vmatprep.subr.mxu0 0.0
  %1933 = vmatpush1.xpose.msra.mxu0 0.0
  %1934 = vmatprep.subr.mxu0 0.0
  %1935 = vmatpush1.xpose.msra.mxu0 0.0
  %1936 = vmatprep.subr.mxu0 0.0
  %1937 = vmatpush1.xpose.msra.mxu0 0.0
  %1938 = vmatprep.subr.mxu0 0.0
  %1939 = vmatpush1.xpose.msra.mxu0 0.0
  %1940 = vmatprep.subr.mxu0 0.0
  %1941 = vmatpush1.xpose.msra.mxu0 0.0
  %1942 = vmatprep.subr.mxu0 0.0
  %1943 = vmatpush1.xpose.msra.mxu0 0.0
  %1944 = vmatprep.subr.mxu0 0.0
  %1945 = vmatpush1.xpose.msra.mxu0 0.0
  %1946 = vmatprep.subr.mxu0 0.0
  %1947 = vmatpush1.xpose.msra.mxu0 0.0
  %1948 = vmatprep.subr.mxu0 0.0
  %1949 = vmatpush1.xpose.msra.mxu0 0.0
  %1950 = vmatprep.subr.mxu0 0.0
  %1951 = vmatpush1.xpose.msra.mxu0 0.0
  %1952 = vmatprep.subr.mxu0 0.0
  %1953 = vmatpush1.xpose.msra.mxu0 0.0
  %1954 = vmatprep.subr.mxu0 0.0
  %1955 = vmatpush1.xpose.msra.mxu0 0.0
  %1956 = vmatprep.subr.mxu0 0.0
  %1957 = vmatpush1.xpose.msra.mxu0 0.0
  %1958 = vmatprep.subr.mxu0 0.0
  %1959 = vmatpush1.xpose.msra.mxu0 0.0
  %1960 = vmatprep.subr.mxu0 0.0
  %1961 = vmatpush1.xpose.msra.mxu0 0.0
  %1962 = vmatprep.subr.mxu0 0.0
  %1963 = vmatpush1.xpose.msra.mxu0 0.0
  %1964 = vmatprep.subr.mxu0 0.0
  %1965 = vmatpush1.xpose.msra.mxu0 0.0
  %1966 = vmatprep.subr.mxu0 0.0
  %1967 = vmatpush1.xpose.msra.mxu0 0.0
  %1968 = vmatprep.subr.mxu0 0.0
  %1969 = vmatpush1.xpose.msra.mxu0 0.0
  %1970 = vmatprep.subr.mxu0 0.0
  %1971 = vmatpush1.xpose.msra.mxu0 0.0
  %1972 = vmatprep.subr.mxu0 0.0
  %1973 = vmatpush1.xpose.msra.mxu0 0.0
  %1974 = vmatprep.subr.mxu0 0.0
  %1975 = vmatpush1.xpose.msra.mxu0 0.0
  %1976 = vmatprep.mubr.f32.mxu0 0.0
  %1977 = vmatmul.mubr.f32.gmra.mrb[0].mxu0 %v1907
  %v1978 = vpop.f32.mrb[0].mxu0
  %v1979 = vadd.f32 %v451, %v1978
  %v1980 = vpop.f32.mrb[0].mxu0
  %1981 = vdwg.mxu0
  %v1982 = vsel %vm453, %v1979, -inf
  %1983 = vmax.xlane.f32.xlu0 %v1982
  %v1984 = vpop.xlane.xlu0 %1983
  %v1985 = vsub.f32 %v1979, %v1984
  %v1986 = vmul.f32 %v1985, 1.442695
  %v1987 = vpow.pop %v1986
  %v1988 = vsel %vm453, %v1987, 0.0
  %1989 = vadd.xlane.f32.xlu0 %v1988
  %v1990 = vpop.xlane.xlu0 %1989
  %v1991 = vrcp.pop %v1990
  %v1992 = vmul.f32 %v1987, %v1991
  %v1994 = vsel %vm453, %v1992, 0
  %1996 = vmatprep.subr.mxu0 0.0
  %1997 = vmatpush1.msra.mxu0 %v1903
  %1998 = vmatprep.subr.mxu0 0.0
  %1999 = vmatpush1.msra.mxu0 0.0
  %2000 = vmatprep.subr.mxu0 0.0
  %2001 = vmatpush1.msra.mxu0 0.0
  %2002 = vmatprep.subr.mxu0 0.0
  %2003 = vmatpush1.msra.mxu0 0.0
  %2004 = vmatprep.subr.mxu0 0.0
  %2005 = vmatpush1.msra.mxu0 0.0
  %2006 = vmatprep.subr.mxu0 0.0
  %2007 = vmatpush1.msra.mxu0 0.0
  %2008 = vmatprep.subr.mxu0 0.0
  %2009 = vmatpush1.msra.mxu0 0.0
  %2010 = vmatprep.subr.mxu0 0.0
  %2011 = vmatpush1.msra.mxu0 0.0
  %2012 = vmatprep.subr.mxu0 0.0
  %2013 = vmatpush1.msra.mxu0 0.0
  %2014 = vmatprep.subr.mxu0 0.0
  %2015 = vmatpush1.msra.mxu0 0.0
  %2016 = vmatprep.subr.mxu0 0.0
  %2017 = vmatpush1.msra.mxu0 0.0
  %2018 = vmatprep.subr.mxu0 0.0
  %2019 = vmatpush1.msra.mxu0 0.0
  %2020 = vmatprep.subr.mxu0 0.0
  %2021 = vmatpush1.msra.mxu0 0.0
  %2022 = vmatprep.subr.mxu0 0.0
  %2023 = vmatpush1.msra.mxu0 0.0
  %2024 = vmatprep.subr.mxu0 0.0
  %2025 = vmatpush1.msra.mxu0 0.0
  %2026 = vmatprep.subr.mxu0 0.0
  %2027 = vmatpush1.msra.mxu0 0.0
  %2028 = vmatprep.subr.mxu0 0.0
  %2029 = vmatpush1.msra.mxu0 0.0
  %2030 = vmatprep.subr.mxu0 0.0
  %2031 = vmatpush1.msra.mxu0 0.0
  %2032 = vmatprep.subr.mxu0 0.0
  %2033 = vmatpush1.msra.mxu0 0.0
  %2034 = vmatprep.subr.mxu0 0.0
  %2035 = vmatpush1.msra.mxu0 0.0
  %2036 = vmatprep.subr.mxu0 0.0
  %2037 = vmatpush1.msra.mxu0 0.0
  %2038 = vmatprep.subr.mxu0 0.0
  %2039 = vmatpush1.msra.mxu0 0.0
  %2040 = vmatprep.subr.mxu0 0.0
  %2041 = vmatpush1.msra.mxu0 0.0
  %2042 = vmatprep.subr.mxu0 0.0
  %2043 = vmatpush1.msra.mxu0 0.0
  %2044 = vmatprep.subr.mxu0 0.0
  %2045 = vmatpush1.msra.mxu0 0.0
  %2046 = vmatprep.subr.mxu0 0.0
  %2047 = vmatpush1.msra.mxu0 0.0
  %2048 = vmatprep.subr.mxu0 0.0
  %2049 = vmatpush1.msra.mxu0 0.0
  %2050 = vmatprep.subr.mxu0 0.0
  %2051 = vmatpush1.msra.mxu0 0.0
  %2052 = vmatprep.subr.mxu0 0.0
  %2053 = vmatpush1.msra.mxu0 0.0
  %2054 = vmatprep.subr.mxu0 0.0
  %2055 = vmatpush1.msra.mxu0 0.0
  %2056 = vmatprep.subr.mxu0 0.0
  %2057 = vmatpush1.msra.mxu0 0.0
  %2058 = vmatprep.subr.mxu0 0.0
  %2059 = vmatpush1.msra.mxu0 0.0
  %2060 = vmatprep.mubr.f32.mxu0 0.0
  %2061 = vmatmul.mubr.f32.gmra.mrb[0].mxu0 %v1994
  %v2062 = vpop.f32.mrb[0].mxu0
  %v2063 = vadd.f32 0.0, %v2062
  %v2064 = vpop.f32.mrb[0].mxu0
  %2065 = vdwg.mxu0
  %s2066 = scalar_lea.vmem %s9, 24
  %v2067 = vld [vmem:[%s2066] sm:$0xff]
  %v2069 = vsel %vm453, %v2063, 0
  %2071 = vmatprep.subr.mxu0 0.0
  %2072 = vmatpush1.msra.mxu0 %v2067
  %2073 = vmatprep.subr.mxu0 0.0
  %2074 = vmatpush1.msra.mxu0 0.0
  %2075 = vmatprep.subr.mxu0 0.0
  %2076 = vmatpush1.msra.mxu0 0.0
  %2077 = vmatprep.subr.mxu0 0.0
  %2078 = vmatpush1.msra.mxu0 0.0
  %2079 = vmatprep.subr.mxu0 0.0
  %2080 = vmatpush1.msra.mxu0 0.0
  %2081 = vmatprep.subr.mxu0 0.0
  %2082 = vmatpush1.msra.mxu0 0.0
  %2083 = vmatprep.subr.mxu0 0.0
  %2084 = vmatpush1.msra.mxu0 0.0
  %2085 = vmatprep.subr.mxu0 0.0
  %2086 = vmatpush1.msra.mxu0 0.0
  %2087 = vmatprep.subr.mxu0 0.0
  %2088 = vmatpush1.msra.mxu0 0.0
  %2089 = vmatprep.subr.mxu0 0.0
  %2090 = vmatpush1.msra.mxu0 0.0
  %2091 = vmatprep.subr.mxu0 0.0
  %2092 = vmatpush1.msra.mxu0 0.0
  %2093 = vmatprep.subr.mxu0 0.0
  %2094 = vmatpush1.msra.mxu0 0.0
  %2095 = vmatprep.subr.mxu0 0.0
  %2096 = vmatpush1.msra.mxu0 0.0
  %2097 = vmatprep.subr.mxu0 0.0
  %2098 = vmatpush1.msra.mxu0 0.0
  %2099 = vmatprep.subr.mxu0 0.0
  %2100 = vmatpush1.msra.mxu0 0.0
  %2101 = vmatprep.subr.mxu0 0.0
  %2102 = vmatpush1.msra.mxu0 0.0
  %2103 = vmatprep.subr.mxu0 0.0
  %2104 = vmatpush1.msra.mxu0 0.0
  %2105 = vmatprep.subr.mxu0 0.0
  %2106 = vmatpush1.msra.mxu0 0.0
  %2107 = vmatprep.subr.mxu0 0.0
  %2108 = vmatpush1.msra.mxu0 0.0
  %2109 = vmatprep.subr.mxu0 0.0
  %2110 = vmatpush1.msra.mxu0 0.0
  %2111 = vmatprep.subr.mxu0 0.0
  %2112 = vmatpush1.msra.mxu0 0.0
  %2113 = vmatprep.subr.mxu0 0.0
  %2114 = vmatpush1.msra.mxu0 0.0
  %2115 = vmatprep.subr.mxu0 0.0
  %2116 = vmatpush1.msra.mxu0 0.0
  %2117 = vmatprep.subr.mxu0 0.0
  %2118 = vmatpush1.msra.mxu0 0.0
  %2119 = vmatprep.subr.mxu0 0.0
  %2120 = vmatpush1.msra.mxu0 0.0
  %2121 = vmatprep.subr.mxu0 0.0
  %2122 = vmatpush1.msra.mxu0 0.0
  %2123 = vmatprep.subr.mxu0 0.0
  %2124 = vmatpush1.msra.mxu0 0.0
  %2125 = vmatprep.subr.mxu0 0.0
  %2126 = vmatpush1.msra.mxu0 0.0
  %2127 = vmatprep.subr.mxu0 0.0
  %2128 = vmatpush1.msra.mxu0 0.0
  %2129 = vmatprep.subr.mxu0 0.0
  %2130 = vmatpush1.msra.mxu0 0.0
  %2131 = vmatprep.subr.mxu0 0.0
  %2132 = vmatpush1.msra.mxu0 0.0
  %2133 = vmatprep.subr.mxu0 0.0
  %2134 = vmatpush1.msra.mxu0 0.0
  %2135 = vmatprep.mubr.f32.mxu0 0.0
  %2136 = vmatmul.mubr.f32.gmra.mrb[0].mxu0 %v2069
  %v2137 = vpop.f32.mrb[0].mxu0
  %v2138 = vadd.f32 0.0, %v2137
  %v2139 = vpop.f32.mrb[0].mxu0
  %2140 = vdwg.mxu0
  %v2141 = vadd.f32 %v1656, %v2138
  %v2142 = vlaneseq
  %v2143 = vshrl.u32 %v2142, 7
  %v2144 = vsub.s32 0, %v2143
  %v2145 = vrot.slane %v196, %v2144
  %v2146 = vadd.f32 %v2141, %v2145
  %v2147 = vadd.f32 %v2146, %v190
  %v2148 = vsel %vm166, %v2147, 0.0
  %2149 = vadd.xlane.f32.xlu0 %v2148
  %v2150 = vpop.xlane.xlu0 %2149
  %v2151 = vmul.f32 %v2150, %v170
  %v2152 = vsub.f32 %v2147, %v2151
  %v2153 = vmul.f32 %v2152, %v2152
  %v2154 = vsel %vm166, %v2153, 0.0
  %2155 = vadd.xlane.f32.xlu0 %v2154
  %v2156 = vpop.xlane.xlu0 %2155
  %v2157 = vmul.f32 %v2156, %v170
  %v2158 = vadd.f32 %v2157, 1e-12
  %v2159 = vrsqrt.pop %v2158
  %v2160 = vmul.f32 %v2152, %v2159
  %v2161 = vlaneseq
  %v2162 = vshrl.u32 %v2161, 7
  %v2163 = vsub.s32 1, %v2162
  %v2164 = vrot.slane %v196, %v2163
  %v2165 = vmul.f32 %v2160, %v2164
  %v2166 = vlaneseq
  %v2167 = vshrl.u32 %v2166, 7
  %v2168 = vsub.s32 2, %v2167
  %v2169 = vrot.slane %v196, %v2168
  %v2170 = vadd.f32 %v2165, %v2169
  %v2171 = vld [vmem:[%s10] sm:$0xff]
  %v2172 = vld [vmem:[%s10 + $0x8] sm:$0xff]
  %v2173 = vld [vmem:[%s10 + $0x10] sm:$0xff]
  %v2174 = vld [vmem:[%s10 + $0x18] sm:$0xff]
  %v2175 = vld [vmem:[%s12] sm:$0x1]
  %v2177 = vlaneseq
  %v2178 = vshrl.u32 %v2177, 7
  %v2179 = vsub.s32 0, %v2178
  %v2180 = vrot.slane %v2175, %v2179
  %v2183 = vsel %vm166, %v2170, 0
  %2185 = vmatprep.subr.mxu0 0.0
  %2186 = vmatpush1.msra.mxu0 %v2171
  %2187 = vmatprep.subr.mxu0 0.0
  %2188 = vmatpush1.msra.mxu0 %v2172
  %2189 = vmatprep.subr.mxu0 0.0
  %2190 = vmatpush1.msra.mxu0 %v2173
  %2191 = vmatprep.subr.mxu0 0.0
  %2192 = vmatpush1.msra.mxu0 %v2174
  %2193 = vmatprep.subr.mxu0 0.0
  %2194 = vmatpush1.msra.mxu0 0.0
  %2195 = vmatprep.subr.mxu0 0.0
  %2196 = vmatpush1.msra.mxu0 0.0
  %2197 = vmatprep.subr.mxu0 0.0
  %2198 = vmatpush1.msra.mxu0 0.0
  %2199 = vmatprep.subr.mxu0 0.0
  %2200 = vmatpush1.msra.mxu0 0.0
  %2201 = vmatprep.subr.mxu0 0.0
  %2202 = vmatpush1.msra.mxu0 0.0
  %2203 = vmatprep.subr.mxu0 0.0
  %2204 = vmatpush1.msra.mxu0 0.0
  %2205 = vmatprep.subr.mxu0 0.0
  %2206 = vmatpush1.msra.mxu0 0.0
  %2207 = vmatprep.subr.mxu0 0.0
  %2208 = vmatpush1.msra.mxu0 0.0
  %2209 = vmatprep.subr.mxu0 0.0
  %2210 = vmatpush1.msra.mxu0 0.0
  %2211 = vmatprep.subr.mxu0 0.0
  %2212 = vmatpush1.msra.mxu0 0.0
  %2213 = vmatprep.subr.mxu0 0.0
  %2214 = vmatpush1.msra.mxu0 0.0
  %2215 = vmatprep.subr.mxu0 0.0
  %2216 = vmatpush1.msra.mxu0 0.0
  %2217 = vmatprep.subr.mxu0 0.0
  %2218 = vmatpush1.msra.mxu0 0.0
  %2219 = vmatprep.subr.mxu0 0.0
  %2220 = vmatpush1.msra.mxu0 0.0
  %2221 = vmatprep.subr.mxu0 0.0
  %2222 = vmatpush1.msra.mxu0 0.0
  %2223 = vmatprep.subr.mxu0 0.0
  %2224 = vmatpush1.msra.mxu0 0.0
  %2225 = vmatprep.subr.mxu0 0.0
  %2226 = vmatpush1.msra.mxu0 0.0
  %2227 = vmatprep.subr.mxu0 0.0
  %2228 = vmatpush1.msra.mxu0 0.0
  %2229 = vmatprep.subr.mxu0 0.0
  %2230 = vmatpush1.msra.mxu0 0.0
  %2231 = vmatprep.subr.mxu0 0.0
  %2232 = vmatpush1.msra.mxu0 0.0
  %2233 = vmatprep.subr.mxu0 0.0
  %2234 = vmatpush1.msra.mxu0 0.0
  %2235 = vmatprep.subr.mxu0 0.0
  %2236 = vmatpush1.msra.mxu0 0.0
  %2237 = vmatprep.subr.mxu0 0.0
  %2238 = vmatpush1.msra.mxu0 0.0
  %2239 = vmatprep.subr.mxu0 0.0
  %2240 = vmatpush1.msra.mxu0 0.0
  %2241 = vmatprep.subr.mxu0 0.0
  %2242 = vmatpush1.msra.mxu0 0.0
  %2243 = vmatprep.subr.mxu0 0.0
  %2244 = vmatpush1.msra.mxu0 0.0
  %2245 = vmatprep.subr.mxu0 0.0
  %2246 = vmatpush1.msra.mxu0 0.0
  %2247 = vmatprep.subr.mxu0 0.0
  %2248 = vmatpush1.msra.mxu0 0.0
  %2249 = vmatprep.mubr.f32.mxu0 0.0
  %2250 = vmatmul.mubr.f32.gmra.mrb[0].mxu0 %v2183
  %v2251 = vpop.f32.mrb[0].mxu0
  %v2252 = vadd.f32 %v2180, %v2251
  %v2253 = vpop.f32.mrb[0].mxu0
  %2254 = vdwg.mxu0
  %v2255 = vmul.f32 %v2252, 0.5
  %v2256 = vmul.f32 %v2252, 0.044715
  %v2257 = vmul.f32 %v2256, %v2252
  %v2258 = vmul.f32 %v2257, %v2252
  %v2259 = vadd.f32 %v2252, %v2258
  %v2260 = vmul.f32 %v2259, 0.7978846
  %v2261 = vtanh.pop %v2260
  %v2262 = vadd.f32 %v2261, 1.0
  %v2263 = vmul.f32 %v2255, %v2262
  %v2264 = vld [vmem:[%s11] sm:$0xff]
  %v2265 = vld [vmem:[%s11 + $0x8] sm:$0xff]
  %v2266 = vld [vmem:[%s11 + $0x10] sm:$0xff]
  %v2267 = vld [vmem:[%s11 + $0x18] sm:$0xff]
  %v2268 = vld [vmem:[%s11 + $0x20] sm:$0xff]
  %v2269 = vld [vmem:[%s11 + $0x28] sm:$0xff]
  %v2270 = vld [vmem:[%s11 + $0x30] sm:$0xff]
  %v2271 = vld [vmem:[%s11 + $0x38] sm:$0xff]
  %v2272 = vlaneseq
  %v2273 = vshrl.u32 %v2272, 7
  %v2274 = vsub.s32 3, %v2273
  %v2275 = vrot.slane %v196, %v2274
  %vm2276 = vcmask 523264
  %v2278 = vsel %vm2276, %v2263, 0
  %2280 = vmatprep.subr.mxu0 0.0
  %2281 = vmatpush1.msra.mxu0 %v2264
  %2282 = vmatprep.subr.mxu0 0.0
  %2283 = vmatpush1.msra.mxu0 %v2265
  %2284 = vmatprep.subr.mxu0 0.0
  %2285 = vmatpush1.msra.mxu0 %v2266
  %2286 = vmatprep.subr.mxu0 0.0
  %2287 = vmatpush1.msra.mxu0 %v2267
  %2288 = vmatprep.subr.mxu0 0.0
  %2289 = vmatpush1.msra.mxu0 %v2268
  %2290 = vmatprep.subr.mxu0 0.0
  %2291 = vmatpush1.msra.mxu0 %v2269
  %2292 = vmatprep.subr.mxu0 0.0
  %2293 = vmatpush1.msra.mxu0 %v2270
  %2294 = vmatprep.subr.mxu0 0.0
  %2295 = vmatpush1.msra.mxu0 %v2271
  %2296 = vmatprep.subr.mxu0 0.0
  %2297 = vmatpush1.msra.mxu0 0.0
  %2298 = vmatprep.subr.mxu0 0.0
  %2299 = vmatpush1.msra.mxu0 0.0
  %2300 = vmatprep.subr.mxu0 0.0
  %2301 = vmatpush1.msra.mxu0 0.0
  %2302 = vmatprep.subr.mxu0 0.0
  %2303 = vmatpush1.msra.mxu0 0.0
  %2304 = vmatprep.subr.mxu0 0.0
  %2305 = vmatpush1.msra.mxu0 0.0
  %2306 = vmatprep.subr.mxu0 0.0
  %2307 = vmatpush1.msra.mxu0 0.0
  %2308 = vmatprep.subr.mxu0 0.0
  %2309 = vmatpush1.msra.mxu0 0.0
  %2310 = vmatprep.subr.mxu0 0.0
  %2311 = vmatpush1.msra.mxu0 0.0
  %2312 = vmatprep.subr.mxu0 0.0
  %2313 = vmatpush1.msra.mxu0 0.0
  %2314 = vmatprep.subr.mxu0 0.0
  %2315 = vmatpush1.msra.mxu0 0.0
  %2316 = vmatprep.subr.mxu0 0.0
  %2317 = vmatpush1.msra.mxu0 0.0
  %2318 = vmatprep.subr.mxu0 0.0
  %2319 = vmatpush1.msra.mxu0 0.0
  %2320 = vmatprep.subr.mxu0 0.0
  %2321 = vmatpush1.msra.mxu0 0.0
  %2322 = vmatprep.subr.mxu0 0.0
  %2323 = vmatpush1.msra.mxu0 0.0
  %2324 = vmatprep.subr.mxu0 0.0
  %2325 = vmatpush1.msra.mxu0 0.0
  %2326 = vmatprep.subr.mxu0 0.0
  %2327 = vmatpush1.msra.mxu0 0.0
  %2328 = vmatprep.subr.mxu0 0.0
  %2329 = vmatpush1.msra.mxu0 0.0
  %2330 = vmatprep.subr.mxu0 0.0
  %2331 = vmatpush1.msra.mxu0 0.0
  %2332 = vmatprep.subr.mxu0 0.0
  %2333 = vmatpush1.msra.mxu0 0.0
  %2334 = vmatprep.subr.mxu0 0.0
  %2335 = vmatpush1.msra.mxu0 0.0
  %2336 = vmatprep.subr.mxu0 0.0
  %2337 = vmatpush1.msra.mxu0 0.0
  %2338 = vmatprep.subr.mxu0 0.0
  %2339 = vmatpush1.msra.mxu0 0.0
  %2340 = vmatprep.subr.mxu0 0.0
  %2341 = vmatpush1.msra.mxu0 0.0
  %2342 = vmatprep.subr.mxu0 0.0
  %2343 = vmatpush1.msra.mxu0 0.0
  %2344 = vmatprep.mubr.f32.mxu0 0.0
  %2345 = vmatmul.mubr.f32.gmra.mrb[0].mxu0 %v2278
  %v2346 = vpop.f32.mrb[0].mxu0
  %v2347 = vadd.f32 %v2275, %v2346
  %v2348 = vpop.f32.mrb[0].mxu0
  %2349 = vdwg.mxu0
  %v2350 = vadd.f32 %v2347, %v2170
  %v2351 = vsel %vm166, %v2350, 0.0
  %2352 = vadd.xlane.f32.xlu0 %v2351
  %v2353 = vpop.xlane.xlu0 %2352
  %v2354 = vmul.f32 %v2353, %v170
  %v2355 = vsub.f32 %v2350, %v2354
  %v2356 = vmul.f32 %v2355, %v2355
  %v2357 = vsel %vm166, %v2356, 0.0
  %2358 = vadd.xlane.f32.xlu0 %v2357
  %v2359 = vpop.xlane.xlu0 %2358
  %v2360 = vmul.f32 %v2359, %v170
  %v2361 = vadd.f32 %v2360, 1e-12
  %v2362 = vrsqrt.pop %v2361
  %v2363 = vmul.f32 %v2355, %v2362
  %v2364 = vlaneseq
  %v2365 = vshrl.u32 %v2364, 7
  %v2366 = vsub.s32 4, %v2365
  %v2367 = vrot.slane %v196, %v2366
  %v2368 = vmul.f32 %v2363, %v2367
  %v2369 = vlaneseq
  %v2370 = vshrl.u32 %v2369, 7
  %v2371 = vsub.s32 5, %v2370
  %v2372 = vrot.slane %v196, %v2371
  %v2373 = vadd.f32 %v2368, %v2372
  %s2374 = scalar_lea.vmem %s14, 8
  %2375 = vst.msk [vmem:[%s2374] sm:$0xff] %vm166, %v2373
  %s2376 = scalar_lea.vmem %s13, 8
  %v2377 = vld [vmem:[%s2376] sm:$0x3f]
  %s2378 = scalar_lea.vmem %s7, 384
  %v2379 = vld [vmem:[%s2378] sm:$0xff]
  %v2380 = vld [vmem:[%s2378 + $0x8] sm:$0xff]
  %v2381 = vld [vmem:[%s2378 + $0x10] sm:$0xff]
  %v2382 = vld [vmem:[%s2378 + $0x18] sm:$0xff]
  %s2383 = scalar_lea.vmem %s8, 12
  %v2384 = vld [vmem:[%s2383] sm:$0x1]
  %v2386 = vlaneseq
  %v2387 = vshrl.u32 %v2386, 7
  %v2388 = vsub.s32 0, %v2387
  %v2389 = vrot.slane %v2384, %v2388
  %v2392 = vsel %vm166, %v2373, 0
  %2394 = vmatprep.subr.mxu0 0.0
  %2395 = vmatpush1.msra.mxu0 %v2379
  %2396 = vmatprep.subr.mxu0 0.0
  %2397 = vmatpush1.msra.mxu0 %v2380
  %2398 = vmatprep.subr.mxu0 0.0
  %2399 = vmatpush1.msra.mxu0 %v2381
  %2400 = vmatprep.subr.mxu0 0.0
  %2401 = vmatpush1.msra.mxu0 %v2382
  %2402 = vmatprep.subr.mxu0 0.0
  %2403 = vmatpush1.msra.mxu0 0.0
  %2404 = vmatprep.subr.mxu0 0.0
  %2405 = vmatpush1.msra.mxu0 0.0
  %2406 = vmatprep.subr.mxu0 0.0
  %2407 = vmatpush1.msra.mxu0 0.0
  %2408 = vmatprep.subr.mxu0 0.0
  %2409 = vmatpush1.msra.mxu0 0.0
  %2410 = vmatprep.subr.mxu0 0.0
  %2411 = vmatpush1.msra.mxu0 0.0
  %2412 = vmatprep.subr.mxu0 0.0
  %2413 = vmatpush1.msra.mxu0 0.0
  %2414 = vmatprep.subr.mxu0 0.0
  %2415 = vmatpush1.msra.mxu0 0.0
  %2416 = vmatprep.subr.mxu0 0.0
  %2417 = vmatpush1.msra.mxu0 0.0
  %2418 = vmatprep.subr.mxu0 0.0
  %2419 = vmatpush1.msra.mxu0 0.0
  %2420 = vmatprep.subr.mxu0 0.0
  %2421 = vmatpush1.msra.mxu0 0.0
  %2422 = vmatprep.subr.mxu0 0.0
  %2423 = vmatpush1.msra.mxu0 0.0
  %2424 = vmatprep.subr.mxu0 0.0
  %2425 = vmatpush1.msra.mxu0 0.0
  %2426 = vmatprep.subr.mxu0 0.0
  %2427 = vmatpush1.msra.mxu0 0.0
  %2428 = vmatprep.subr.mxu0 0.0
  %2429 = vmatpush1.msra.mxu0 0.0
  %2430 = vmatprep.subr.mxu0 0.0
  %2431 = vmatpush1.msra.mxu0 0.0
  %2432 = vmatprep.subr.mxu0 0.0
  %2433 = vmatpush1.msra.mxu0 0.0
  %2434 = vmatprep.subr.mxu0 0.0
  %2435 = vmatpush1.msra.mxu0 0.0
  %2436 = vmatprep.subr.mxu0 0.0
  %2437 = vmatpush1.msra.mxu0 0.0
  %2438 = vmatprep.subr.mxu0 0.0
  %2439 = vmatpush1.msra.mxu0 0.0
  %2440 = vmatprep.subr.mxu0 0.0
  %2441 = vmatpush1.msra.mxu0 0.0
  %2442 = vmatprep.subr.mxu0 0.0
  %2443 = vmatpush1.msra.mxu0 0.0
  %2444 = vmatprep.subr.mxu0 0.0
  %2445 = vmatpush1.msra.mxu0 0.0
  %2446 = vmatprep.subr.mxu0 0.0
  %2447 = vmatpush1.msra.mxu0 0.0
  %2448 = vmatprep.subr.mxu0 0.0
  %2449 = vmatpush1.msra.mxu0 0.0
  %2450 = vmatprep.subr.mxu0 0.0
  %2451 = vmatpush1.msra.mxu0 0.0
  %2452 = vmatprep.subr.mxu0 0.0
  %2453 = vmatpush1.msra.mxu0 0.0
  %2454 = vmatprep.subr.mxu0 0.0
  %2455 = vmatpush1.msra.mxu0 0.0
  %2456 = vmatprep.subr.mxu0 0.0
  %2457 = vmatpush1.msra.mxu0 0.0
  %2458 = vmatprep.mubr.f32.mxu0 0.0
  %2459 = vmatmul.mubr.f32.gmra.mrb[0].mxu0 %v2392
  %v2460 = vpop.f32.mrb[0].mxu0
  %v2461 = vadd.f32 %v2389, %v2460
  %v2462 = vpop.f32.mrb[0].mxu0
  %2463 = vdwg.mxu0
  %s2464 = scalar_lea.vmem %s7, 512
  %v2465 = vld [vmem:[%s2464] sm:$0xff]
  %v2466 = vld [vmem:[%s2464 + $0x8] sm:$0xff]
  %v2467 = vld [vmem:[%s2464 + $0x10] sm:$0xff]
  %v2468 = vld [vmem:[%s2464 + $0x18] sm:$0xff]
  %s2469 = scalar_lea.vmem %s8, 16
  %v2470 = vld [vmem:[%s2469] sm:$0x1]
  %v2472 = vlaneseq
  %v2473 = vshrl.u32 %v2472, 7
  %v2474 = vsub.s32 0, %v2473
  %v2475 = vrot.slane %v2470, %v2474
  %2477 = vmatprep.subr.mxu0 0.0
  %2478 = vmatpush1.msra.mxu0 %v2465
  %2479 = vmatprep.subr.mxu0 0.0
  %2480 = vmatpush1.msra.mxu0 %v2466
  %2481 = vmatprep.subr.mxu0 0.0
  %2482 = vmatpush1.msra.mxu0 %v2467
  %2483 = vmatprep.subr.mxu0 0.0
  %2484 = vmatpush1.msra.mxu0 %v2468
  %2485 = vmatprep.subr.mxu0 0.0
  %2486 = vmatpush1.msra.mxu0 0.0
  %2487 = vmatprep.subr.mxu0 0.0
  %2488 = vmatpush1.msra.mxu0 0.0
  %2489 = vmatprep.subr.mxu0 0.0
  %2490 = vmatpush1.msra.mxu0 0.0
  %2491 = vmatprep.subr.mxu0 0.0
  %2492 = vmatpush1.msra.mxu0 0.0
  %2493 = vmatprep.subr.mxu0 0.0
  %2494 = vmatpush1.msra.mxu0 0.0
  %2495 = vmatprep.subr.mxu0 0.0
  %2496 = vmatpush1.msra.mxu0 0.0
  %2497 = vmatprep.subr.mxu0 0.0
  %2498 = vmatpush1.msra.mxu0 0.0
  %2499 = vmatprep.subr.mxu0 0.0
  %2500 = vmatpush1.msra.mxu0 0.0
  %2501 = vmatprep.subr.mxu0 0.0
  %2502 = vmatpush1.msra.mxu0 0.0
  %2503 = vmatprep.subr.mxu0 0.0
  %2504 = vmatpush1.msra.mxu0 0.0
  %2505 = vmatprep.subr.mxu0 0.0
  %2506 = vmatpush1.msra.mxu0 0.0
  %2507 = vmatprep.subr.mxu0 0.0
  %2508 = vmatpush1.msra.mxu0 0.0
  %2509 = vmatprep.subr.mxu0 0.0
  %2510 = vmatpush1.msra.mxu0 0.0
  %2511 = vmatprep.subr.mxu0 0.0
  %2512 = vmatpush1.msra.mxu0 0.0
  %2513 = vmatprep.subr.mxu0 0.0
  %2514 = vmatpush1.msra.mxu0 0.0
  %2515 = vmatprep.subr.mxu0 0.0
  %2516 = vmatpush1.msra.mxu0 0.0
  %2517 = vmatprep.subr.mxu0 0.0
  %2518 = vmatpush1.msra.mxu0 0.0
  %2519 = vmatprep.subr.mxu0 0.0
  %2520 = vmatpush1.msra.mxu0 0.0
  %2521 = vmatprep.subr.mxu0 0.0
  %2522 = vmatpush1.msra.mxu0 0.0
  %2523 = vmatprep.subr.mxu0 0.0
  %2524 = vmatpush1.msra.mxu0 0.0
  %2525 = vmatprep.subr.mxu0 0.0
  %2526 = vmatpush1.msra.mxu0 0.0
  %2527 = vmatprep.subr.mxu0 0.0
  %2528 = vmatpush1.msra.mxu0 0.0
  %2529 = vmatprep.subr.mxu0 0.0
  %2530 = vmatpush1.msra.mxu0 0.0
  %2531 = vmatprep.subr.mxu0 0.0
  %2532 = vmatpush1.msra.mxu0 0.0
  %2533 = vmatprep.subr.mxu0 0.0
  %2534 = vmatpush1.msra.mxu0 0.0
  %2535 = vmatprep.subr.mxu0 0.0
  %2536 = vmatpush1.msra.mxu0 0.0
  %2537 = vmatprep.subr.mxu0 0.0
  %2538 = vmatpush1.msra.mxu0 0.0
  %2539 = vmatprep.subr.mxu0 0.0
  %2540 = vmatpush1.msra.mxu0 0.0
  %2541 = vmatprep.mubr.f32.mxu0 0.0
  %2542 = vmatmul.mubr.f32.gmra.mrb[0].mxu0 %v2392
  %v2543 = vpop.f32.mrb[0].mxu0
  %v2544 = vadd.f32 %v2475, %v2543
  %v2545 = vpop.f32.mrb[0].mxu0
  %2546 = vdwg.mxu0
  %s2547 = scalar_lea.vmem %s7, 640
  %v2548 = vld [vmem:[%s2547] sm:$0xff]
  %v2549 = vld [vmem:[%s2547 + $0x8] sm:$0xff]
  %v2550 = vld [vmem:[%s2547 + $0x10] sm:$0xff]
  %v2551 = vld [vmem:[%s2547 + $0x18] sm:$0xff]
  %s2552 = scalar_lea.vmem %s8, 20
  %v2553 = vld [vmem:[%s2552] sm:$0x1]
  %v2555 = vlaneseq
  %v2556 = vshrl.u32 %v2555, 7
  %v2557 = vsub.s32 0, %v2556
  %v2558 = vrot.slane %v2553, %v2557
  %2560 = vmatprep.subr.mxu0 0.0
  %2561 = vmatpush1.msra.mxu0 %v2548
  %2562 = vmatprep.subr.mxu0 0.0
  %2563 = vmatpush1.msra.mxu0 %v2549
  %2564 = vmatprep.subr.mxu0 0.0
  %2565 = vmatpush1.msra.mxu0 %v2550
  %2566 = vmatprep.subr.mxu0 0.0
  %2567 = vmatpush1.msra.mxu0 %v2551
  %2568 = vmatprep.subr.mxu0 0.0
  %2569 = vmatpush1.msra.mxu0 0.0
  %2570 = vmatprep.subr.mxu0 0.0
  %2571 = vmatpush1.msra.mxu0 0.0
  %2572 = vmatprep.subr.mxu0 0.0
  %2573 = vmatpush1.msra.mxu0 0.0
  %2574 = vmatprep.subr.mxu0 0.0
  %2575 = vmatpush1.msra.mxu0 0.0
  %2576 = vmatprep.subr.mxu0 0.0
  %2577 = vmatpush1.msra.mxu0 0.0
  %2578 = vmatprep.subr.mxu0 0.0
  %2579 = vmatpush1.msra.mxu0 0.0
  %2580 = vmatprep.subr.mxu0 0.0
  %2581 = vmatpush1.msra.mxu0 0.0
  %2582 = vmatprep.subr.mxu0 0.0
  %2583 = vmatpush1.msra.mxu0 0.0
  %2584 = vmatprep.subr.mxu0 0.0
  %2585 = vmatpush1.msra.mxu0 0.0
  %2586 = vmatprep.subr.mxu0 0.0
  %2587 = vmatpush1.msra.mxu0 0.0
  %2588 = vmatprep.subr.mxu0 0.0
  %2589 = vmatpush1.msra.mxu0 0.0
  %2590 = vmatprep.subr.mxu0 0.0
  %2591 = vmatpush1.msra.mxu0 0.0
  %2592 = vmatprep.subr.mxu0 0.0
  %2593 = vmatpush1.msra.mxu0 0.0
  %2594 = vmatprep.subr.mxu0 0.0
  %2595 = vmatpush1.msra.mxu0 0.0
  %2596 = vmatprep.subr.mxu0 0.0
  %2597 = vmatpush1.msra.mxu0 0.0
  %2598 = vmatprep.subr.mxu0 0.0
  %2599 = vmatpush1.msra.mxu0 0.0
  %2600 = vmatprep.subr.mxu0 0.0
  %2601 = vmatpush1.msra.mxu0 0.0
  %2602 = vmatprep.subr.mxu0 0.0
  %2603 = vmatpush1.msra.mxu0 0.0
  %2604 = vmatprep.subr.mxu0 0.0
  %2605 = vmatpush1.msra.mxu0 0.0
  %2606 = vmatprep.subr.mxu0 0.0
  %2607 = vmatpush1.msra.mxu0 0.0
  %2608 = vmatprep.subr.mxu0 0.0
  %2609 = vmatpush1.msra.mxu0 0.0
  %2610 = vmatprep.subr.mxu0 0.0
  %2611 = vmatpush1.msra.mxu0 0.0
  %2612 = vmatprep.subr.mxu0 0.0
  %2613 = vmatpush1.msra.mxu0 0.0
  %2614 = vmatprep.subr.mxu0 0.0
  %2615 = vmatpush1.msra.mxu0 0.0
  %2616 = vmatprep.subr.mxu0 0.0
  %2617 = vmatpush1.msra.mxu0 0.0
  %2618 = vmatprep.subr.mxu0 0.0
  %2619 = vmatpush1.msra.mxu0 0.0
  %2620 = vmatprep.subr.mxu0 0.0
  %2621 = vmatpush1.msra.mxu0 0.0
  %2622 = vmatprep.subr.mxu0 0.0
  %2623 = vmatpush1.msra.mxu0 0.0
  %2624 = vmatprep.mubr.f32.mxu0 0.0
  %2625 = vmatmul.mubr.f32.gmra.mrb[0].mxu0 %v2392
  %v2626 = vpop.f32.mrb[0].mxu0
  %v2627 = vadd.f32 %v2558, %v2626
  %v2628 = vpop.f32.mrb[0].mxu0
  %2629 = vdwg.mxu0
  %v2631 = vsel %vm453, %v2461, 0
  %v2634 = vsel %vm453, %v2544, 0
  %2636 = vmatprep.subr.mxu0 0.0
  %2637 = vmatpush1.xpose.msra.mxu0 %v2634
  %2638 = vmatprep.subr.mxu0 0.0
  %2639 = vmatpush1.xpose.msra.mxu0 0.0
  %2640 = vmatprep.subr.mxu0 0.0
  %2641 = vmatpush1.xpose.msra.mxu0 0.0
  %2642 = vmatprep.subr.mxu0 0.0
  %2643 = vmatpush1.xpose.msra.mxu0 0.0
  %2644 = vmatprep.subr.mxu0 0.0
  %2645 = vmatpush1.xpose.msra.mxu0 0.0
  %2646 = vmatprep.subr.mxu0 0.0
  %2647 = vmatpush1.xpose.msra.mxu0 0.0
  %2648 = vmatprep.subr.mxu0 0.0
  %2649 = vmatpush1.xpose.msra.mxu0 0.0
  %2650 = vmatprep.subr.mxu0 0.0
  %2651 = vmatpush1.xpose.msra.mxu0 0.0
  %2652 = vmatprep.subr.mxu0 0.0
  %2653 = vmatpush1.xpose.msra.mxu0 0.0
  %2654 = vmatprep.subr.mxu0 0.0
  %2655 = vmatpush1.xpose.msra.mxu0 0.0
  %2656 = vmatprep.subr.mxu0 0.0
  %2657 = vmatpush1.xpose.msra.mxu0 0.0
  %2658 = vmatprep.subr.mxu0 0.0
  %2659 = vmatpush1.xpose.msra.mxu0 0.0
  %2660 = vmatprep.subr.mxu0 0.0
  %2661 = vmatpush1.xpose.msra.mxu0 0.0
  %2662 = vmatprep.subr.mxu0 0.0
  %2663 = vmatpush1.xpose.msra.mxu0 0.0
  %2664 = vmatprep.subr.mxu0 0.0
  %2665 = vmatpush1.xpose.msra.mxu0 0.0
  %2666 = vmatprep.subr.mxu0 0.0
  %2667 = vmatpush1.xpose.msra.mxu0 0.0
  %2668 = vmatprep.subr.mxu0 0.0
  %2669 = vmatpush1.xpose.msra.mxu0 0.0
  %2670 = vmatprep.subr.mxu0 0.0
  %2671 = vmatpush1.xpose.msra.mxu0 0.0
  %2672 = vmatprep.subr.mxu0 0.0
  %2673 = vmatpush1.xpose.msra.mxu0 0.0
  %2674 = vmatprep.subr.mxu0 0.0
  %2675 = vmatpush1.xpose.msra.mxu0 0.0
  %2676 = vmatprep.subr.mxu0 0.0
  %2677 = vmatpush1.xpose.msra.mxu0 0.0
  %2678 = vmatprep.subr.mxu0 0.0
  %2679 = vmatpush1.xpose.msra.mxu0 0.0
  %2680 = vmatprep.subr.mxu0 0.0
  %2681 = vmatpush1.xpose.msra.mxu0 0.0
  %2682 = vmatprep.subr.mxu0 0.0
  %2683 = vmatpush1.xpose.msra.mxu0 0.0
  %2684 = vmatprep.subr.mxu0 0.0
  %2685 = vmatpush1.xpose.msra.mxu0 0.0
  %2686 = vmatprep.subr.mxu0 0.0
  %2687 = vmatpush1.xpose.msra.mxu0 0.0
  %2688 = vmatprep.subr.mxu0 0.0
  %2689 = vmatpush1.xpose.msra.mxu0 0.0
  %2690 = vmatprep.subr.mxu0 0.0
  %2691 = vmatpush1.xpose.msra.mxu0 0.0
  %2692 = vmatprep.subr.mxu0 0.0
  %2693 = vmatpush1.xpose.msra.mxu0 0.0
  %2694 = vmatprep.subr.mxu0 0.0
  %2695 = vmatpush1.xpose.msra.mxu0 0.0
  %2696 = vmatprep.subr.mxu0 0.0
  %2697 = vmatpush1.xpose.msra.mxu0 0.0
  %2698 = vmatprep.subr.mxu0 0.0
  %2699 = vmatpush1.xpose.msra.mxu0 0.0
  %2700 = vmatprep.mubr.f32.mxu0 0.0
  %2701 = vmatmul.mubr.f32.gmra.mrb[0].mxu0 %v2631
  %v2702 = vpop.f32.mrb[0].mxu0
  %v2703 = vadd.f32 %v451, %v2702
  %v2704 = vpop.f32.mrb[0].mxu0
  %2705 = vdwg.mxu0
  %v2706 = vsel %vm453, %v2703, -inf
  %2707 = vmax.xlane.f32.xlu0 %v2706
  %v2708 = vpop.xlane.xlu0 %2707
  %v2709 = vsub.f32 %v2703, %v2708
  %v2710 = vmul.f32 %v2709, 1.442695
  %v2711 = vpow.pop %v2710
  %v2712 = vsel %vm453, %v2711, 0.0
  %2713 = vadd.xlane.f32.xlu0 %v2712
  %v2714 = vpop.xlane.xlu0 %2713
  %v2715 = vrcp.pop %v2714
  %v2716 = vmul.f32 %v2711, %v2715
  %v2718 = vsel %vm453, %v2716, 0
  %2720 = vmatprep.subr.mxu0 0.0
  %2721 = vmatpush1.msra.mxu0 %v2627
  %2722 = vmatprep.subr.mxu0 0.0
  %2723 = vmatpush1.msra.mxu0 0.0
  %2724 = vmatprep.subr.mxu0 0.0
  %2725 = vmatpush1.msra.mxu0 0.0
  %2726 = vmatprep.subr.mxu0 0.0
  %2727 = vmatpush1.msra.mxu0 0.0
  %2728 = vmatprep.subr.mxu0 0.0
  %2729 = vmatpush1.msra.mxu0 0.0
  %2730 = vmatprep.subr.mxu0 0.0
  %2731 = vmatpush1.msra.mxu0 0.0
  %2732 = vmatprep.subr.mxu0 0.0
  %2733 = vmatpush1.msra.mxu0 0.0
  %2734 = vmatprep.subr.mxu0 0.0
  %2735 = vmatpush1.msra.mxu0 0.0
  %2736 = vmatprep.subr.mxu0 0.0
  %2737 = vmatpush1.msra.mxu0 0.0
  %2738 = vmatprep.subr.mxu0 0.0
  %2739 = vmatpush1.msra.mxu0 0.0
  %2740 = vmatprep.subr.mxu0 0.0
  %2741 = vmatpush1.msra.mxu0 0.0
  %2742 = vmatprep.subr.mxu0 0.0
  %2743 = vmatpush1.msra.mxu0 0.0
  %2744 = vmatprep.subr.mxu0 0.0
  %2745 = vmatpush1.msra.mxu0 0.0
  %2746 = vmatprep.subr.mxu0 0.0
  %2747 = vmatpush1.msra.mxu0 0.0
  %2748 = vmatprep.subr.mxu0 0.0
  %2749 = vmatpush1.msra.mxu0 0.0
  %2750 = vmatprep.subr.mxu0 0.0
  %2751 = vmatpush1.msra.mxu0 0.0
  %2752 = vmatprep.subr.mxu0 0.0
  %2753 = vmatpush1.msra.mxu0 0.0
  %2754 = vmatprep.subr.mxu0 0.0
  %2755 = vmatpush1.msra.mxu0 0.0
  %2756 = vmatprep.subr.mxu0 0.0
  %2757 = vmatpush1.msra.mxu0 0.0
  %2758 = vmatprep.subr.mxu0 0.0
  %2759 = vmatpush1.msra.mxu0 0.0
  %2760 = vmatprep.subr.mxu0 0.0
  %2761 = vmatpush1.msra.mxu0 0.0
  %2762 = vmatprep.subr.mxu0 0.0
  %2763 = vmatpush1.msra.mxu0 0.0
  %2764 = vmatprep.subr.mxu0 0.0
  %2765 = vmatpush1.msra.mxu0 0.0
  %2766 = vmatprep.subr.mxu0 0.0
  %2767 = vmatpush1.msra.mxu0 0.0
  %2768 = vmatprep.subr.mxu0 0.0
  %2769 = vmatpush1.msra.mxu0 0.0
  %2770 = vmatprep.subr.mxu0 0.0
  %2771 = vmatpush1.msra.mxu0 0.0
  %2772 = vmatprep.subr.mxu0 0.0
  %2773 = vmatpush1.msra.mxu0 0.0
  %2774 = vmatprep.subr.mxu0 0.0
  %2775 = vmatpush1.msra.mxu0 0.0
  %2776 = vmatprep.subr.mxu0 0.0
  %2777 = vmatpush1.msra.mxu0 0.0
  %2778 = vmatprep.subr.mxu0 0.0
  %2779 = vmatpush1.msra.mxu0 0.0
  %2780 = vmatprep.subr.mxu0 0.0
  %2781 = vmatpush1.msra.mxu0 0.0
  %2782 = vmatprep.subr.mxu0 0.0
  %2783 = vmatpush1.msra.mxu0 0.0
  %2784 = vmatprep.mubr.f32.mxu0 0.0
  %2785 = vmatmul.mubr.f32.gmra.mrb[0].mxu0 %v2718
  %v2786 = vpop.f32.mrb[0].mxu0
  %v2787 = vadd.f32 0.0, %v2786
  %v2788 = vpop.f32.mrb[0].mxu0
  %2789 = vdwg.mxu0
  %s2790 = scalar_lea.vmem %s9, 32
  %v2791 = vld [vmem:[%s2790] sm:$0xff]
  %s2792 = scalar_lea.vmem %s7, 416
  %v2793 = vld [vmem:[%s2792] sm:$0xff]
  %v2794 = vld [vmem:[%s2792 + $0x8] sm:$0xff]
  %v2795 = vld [vmem:[%s2792 + $0x10] sm:$0xff]
  %v2796 = vld [vmem:[%s2792 + $0x18] sm:$0xff]
  %s2797 = scalar_lea.vmem %s8, 13
  %v2798 = vld [vmem:[%s2797] sm:$0x1]
  %v2800 = vlaneseq
  %v2801 = vshrl.u32 %v2800, 7
  %v2802 = vsub.s32 0, %v2801
  %v2803 = vrot.slane %v2798, %v2802
  %2805 = vmatprep.subr.mxu0 0.0
  %2806 = vmatpush1.msra.mxu0 %v2793
  %2807 = vmatprep.subr.mxu0 0.0
  %2808 = vmatpush1.msra.mxu0 %v2794
  %2809 = vmatprep.subr.mxu0 0.0
  %2810 = vmatpush1.msra.mxu0 %v2795
  %2811 = vmatprep.subr.mxu0 0.0
  %2812 = vmatpush1.msra.mxu0 %v2796
  %2813 = vmatprep.subr.mxu0 0.0
  %2814 = vmatpush1.msra.mxu0 0.0
  %2815 = vmatprep.subr.mxu0 0.0
  %2816 = vmatpush1.msra.mxu0 0.0
  %2817 = vmatprep.subr.mxu0 0.0
  %2818 = vmatpush1.msra.mxu0 0.0
  %2819 = vmatprep.subr.mxu0 0.0
  %2820 = vmatpush1.msra.mxu0 0.0
  %2821 = vmatprep.subr.mxu0 0.0
  %2822 = vmatpush1.msra.mxu0 0.0
  %2823 = vmatprep.subr.mxu0 0.0
  %2824 = vmatpush1.msra.mxu0 0.0
  %2825 = vmatprep.subr.mxu0 0.0
  %2826 = vmatpush1.msra.mxu0 0.0
  %2827 = vmatprep.subr.mxu0 0.0
  %2828 = vmatpush1.msra.mxu0 0.0
  %2829 = vmatprep.subr.mxu0 0.0
  %2830 = vmatpush1.msra.mxu0 0.0
  %2831 = vmatprep.subr.mxu0 0.0
  %2832 = vmatpush1.msra.mxu0 0.0
  %2833 = vmatprep.subr.mxu0 0.0
  %2834 = vmatpush1.msra.mxu0 0.0
  %2835 = vmatprep.subr.mxu0 0.0
  %2836 = vmatpush1.msra.mxu0 0.0
  %2837 = vmatprep.subr.mxu0 0.0
  %2838 = vmatpush1.msra.mxu0 0.0
  %2839 = vmatprep.subr.mxu0 0.0
  %2840 = vmatpush1.msra.mxu0 0.0
  %2841 = vmatprep.subr.mxu0 0.0
  %2842 = vmatpush1.msra.mxu0 0.0
  %2843 = vmatprep.subr.mxu0 0.0
  %2844 = vmatpush1.msra.mxu0 0.0
  %2845 = vmatprep.subr.mxu0 0.0
  %2846 = vmatpush1.msra.mxu0 0.0
  %2847 = vmatprep.subr.mxu0 0.0
  %2848 = vmatpush1.msra.mxu0 0.0
  %2849 = vmatprep.subr.mxu0 0.0
  %2850 = vmatpush1.msra.mxu0 0.0
  %2851 = vmatprep.subr.mxu0 0.0
  %2852 = vmatpush1.msra.mxu0 0.0
  %2853 = vmatprep.subr.mxu0 0.0
  %2854 = vmatpush1.msra.mxu0 0.0
  %2855 = vmatprep.subr.mxu0 0.0
  %2856 = vmatpush1.msra.mxu0 0.0
  %2857 = vmatprep.subr.mxu0 0.0
  %2858 = vmatpush1.msra.mxu0 0.0
  %2859 = vmatprep.subr.mxu0 0.0
  %2860 = vmatpush1.msra.mxu0 0.0
  %2861 = vmatprep.subr.mxu0 0.0
  %2862 = vmatpush1.msra.mxu0 0.0
  %2863 = vmatprep.subr.mxu0 0.0
  %2864 = vmatpush1.msra.mxu0 0.0
  %2865 = vmatprep.subr.mxu0 0.0
  %2866 = vmatpush1.msra.mxu0 0.0
  %2867 = vmatprep.subr.mxu0 0.0
  %2868 = vmatpush1.msra.mxu0 0.0
  %2869 = vmatprep.mubr.f32.mxu0 0.0
  %2870 = vmatmul.mubr.f32.gmra.mrb[0].mxu0 %v2392
  %v2871 = vpop.f32.mrb[0].mxu0
  %v2872 = vadd.f32 %v2803, %v2871
  %v2873 = vpop.f32.mrb[0].mxu0
  %2874 = vdwg.mxu0
  %s2875 = scalar_lea.vmem %s7, 544
  %v2876 = vld [vmem:[%s2875] sm:$0xff]
  %v2877 = vld [vmem:[%s2875 + $0x8] sm:$0xff]
  %v2878 = vld [vmem:[%s2875 + $0x10] sm:$0xff]
  %v2879 = vld [vmem:[%s2875 + $0x18] sm:$0xff]
  %s2880 = scalar_lea.vmem %s8, 17
  %v2881 = vld [vmem:[%s2880] sm:$0x1]
  %v2883 = vlaneseq
  %v2884 = vshrl.u32 %v2883, 7
  %v2885 = vsub.s32 0, %v2884
  %v2886 = vrot.slane %v2881, %v2885
  %2888 = vmatprep.subr.mxu0 0.0
  %2889 = vmatpush1.msra.mxu0 %v2876
  %2890 = vmatprep.subr.mxu0 0.0
  %2891 = vmatpush1.msra.mxu0 %v2877
  %2892 = vmatprep.subr.mxu0 0.0
  %2893 = vmatpush1.msra.mxu0 %v2878
  %2894 = vmatprep.subr.mxu0 0.0
  %2895 = vmatpush1.msra.mxu0 %v2879
  %2896 = vmatprep.subr.mxu0 0.0
  %2897 = vmatpush1.msra.mxu0 0.0
  %2898 = vmatprep.subr.mxu0 0.0
  %2899 = vmatpush1.msra.mxu0 0.0
  %2900 = vmatprep.subr.mxu0 0.0
  %2901 = vmatpush1.msra.mxu0 0.0
  %2902 = vmatprep.subr.mxu0 0.0
  %2903 = vmatpush1.msra.mxu0 0.0
  %2904 = vmatprep.subr.mxu0 0.0
  %2905 = vmatpush1.msra.mxu0 0.0
  %2906 = vmatprep.subr.mxu0 0.0
  %2907 = vmatpush1.msra.mxu0 0.0
  %2908 = vmatprep.subr.mxu0 0.0
  %2909 = vmatpush1.msra.mxu0 0.0
  %2910 = vmatprep.subr.mxu0 0.0
  %2911 = vmatpush1.msra.mxu0 0.0
  %2912 = vmatprep.subr.mxu0 0.0
  %2913 = vmatpush1.msra.mxu0 0.0
  %2914 = vmatprep.subr.mxu0 0.0
  %2915 = vmatpush1.msra.mxu0 0.0
  %2916 = vmatprep.subr.mxu0 0.0
  %2917 = vmatpush1.msra.mxu0 0.0
  %2918 = vmatprep.subr.mxu0 0.0
  %2919 = vmatpush1.msra.mxu0 0.0
  %2920 = vmatprep.subr.mxu0 0.0
  %2921 = vmatpush1.msra.mxu0 0.0
  %2922 = vmatprep.subr.mxu0 0.0
  %2923 = vmatpush1.msra.mxu0 0.0
  %2924 = vmatprep.subr.mxu0 0.0
  %2925 = vmatpush1.msra.mxu0 0.0
  %2926 = vmatprep.subr.mxu0 0.0
  %2927 = vmatpush1.msra.mxu0 0.0
  %2928 = vmatprep.subr.mxu0 0.0
  %2929 = vmatpush1.msra.mxu0 0.0
  %2930 = vmatprep.subr.mxu0 0.0
  %2931 = vmatpush1.msra.mxu0 0.0
  %2932 = vmatprep.subr.mxu0 0.0
  %2933 = vmatpush1.msra.mxu0 0.0
  %2934 = vmatprep.subr.mxu0 0.0
  %2935 = vmatpush1.msra.mxu0 0.0
  %2936 = vmatprep.subr.mxu0 0.0
  %2937 = vmatpush1.msra.mxu0 0.0
  %2938 = vmatprep.subr.mxu0 0.0
  %2939 = vmatpush1.msra.mxu0 0.0
  %2940 = vmatprep.subr.mxu0 0.0
  %2941 = vmatpush1.msra.mxu0 0.0
  %2942 = vmatprep.subr.mxu0 0.0
  %2943 = vmatpush1.msra.mxu0 0.0
  %2944 = vmatprep.subr.mxu0 0.0
  %2945 = vmatpush1.msra.mxu0 0.0
  %2946 = vmatprep.subr.mxu0 0.0
  %2947 = vmatpush1.msra.mxu0 0.0
  %2948 = vmatprep.subr.mxu0 0.0
  %2949 = vmatpush1.msra.mxu0 0.0
  %2950 = vmatprep.subr.mxu0 0.0
  %2951 = vmatpush1.msra.mxu0 0.0
  %2952 = vmatprep.mubr.f32.mxu0 0.0
  %2953 = vmatmul.mubr.f32.gmra.mrb[0].mxu0 %v2392
  %v2954 = vpop.f32.mrb[0].mxu0
  %v2955 = vadd.f32 %v2886, %v2954
  %v2956 = vpop.f32.mrb[0].mxu0
  %2957 = vdwg.mxu0
  %s2958 = scalar_lea.vmem %s7, 672
  %v2959 = vld [vmem:[%s2958] sm:$0xff]
  %v2960 = vld [vmem:[%s2958 + $0x8] sm:$0xff]
  %v2961 = vld [vmem:[%s2958 + $0x10] sm:$0xff]
  %v2962 = vld [vmem:[%s2958 + $0x18] sm:$0xff]
  %s2963 = scalar_lea.vmem %s8, 21
  %v2964 = vld [vmem:[%s2963] sm:$0x1]
  %v2966 = vlaneseq
  %v2967 = vshrl.u32 %v2966, 7
  %v2968 = vsub.s32 0, %v2967
  %v2969 = vrot.slane %v2964, %v2968
  %2971 = vmatprep.subr.mxu0 0.0
  %2972 = vmatpush1.msra.mxu0 %v2959
  %2973 = vmatprep.subr.mxu0 0.0
  %2974 = vmatpush1.msra.mxu0 %v2960
  %2975 = vmatprep.subr.mxu0 0.0
  %2976 = vmatpush1.msra.mxu0 %v2961
  %2977 = vmatprep.subr.mxu0 0.0
  %2978 = vmatpush1.msra.mxu0 %v2962
  %2979 = vmatprep.subr.mxu0 0.0
  %2980 = vmatpush1.msra.mxu0 0.0
  %2981 = vmatprep.subr.mxu0 0.0
  %2982 = vmatpush1.msra.mxu0 0.0
  %2983 = vmatprep.subr.mxu0 0.0
  %2984 = vmatpush1.msra.mxu0 0.0
  %2985 = vmatprep.subr.mxu0 0.0
  %2986 = vmatpush1.msra.mxu0 0.0
  %2987 = vmatprep.subr.mxu0 0.0
  %2988 = vmatpush1.msra.mxu0 0.0
  %2989 = vmatprep.subr.mxu0 0.0
  %2990 = vmatpush1.msra.mxu0 0.0
  %2991 = vmatprep.subr.mxu0 0.0
  %2992 = vmatpush1.msra.mxu0 0.0
  %2993 = vmatprep.subr.mxu0 0.0
  %2994 = vmatpush1.msra.mxu0 0.0
  %2995 = vmatprep.subr.mxu0 0.0
  %2996 = vmatpush1.msra.mxu0 0.0
  %2997 = vmatprep.subr.mxu0 0.0
  %2998 = vmatpush1.msra.mxu0 0.0
  %2999 = vmatprep.subr.mxu0 0.0
  %3000 = vmatpush1.msra.mxu0 0.0
  %3001 = vmatprep.subr.mxu0 0.0
  %3002 = vmatpush1.msra.mxu0 0.0
  %3003 = vmatprep.subr.mxu0 0.0
  %3004 = vmatpush1.msra.mxu0 0.0
  %3005 = vmatprep.subr.mxu0 0.0
  %3006 = vmatpush1.msra.mxu0 0.0
  %3007 = vmatprep.subr.mxu0 0.0
  %3008 = vmatpush1.msra.mxu0 0.0
  %3009 = vmatprep.subr.mxu0 0.0
  %3010 = vmatpush1.msra.mxu0 0.0
  %3011 = vmatprep.subr.mxu0 0.0
  %3012 = vmatpush1.msra.mxu0 0.0
  %3013 = vmatprep.subr.mxu0 0.0
  %3014 = vmatpush1.msra.mxu0 0.0
  %3015 = vmatprep.subr.mxu0 0.0
  %3016 = vmatpush1.msra.mxu0 0.0
  %3017 = vmatprep.subr.mxu0 0.0
  %3018 = vmatpush1.msra.mxu0 0.0
  %3019 = vmatprep.subr.mxu0 0.0
  %3020 = vmatpush1.msra.mxu0 0.0
  %3021 = vmatprep.subr.mxu0 0.0
  %3022 = vmatpush1.msra.mxu0 0.0
  %3023 = vmatprep.subr.mxu0 0.0
  %3024 = vmatpush1.msra.mxu0 0.0
  %3025 = vmatprep.subr.mxu0 0.0
  %3026 = vmatpush1.msra.mxu0 0.0
  %3027 = vmatprep.subr.mxu0 0.0
  %3028 = vmatpush1.msra.mxu0 0.0
  %3029 = vmatprep.subr.mxu0 0.0
  %3030 = vmatpush1.msra.mxu0 0.0
  %3031 = vmatprep.subr.mxu0 0.0
  %3032 = vmatpush1.msra.mxu0 0.0
  %3033 = vmatprep.subr.mxu0 0.0
  %3034 = vmatpush1.msra.mxu0 0.0
  %3035 = vmatprep.mubr.f32.mxu0 0.0
  %3036 = vmatmul.mubr.f32.gmra.mrb[0].mxu0 %v2392
  %v3037 = vpop.f32.mrb[0].mxu0
  %v3038 = vadd.f32 %v2969, %v3037
  %v3039 = vpop.f32.mrb[0].mxu0
  %3040 = vdwg.mxu0
  %v3042 = vsel %vm453, %v2872, 0
  %v3045 = vsel %vm453, %v2955, 0
  %3047 = vmatprep.subr.mxu0 0.0
  %3048 = vmatpush1.xpose.msra.mxu0 %v3045
  %3049 = vmatprep.subr.mxu0 0.0
  %3050 = vmatpush1.xpose.msra.mxu0 0.0
  %3051 = vmatprep.subr.mxu0 0.0
  %3052 = vmatpush1.xpose.msra.mxu0 0.0
  %3053 = vmatprep.subr.mxu0 0.0
  %3054 = vmatpush1.xpose.msra.mxu0 0.0
  %3055 = vmatprep.subr.mxu0 0.0
  %3056 = vmatpush1.xpose.msra.mxu0 0.0
  %3057 = vmatprep.subr.mxu0 0.0
  %3058 = vmatpush1.xpose.msra.mxu0 0.0
  %3059 = vmatprep.subr.mxu0 0.0
  %3060 = vmatpush1.xpose.msra.mxu0 0.0
  %3061 = vmatprep.subr.mxu0 0.0
  %3062 = vmatpush1.xpose.msra.mxu0 0.0
  %3063 = vmatprep.subr.mxu0 0.0
  %3064 = vmatpush1.xpose.msra.mxu0 0.0
  %3065 = vmatprep.subr.mxu0 0.0
  %3066 = vmatpush1.xpose.msra.mxu0 0.0
  %3067 = vmatprep.subr.mxu0 0.0
  %3068 = vmatpush1.xpose.msra.mxu0 0.0
  %3069 = vmatprep.subr.mxu0 0.0
  %3070 = vmatpush1.xpose.msra.mxu0 0.0
  %3071 = vmatprep.subr.mxu0 0.0
  %3072 = vmatpush1.xpose.msra.mxu0 0.0
  %3073 = vmatprep.subr.mxu0 0.0
  %3074 = vmatpush1.xpose.msra.mxu0 0.0
  %3075 = vmatprep.subr.mxu0 0.0
  %3076 = vmatpush1.xpose.msra.mxu0 0.0
  %3077 = vmatprep.subr.mxu0 0.0
  %3078 = vmatpush1.xpose.msra.mxu0 0.0
  %3079 = vmatprep.subr.mxu0 0.0
  %3080 = vmatpush1.xpose.msra.mxu0 0.0
  %3081 = vmatprep.subr.mxu0 0.0
  %3082 = vmatpush1.xpose.msra.mxu0 0.0
  %3083 = vmatprep.subr.mxu0 0.0
  %3084 = vmatpush1.xpose.msra.mxu0 0.0
  %3085 = vmatprep.subr.mxu0 0.0
  %3086 = vmatpush1.xpose.msra.mxu0 0.0
  %3087 = vmatprep.subr.mxu0 0.0
  %3088 = vmatpush1.xpose.msra.mxu0 0.0
  %3089 = vmatprep.subr.mxu0 0.0
  %3090 = vmatpush1.xpose.msra.mxu0 0.0
  %3091 = vmatprep.subr.mxu0 0.0
  %3092 = vmatpush1.xpose.msra.mxu0 0.0
  %3093 = vmatprep.subr.mxu0 0.0
  %3094 = vmatpush1.xpose.msra.mxu0 0.0
  %3095 = vmatprep.subr.mxu0 0.0
  %3096 = vmatpush1.xpose.msra.mxu0 0.0
  %3097 = vmatprep.subr.mxu0 0.0
  %3098 = vmatpush1.xpose.msra.mxu0 0.0
  %3099 = vmatprep.subr.mxu0 0.0
  %3100 = vmatpush1.xpose.msra.mxu0 0.0
  %3101 = vmatprep.subr.mxu0 0.0
  %3102 = vmatpush1.xpose.msra.mxu0 0.0
  %3103 = vmatprep.subr.mxu0 0.0
  %3104 = vmatpush1.xpose.msra.mxu0 0.0
  %3105 = vmatprep.subr.mxu0 0.0
  %3106 = vmatpush1.xpose.msra.mxu0 0.0
  %3107 = vmatprep.subr.mxu0 0.0
  %3108 = vmatpush1.xpose.msra.mxu0 0.0
  %3109 = vmatprep.subr.mxu0 0.0
  %3110 = vmatpush1.xpose.msra.mxu0 0.0
  %3111 = vmatprep.mubr.f32.mxu0 0.0
  %3112 = vmatmul.mubr.f32.gmra.mrb[0].mxu0 %v3042
  %v3113 = vpop.f32.mrb[0].mxu0
  %v3114 = vadd.f32 %v451, %v3113
  %v3115 = vpop.f32.mrb[0].mxu0
  %3116 = vdwg.mxu0
  %v3117 = vsel %vm453, %v3114, -inf
  %3118 = vmax.xlane.f32.xlu0 %v3117
  %v3119 = vpop.xlane.xlu0 %3118
  %v3120 = vsub.f32 %v3114, %v3119
  %v3121 = vmul.f32 %v3120, 1.442695
  %v3122 = vpow.pop %v3121
  %v3123 = vsel %vm453, %v3122, 0.0
  %3124 = vadd.xlane.f32.xlu0 %v3123
  %v3125 = vpop.xlane.xlu0 %3124
  %v3126 = vrcp.pop %v3125
  %v3127 = vmul.f32 %v3122, %v3126
  %v3129 = vsel %vm453, %v3127, 0
  %3131 = vmatprep.subr.mxu0 0.0
  %3132 = vmatpush1.msra.mxu0 %v3038
  %3133 = vmatprep.subr.mxu0 0.0
  %3134 = vmatpush1.msra.mxu0 0.0
  %3135 = vmatprep.subr.mxu0 0.0
  %3136 = vmatpush1.msra.mxu0 0.0
  %3137 = vmatprep.subr.mxu0 0.0
  %3138 = vmatpush1.msra.mxu0 0.0
  %3139 = vmatprep.subr.mxu0 0.0
  %3140 = vmatpush1.msra.mxu0 0.0
  %3141 = vmatprep.subr.mxu0 0.0
  %3142 = vmatpush1.msra.mxu0 0.0
  %3143 = vmatprep.subr.mxu0 0.0
  %3144 = vmatpush1.msra.mxu0 0.0
  %3145 = vmatprep.subr.mxu0 0.0
  %3146 = vmatpush1.msra.mxu0 0.0
  %3147 = vmatprep.subr.mxu0 0.0
  %3148 = vmatpush1.msra.mxu0 0.0
  %3149 = vmatprep.subr.mxu0 0.0
  %3150 = vmatpush1.msra.mxu0 0.0
  %3151 = vmatprep.subr.mxu0 0.0
  %3152 = vmatpush1.msra.mxu0 0.0
  %3153 = vmatprep.subr.mxu0 0.0
  %3154 = vmatpush1.msra.mxu0 0.0
  %3155 = vmatprep.subr.mxu0 0.0
  %3156 = vmatpush1.msra.mxu0 0.0
  %3157 = vmatprep.subr.mxu0 0.0
  %3158 = vmatpush1.msra.mxu0 0.0
  %3159 = vmatprep.subr.mxu0 0.0
  %3160 = vmatpush1.msra.mxu0 0.0
  %3161 = vmatprep.subr.mxu0 0.0
  %3162 = vmatpush1.msra.mxu0 0.0
  %3163 = vmatprep.subr.mxu0 0.0
  %3164 = vmatpush1.msra.mxu0 0.0
  %3165 = vmatprep.subr.mxu0 0.0
  %3166 = vmatpush1.msra.mxu0 0.0
  %3167 = vmatprep.subr.mxu0 0.0
  %3168 = vmatpush1.msra.mxu0 0.0
  %3169 = vmatprep.subr.mxu0 0.0
  %3170 = vmatpush1.msra.mxu0 0.0
  %3171 = vmatprep.subr.mxu0 0.0
  %3172 = vmatpush1.msra.mxu0 0.0
  %3173 = vmatprep.subr.mxu0 0.0
  %3174 = vmatpush1.msra.mxu0 0.0
  %3175 = vmatprep.subr.mxu0 0.0
  %3176 = vmatpush1.msra.mxu0 0.0
  %3177 = vmatprep.subr.mxu0 0.0
  %3178 = vmatpush1.msra.mxu0 0.0
  %3179 = vmatprep.subr.mxu0 0.0
  %3180 = vmatpush1.msra.mxu0 0.0
  %3181 = vmatprep.subr.mxu0 0.0
  %3182 = vmatpush1.msra.mxu0 0.0
  %3183 = vmatprep.subr.mxu0 0.0
  %3184 = vmatpush1.msra.mxu0 0.0
  %3185 = vmatprep.subr.mxu0 0.0
  %3186 = vmatpush1.msra.mxu0 0.0
  %3187 = vmatprep.subr.mxu0 0.0
  %3188 = vmatpush1.msra.mxu0 0.0
  %3189 = vmatprep.subr.mxu0 0.0
  %3190 = vmatpush1.msra.mxu0 0.0
  %3191 = vmatprep.subr.mxu0 0.0
  %3192 = vmatpush1.msra.mxu0 0.0
  %3193 = vmatprep.subr.mxu0 0.0
  %3194 = vmatpush1.msra.mxu0 0.0
  %3195 = vmatprep.mubr.f32.mxu0 0.0
  %3196 = vmatmul.mubr.f32.gmra.mrb[0].mxu0 %v3129
  %v3197 = vpop.f32.mrb[0].mxu0
  %v3198 = vadd.f32 0.0, %v3197
  %v3199 = vpop.f32.mrb[0].mxu0
  %3200 = vdwg.mxu0
  %s3201 = scalar_lea.vmem %s9, 40
  %v3202 = vld [vmem:[%s3201] sm:$0xff]
  %v3204 = vsel %vm453, %v3198, 0
  %3206 = vmatprep.subr.mxu0 0.0
  %3207 = vmatpush1.msra.mxu0 %v3202
  %3208 = vmatprep.subr.mxu0 0.0
  %3209 = vmatpush1.msra.mxu0 0.0
  %3210 = vmatprep.subr.mxu0 0.0
  %3211 = vmatpush1.msra.mxu0 0.0
  %3212 = vmatprep.subr.mxu0 0.0
  %3213 = vmatpush1.msra.mxu0 0.0
  %3214 = vmatprep.subr.mxu0 0.0
  %3215 = vmatpush1.msra.mxu0 0.0
  %3216 = vmatprep.subr.mxu0 0.0
  %3217 = vmatpush1.msra.mxu0 0.0
  %3218 = vmatprep.subr.mxu0 0.0
  %3219 = vmatpush1.msra.mxu0 0.0
  %3220 = vmatprep.subr.mxu0 0.0
  %3221 = vmatpush1.msra.mxu0 0.0
  %3222 = vmatprep.subr.mxu0 0.0
  %3223 = vmatpush1.msra.mxu0 0.0
  %3224 = vmatprep.subr.mxu0 0.0
  %3225 = vmatpush1.msra.mxu0 0.0
  %3226 = vmatprep.subr.mxu0 0.0
  %3227 = vmatpush1.msra.mxu0 0.0
  %3228 = vmatprep.subr.mxu0 0.0
  %3229 = vmatpush1.msra.mxu0 0.0
  %3230 = vmatprep.subr.mxu0 0.0
  %3231 = vmatpush1.msra.mxu0 0.0
  %3232 = vmatprep.subr.mxu0 0.0
  %3233 = vmatpush1.msra.mxu0 0.0
  %3234 = vmatprep.subr.mxu0 0.0
  %3235 = vmatpush1.msra.mxu0 0.0
  %3236 = vmatprep.subr.mxu0 0.0
  %3237 = vmatpush1.msra.mxu0 0.0
  %3238 = vmatprep.subr.mxu0 0.0
  %3239 = vmatpush1.msra.mxu0 0.0
  %3240 = vmatprep.subr.mxu0 0.0
  %3241 = vmatpush1.msra.mxu0 0.0
  %3242 = vmatprep.subr.mxu0 0.0
  %3243 = vmatpush1.msra.mxu0 0.0
  %3244 = vmatprep.subr.mxu0 0.0
  %3245 = vmatpush1.msra.mxu0 0.0
  %3246 = vmatprep.subr.mxu0 0.0
  %3247 = vmatpush1.msra.mxu0 0.0
  %3248 = vmatprep.subr.mxu0 0.0
  %3249 = vmatpush1.msra.mxu0 0.0
  %3250 = vmatprep.subr.mxu0 0.0
  %3251 = vmatpush1.msra.mxu0 0.0
  %3252 = vmatprep.subr.mxu0 0.0
  %3253 = vmatpush1.msra.mxu0 0.0
  %3254 = vmatprep.subr.mxu0 0.0
  %3255 = vmatpush1.msra.mxu0 0.0
  %3256 = vmatprep.subr.mxu0 0.0
  %3257 = vmatpush1.msra.mxu0 0.0
  %3258 = vmatprep.subr.mxu0 0.0
  %3259 = vmatpush1.msra.mxu0 0.0
  %3260 = vmatprep.subr.mxu0 0.0
  %3261 = vmatpush1.msra.mxu0 0.0
  %3262 = vmatprep.subr.mxu0 0.0
  %3263 = vmatpush1.msra.mxu0 0.0
  %3264 = vmatprep.subr.mxu0 0.0
  %3265 = vmatpush1.msra.mxu0 0.0
  %3266 = vmatprep.subr.mxu0 0.0
  %3267 = vmatpush1.msra.mxu0 0.0
  %3268 = vmatprep.subr.mxu0 0.0
  %3269 = vmatpush1.msra.mxu0 0.0
  %3270 = vmatprep.mubr.f32.mxu0 0.0
  %3271 = vmatmul.mubr.f32.gmra.mrb[0].mxu0 %v3204
  %v3272 = vpop.f32.mrb[0].mxu0
  %v3273 = vadd.f32 0.0, %v3272
  %v3274 = vpop.f32.mrb[0].mxu0
  %3275 = vdwg.mxu0
  %v3277 = vsel %vm453, %v2787, 0
  %3279 = vmatprep.subr.mxu0 0.0
  %3280 = vmatpush1.msra.mxu0 %v2791
  %3281 = vmatprep.subr.mxu0 0.0
  %3282 = vmatpush1.msra.mxu0 0.0
  %3283 = vmatprep.subr.mxu0 0.0
  %3284 = vmatpush1.msra.mxu0 0.0
  %3285 = vmatprep.subr.mxu0 0.0
  %3286 = vmatpush1.msra.mxu0 0.0
  %3287 = vmatprep.subr.mxu0 0.0
  %3288 = vmatpush1.msra.mxu0 0.0
  %3289 = vmatprep.subr.mxu0 0.0
  %3290 = vmatpush1.msra.mxu0 0.0
  %3291 = vmatprep.subr.mxu0 0.0
  %3292 = vmatpush1.msra.mxu0 0.0
  %3293 = vmatprep.subr.mxu0 0.0
  %3294 = vmatpush1.msra.mxu0 0.0
  %3295 = vmatprep.subr.mxu0 0.0
  %3296 = vmatpush1.msra.mxu0 0.0
  %3297 = vmatprep.subr.mxu0 0.0
  %3298 = vmatpush1.msra.mxu0 0.0
  %3299 = vmatprep.subr.mxu0 0.0
  %3300 = vmatpush1.msra.mxu0 0.0
  %3301 = vmatprep.subr.mxu0 0.0
  %3302 = vmatpush1.msra.mxu0 0.0
  %3303 = vmatprep.subr.mxu0 0.0
  %3304 = vmatpush1.msra.mxu0 0.0
  %3305 = vmatprep.subr.mxu0 0.0
  %3306 = vmatpush1.msra.mxu0 0.0
  %3307 = vmatprep.subr.mxu0 0.0
  %3308 = vmatpush1.msra.mxu0 0.0
  %3309 = vmatprep.subr.mxu0 0.0
  %3310 = vmatpush1.msra.mxu0 0.0
  %3311 = vmatprep.subr.mxu0 0.0
  %3312 = vmatpush1.msra.mxu0 0.0
  %3313 = vmatprep.subr.mxu0 0.0
  %3314 = vmatpush1.msra.mxu0 0.0
  %3315 = vmatprep.subr.mxu0 0.0
  %3316 = vmatpush1.msra.mxu0 0.0
  %3317 = vmatprep.subr.mxu0 0.0
  %3318 = vmatpush1.msra.mxu0 0.0
  %3319 = vmatprep.subr.mxu0 0.0
  %3320 = vmatpush1.msra.mxu0 0.0
  %3321 = vmatprep.subr.mxu0 0.0
  %3322 = vmatpush1.msra.mxu0 0.0
  %3323 = vmatprep.subr.mxu0 0.0
  %3324 = vmatpush1.msra.mxu0 0.0
  %3325 = vmatprep.subr.mxu0 0.0
  %3326 = vmatpush1.msra.mxu0 0.0
  %3327 = vmatprep.subr.mxu0 0.0
  %3328 = vmatpush1.msra.mxu0 0.0
  %3329 = vmatprep.subr.mxu0 0.0
  %3330 = vmatpush1.msra.mxu0 0.0
  %3331 = vmatprep.subr.mxu0 0.0
  %3332 = vmatpush1.msra.mxu0 0.0
  %3333 = vmatprep.subr.mxu0 0.0
  %3334 = vmatpush1.msra.mxu0 0.0
  %3335 = vmatprep.subr.mxu0 0.0
  %3336 = vmatpush1.msra.mxu0 0.0
  %3337 = vmatprep.subr.mxu0 0.0
  %3338 = vmatpush1.msra.mxu0 0.0
  %3339 = vmatprep.subr.mxu0 0.0
  %3340 = vmatpush1.msra.mxu0 0.0
  %3341 = vmatprep.subr.mxu0 0.0
  %3342 = vmatpush1.msra.mxu0 0.0
  %3343 = vmatprep.mubr.f32.mxu0 0.0
  %3344 = vmatmul.mubr.f32.gmra.mrb[0].mxu0 %v3277
  %v3345 = vpop.f32.mrb[0].mxu0
  %v3346 = vadd.f32 %v3273, %v3345
  %v3347 = vpop.f32.mrb[0].mxu0
  %3348 = vdwg.mxu0
  %s3349 = scalar_lea.vmem %s7, 448
  %v3350 = vld [vmem:[%s3349] sm:$0xff]
  %v3351 = vld [vmem:[%s3349 + $0x8] sm:$0xff]
  %v3352 = vld [vmem:[%s3349 + $0x10] sm:$0xff]
  %v3353 = vld [vmem:[%s3349 + $0x18] sm:$0xff]
  %s3354 = scalar_lea.vmem %s8, 14
  %v3355 = vld [vmem:[%s3354] sm:$0x1]
  %v3357 = vlaneseq
  %v3358 = vshrl.u32 %v3357, 7
  %v3359 = vsub.s32 0, %v3358
  %v3360 = vrot.slane %v3355, %v3359
  %3362 = vmatprep.subr.mxu0 0.0
  %3363 = vmatpush1.msra.mxu0 %v3350
  %3364 = vmatprep.subr.mxu0 0.0
  %3365 = vmatpush1.msra.mxu0 %v3351
  %3366 = vmatprep.subr.mxu0 0.0
  %3367 = vmatpush1.msra.mxu0 %v3352
  %3368 = vmatprep.subr.mxu0 0.0
  %3369 = vmatpush1.msra.mxu0 %v3353
  %3370 = vmatprep.subr.mxu0 0.0
  %3371 = vmatpush1.msra.mxu0 0.0
  %3372 = vmatprep.subr.mxu0 0.0
  %3373 = vmatpush1.msra.mxu0 0.0
  %3374 = vmatprep.subr.mxu0 0.0
  %3375 = vmatpush1.msra.mxu0 0.0
  %3376 = vmatprep.subr.mxu0 0.0
  %3377 = vmatpush1.msra.mxu0 0.0
  %3378 = vmatprep.subr.mxu0 0.0
  %3379 = vmatpush1.msra.mxu0 0.0
  %3380 = vmatprep.subr.mxu0 0.0
  %3381 = vmatpush1.msra.mxu0 0.0
  %3382 = vmatprep.subr.mxu0 0.0
  %3383 = vmatpush1.msra.mxu0 0.0
  %3384 = vmatprep.subr.mxu0 0.0
  %3385 = vmatpush1.msra.mxu0 0.0
  %3386 = vmatprep.subr.mxu0 0.0
  %3387 = vmatpush1.msra.mxu0 0.0
  %3388 = vmatprep.subr.mxu0 0.0
  %3389 = vmatpush1.msra.mxu0 0.0
  %3390 = vmatprep.subr.mxu0 0.0
  %3391 = vmatpush1.msra.mxu0 0.0
  %3392 = vmatprep.subr.mxu0 0.0
  %3393 = vmatpush1.msra.mxu0 0.0
  %3394 = vmatprep.subr.mxu0 0.0
  %3395 = vmatpush1.msra.mxu0 0.0
  %3396 = vmatprep.subr.mxu0 0.0
  %3397 = vmatpush1.msra.mxu0 0.0
  %3398 = vmatprep.subr.mxu0 0.0
  %3399 = vmatpush1.msra.mxu0 0.0
  %3400 = vmatprep.subr.mxu0 0.0
  %3401 = vmatpush1.msra.mxu0 0.0
  %3402 = vmatprep.subr.mxu0 0.0
  %3403 = vmatpush1.msra.mxu0 0.0
  %3404 = vmatprep.subr.mxu0 0.0
  %3405 = vmatpush1.msra.mxu0 0.0
  %3406 = vmatprep.subr.mxu0 0.0
  %3407 = vmatpush1.msra.mxu0 0.0
  %3408 = vmatprep.subr.mxu0 0.0
  %3409 = vmatpush1.msra.mxu0 0.0
  %3410 = vmatprep.subr.mxu0 0.0
  %3411 = vmatpush1.msra.mxu0 0.0
  %3412 = vmatprep.subr.mxu0 0.0
  %3413 = vmatpush1.msra.mxu0 0.0
  %3414 = vmatprep.subr.mxu0 0.0
  %3415 = vmatpush1.msra.mxu0 0.0
  %3416 = vmatprep.subr.mxu0 0.0
  %3417 = vmatpush1.msra.mxu0 0.0
  %3418 = vmatprep.subr.mxu0 0.0
  %3419 = vmatpush1.msra.mxu0 0.0
  %3420 = vmatprep.subr.mxu0 0.0
  %3421 = vmatpush1.msra.mxu0 0.0
  %3422 = vmatprep.subr.mxu0 0.0
  %3423 = vmatpush1.msra.mxu0 0.0
  %3424 = vmatprep.subr.mxu0 0.0
  %3425 = vmatpush1.msra.mxu0 0.0
  %3426 = vmatprep.mubr.f32.mxu0 0.0
  %3427 = vmatmul.mubr.f32.gmra.mrb[0].mxu0 %v2392
  %v3428 = vpop.f32.mrb[0].mxu0
  %v3429 = vadd.f32 %v3360, %v3428
  %v3430 = vpop.f32.mrb[0].mxu0
  %3431 = vdwg.mxu0
  %s3432 = scalar_lea.vmem %s7, 576
  %v3433 = vld [vmem:[%s3432] sm:$0xff]
  %v3434 = vld [vmem:[%s3432 + $0x8] sm:$0xff]
  %v3435 = vld [vmem:[%s3432 + $0x10] sm:$0xff]
  %v3436 = vld [vmem:[%s3432 + $0x18] sm:$0xff]
  %s3437 = scalar_lea.vmem %s8, 18
  %v3438 = vld [vmem:[%s3437] sm:$0x1]
  %v3440 = vlaneseq
  %v3441 = vshrl.u32 %v3440, 7
  %v3442 = vsub.s32 0, %v3441
  %v3443 = vrot.slane %v3438, %v3442
  %3445 = vmatprep.subr.mxu0 0.0
  %3446 = vmatpush1.msra.mxu0 %v3433
  %3447 = vmatprep.subr.mxu0 0.0
  %3448 = vmatpush1.msra.mxu0 %v3434
  %3449 = vmatprep.subr.mxu0 0.0
  %3450 = vmatpush1.msra.mxu0 %v3435
  %3451 = vmatprep.subr.mxu0 0.0
  %3452 = vmatpush1.msra.mxu0 %v3436
  %3453 = vmatprep.subr.mxu0 0.0
  %3454 = vmatpush1.msra.mxu0 0.0
  %3455 = vmatprep.subr.mxu0 0.0
  %3456 = vmatpush1.msra.mxu0 0.0
  %3457 = vmatprep.subr.mxu0 0.0
  %3458 = vmatpush1.msra.mxu0 0.0
  %3459 = vmatprep.subr.mxu0 0.0
  %3460 = vmatpush1.msra.mxu0 0.0
  %3461 = vmatprep.subr.mxu0 0.0
  %3462 = vmatpush1.msra.mxu0 0.0
  %3463 = vmatprep.subr.mxu0 0.0
  %3464 = vmatpush1.msra.mxu0 0.0
  %3465 = vmatprep.subr.mxu0 0.0
  %3466 = vmatpush1.msra.mxu0 0.0
  %3467 = vmatprep.subr.mxu0 0.0
  %3468 = vmatpush1.msra.mxu0 0.0
  %3469 = vmatprep.subr.mxu0 0.0
  %3470 = vmatpush1.msra.mxu0 0.0
  %3471 = vmatprep.subr.mxu0 0.0
  %3472 = vmatpush1.msra.mxu0 0.0
  %3473 = vmatprep.subr.mxu0 0.0
  %3474 = vmatpush1.msra.mxu0 0.0
  %3475 = vmatprep.subr.mxu0 0.0
  %3476 = vmatpush1.msra.mxu0 0.0
  %3477 = vmatprep.subr.mxu0 0.0
  %3478 = vmatpush1.msra.mxu0 0.0
  %3479 = vmatprep.subr.mxu0 0.0
  %3480 = vmatpush1.msra.mxu0 0.0
  %3481 = vmatprep.subr.mxu0 0.0
  %3482 = vmatpush1.msra.mxu0 0.0
  %3483 = vmatprep.subr.mxu0 0.0
  %3484 = vmatpush1.msra.mxu0 0.0
  %3485 = vmatprep.subr.mxu0 0.0
  %3486 = vmatpush1.msra.mxu0 0.0
  %3487 = vmatprep.subr.mxu0 0.0
  %3488 = vmatpush1.msra.mxu0 0.0
  %3489 = vmatprep.subr.mxu0 0.0
  %3490 = vmatpush1.msra.mxu0 0.0
  %3491 = vmatprep.subr.mxu0 0.0
  %3492 = vmatpush1.msra.mxu0 0.0
  %3493 = vmatprep.subr.mxu0 0.0
  %3494 = vmatpush1.msra.mxu0 0.0
  %3495 = vmatprep.subr.mxu0 0.0
  %3496 = vmatpush1.msra.mxu0 0.0
  %3497 = vmatprep.subr.mxu0 0.0
  %3498 = vmatpush1.msra.mxu0 0.0
  %3499 = vmatprep.subr.mxu0 0.0
  %3500 = vmatpush1.msra.mxu0 0.0
  %3501 = vmatprep.subr.mxu0 0.0
  %3502 = vmatpush1.msra.mxu0 0.0
  %3503 = vmatprep.subr.mxu0 0.0
  %3504 = vmatpush1.msra.mxu0 0.0
  %3505 = vmatprep.subr.mxu0 0.0
  %3506 = vmatpush1.msra.mxu0 0.0
  %3507 = vmatprep.subr.mxu0 0.0
  %3508 = vmatpush1.msra.mxu0 0.0
  %3509 = vmatprep.mubr.f32.mxu0 0.0
  %3510 = vmatmul.mubr.f32.gmra.mrb[0].mxu0 %v2392
  %v3511 = vpop.f32.mrb[0].mxu0
  %v3512 = vadd.f32 %v3443, %v3511
  %v3513 = vpop.f32.mrb[0].mxu0
  %3514 = vdwg.mxu0
  %s3515 = scalar_lea.vmem %s7, 704
  %v3516 = vld [vmem:[%s3515] sm:$0xff]
  %v3517 = vld [vmem:[%s3515 + $0x8] sm:$0xff]
  %v3518 = vld [vmem:[%s3515 + $0x10] sm:$0xff]
  %v3519 = vld [vmem:[%s3515 + $0x18] sm:$0xff]
  %s3520 = scalar_lea.vmem %s8, 22
  %v3521 = vld [vmem:[%s3520] sm:$0x1]
  %v3523 = vlaneseq
  %v3524 = vshrl.u32 %v3523, 7
  %v3525 = vsub.s32 0, %v3524
  %v3526 = vrot.slane %v3521, %v3525
  %3528 = vmatprep.subr.mxu0 0.0
  %3529 = vmatpush1.msra.mxu0 %v3516
  %3530 = vmatprep.subr.mxu0 0.0
  %3531 = vmatpush1.msra.mxu0 %v3517
  %3532 = vmatprep.subr.mxu0 0.0
  %3533 = vmatpush1.msra.mxu0 %v3518
  %3534 = vmatprep.subr.mxu0 0.0
  %3535 = vmatpush1.msra.mxu0 %v3519
  %3536 = vmatprep.subr.mxu0 0.0
  %3537 = vmatpush1.msra.mxu0 0.0
  %3538 = vmatprep.subr.mxu0 0.0
  %3539 = vmatpush1.msra.mxu0 0.0
  %3540 = vmatprep.subr.mxu0 0.0
  %3541 = vmatpush1.msra.mxu0 0.0
  %3542 = vmatprep.subr.mxu0 0.0
  %3543 = vmatpush1.msra.mxu0 0.0
  %3544 = vmatprep.subr.mxu0 0.0
  %3545 = vmatpush1.msra.mxu0 0.0
  %3546 = vmatprep.subr.mxu0 0.0
  %3547 = vmatpush1.msra.mxu0 0.0
  %3548 = vmatprep.subr.mxu0 0.0
  %3549 = vmatpush1.msra.mxu0 0.0
  %3550 = vmatprep.subr.mxu0 0.0
  %3551 = vmatpush1.msra.mxu0 0.0
  %3552 = vmatprep.subr.mxu0 0.0
  %3553 = vmatpush1.msra.mxu0 0.0
  %3554 = vmatprep.subr.mxu0 0.0
  %3555 = vmatpush1.msra.mxu0 0.0
  %3556 = vmatprep.subr.mxu0 0.0
  %3557 = vmatpush1.msra.mxu0 0.0
  %3558 = vmatprep.subr.mxu0 0.0
  %3559 = vmatpush1.msra.mxu0 0.0
  %3560 = vmatprep.subr.mxu0 0.0
  %3561 = vmatpush1.msra.mxu0 0.0
  %3562 = vmatprep.subr.mxu0 0.0
  %3563 = vmatpush1.msra.mxu0 0.0
  %3564 = vmatprep.subr.mxu0 0.0
  %3565 = vmatpush1.msra.mxu0 0.0
  %3566 = vmatprep.subr.mxu0 0.0
  %3567 = vmatpush1.msra.mxu0 0.0
  %3568 = vmatprep.subr.mxu0 0.0
  %3569 = vmatpush1.msra.mxu0 0.0
  %3570 = vmatprep.subr.mxu0 0.0
  %3571 = vmatpush1.msra.mxu0 0.0
  %3572 = vmatprep.subr.mxu0 0.0
  %3573 = vmatpush1.msra.mxu0 0.0
  %3574 = vmatprep.subr.mxu0 0.0
  %3575 = vmatpush1.msra.mxu0 0.0
  %3576 = vmatprep.subr.mxu0 0.0
  %3577 = vmatpush1.msra.mxu0 0.0
  %3578 = vmatprep.subr.mxu0 0.0
  %3579 = vmatpush1.msra.mxu0 0.0
  %3580 = vmatprep.subr.mxu0 0.0
  %3581 = vmatpush1.msra.mxu0 0.0
  %3582 = vmatprep.subr.mxu0 0.0
  %3583 = vmatpush1.msra.mxu0 0.0
  %3584 = vmatprep.subr.mxu0 0.0
  %3585 = vmatpush1.msra.mxu0 0.0
  %3586 = vmatprep.subr.mxu0 0.0
  %3587 = vmatpush1.msra.mxu0 0.0
  %3588 = vmatprep.subr.mxu0 0.0
  %3589 = vmatpush1.msra.mxu0 0.0
  %3590 = vmatprep.subr.mxu0 0.0
  %3591 = vmatpush1.msra.mxu0 0.0
  %3592 = vmatprep.mubr.f32.mxu0 0.0
  %3593 = vmatmul.mubr.f32.gmra.mrb[0].mxu0 %v2392
  %v3594 = vpop.f32.mrb[0].mxu0
  %v3595 = vadd.f32 %v3526, %v3594
  %v3596 = vpop.f32.mrb[0].mxu0
  %3597 = vdwg.mxu0
  %v3599 = vsel %vm453, %v3429, 0
  %v3602 = vsel %vm453, %v3512, 0
  %3604 = vmatprep.subr.mxu0 0.0
  %3605 = vmatpush1.xpose.msra.mxu0 %v3602
  %3606 = vmatprep.subr.mxu0 0.0
  %3607 = vmatpush1.xpose.msra.mxu0 0.0
  %3608 = vmatprep.subr.mxu0 0.0
  %3609 = vmatpush1.xpose.msra.mxu0 0.0
  %3610 = vmatprep.subr.mxu0 0.0
  %3611 = vmatpush1.xpose.msra.mxu0 0.0
  %3612 = vmatprep.subr.mxu0 0.0
  %3613 = vmatpush1.xpose.msra.mxu0 0.0
  %3614 = vmatprep.subr.mxu0 0.0
  %3615 = vmatpush1.xpose.msra.mxu0 0.0
  %3616 = vmatprep.subr.mxu0 0.0
  %3617 = vmatpush1.xpose.msra.mxu0 0.0
  %3618 = vmatprep.subr.mxu0 0.0
  %3619 = vmatpush1.xpose.msra.mxu0 0.0
  %3620 = vmatprep.subr.mxu0 0.0
  %3621 = vmatpush1.xpose.msra.mxu0 0.0
  %3622 = vmatprep.subr.mxu0 0.0
  %3623 = vmatpush1.xpose.msra.mxu0 0.0
  %3624 = vmatprep.subr.mxu0 0.0
  %3625 = vmatpush1.xpose.msra.mxu0 0.0
  %3626 = vmatprep.subr.mxu0 0.0
  %3627 = vmatpush1.xpose.msra.mxu0 0.0
  %3628 = vmatprep.subr.mxu0 0.0
  %3629 = vmatpush1.xpose.msra.mxu0 0.0
  %3630 = vmatprep.subr.mxu0 0.0
  %3631 = vmatpush1.xpose.msra.mxu0 0.0
  %3632 = vmatprep.subr.mxu0 0.0
  %3633 = vmatpush1.xpose.msra.mxu0 0.0
  %3634 = vmatprep.subr.mxu0 0.0
  %3635 = vmatpush1.xpose.msra.mxu0 0.0
  %3636 = vmatprep.subr.mxu0 0.0
  %3637 = vmatpush1.xpose.msra.mxu0 0.0
  %3638 = vmatprep.subr.mxu0 0.0
  %3639 = vmatpush1.xpose.msra.mxu0 0.0
  %3640 = vmatprep.subr.mxu0 0.0
  %3641 = vmatpush1.xpose.msra.mxu0 0.0
  %3642 = vmatprep.subr.mxu0 0.0
  %3643 = vmatpush1.xpose.msra.mxu0 0.0
  %3644 = vmatprep.subr.mxu0 0.0
  %3645 = vmatpush1.xpose.msra.mxu0 0.0
  %3646 = vmatprep.subr.mxu0 0.0
  %3647 = vmatpush1.xpose.msra.mxu0 0.0
  %3648 = vmatprep.subr.mxu0 0.0
  %3649 = vmatpush1.xpose.msra.mxu0 0.0
  %3650 = vmatprep.subr.mxu0 0.0
  %3651 = vmatpush1.xpose.msra.mxu0 0.0
  %3652 = vmatprep.subr.mxu0 0.0
  %3653 = vmatpush1.xpose.msra.mxu0 0.0
  %3654 = vmatprep.subr.mxu0 0.0
  %3655 = vmatpush1.xpose.msra.mxu0 0.0
  %3656 = vmatprep.subr.mxu0 0.0
  %3657 = vmatpush1.xpose.msra.mxu0 0.0
  %3658 = vmatprep.subr.mxu0 0.0
  %3659 = vmatpush1.xpose.msra.mxu0 0.0
  %3660 = vmatprep.subr.mxu0 0.0
  %3661 = vmatpush1.xpose.msra.mxu0 0.0
  %3662 = vmatprep.subr.mxu0 0.0
  %3663 = vmatpush1.xpose.msra.mxu0 0.0
  %3664 = vmatprep.subr.mxu0 0.0
  %3665 = vmatpush1.xpose.msra.mxu0 0.0
  %3666 = vmatprep.subr.mxu0 0.0
  %3667 = vmatpush1.xpose.msra.mxu0 0.0
  %3668 = vmatprep.mubr.f32.mxu0 0.0
  %3669 = vmatmul.mubr.f32.gmra.mrb[0].mxu0 %v3599
  %v3670 = vpop.f32.mrb[0].mxu0
  %v3671 = vadd.f32 %v451, %v3670
  %v3672 = vpop.f32.mrb[0].mxu0
  %3673 = vdwg.mxu0
  %v3674 = vsel %vm453, %v3671, -inf
  %3675 = vmax.xlane.f32.xlu0 %v3674
  %v3676 = vpop.xlane.xlu0 %3675
  %v3677 = vsub.f32 %v3671, %v3676
  %v3678 = vmul.f32 %v3677, 1.442695
  %v3679 = vpow.pop %v3678
  %v3680 = vsel %vm453, %v3679, 0.0
  %3681 = vadd.xlane.f32.xlu0 %v3680
  %v3682 = vpop.xlane.xlu0 %3681
  %v3683 = vrcp.pop %v3682
  %v3684 = vmul.f32 %v3679, %v3683
  %v3686 = vsel %vm453, %v3684, 0
  %3688 = vmatprep.subr.mxu0 0.0
  %3689 = vmatpush1.msra.mxu0 %v3595
  %3690 = vmatprep.subr.mxu0 0.0
  %3691 = vmatpush1.msra.mxu0 0.0
  %3692 = vmatprep.subr.mxu0 0.0
  %3693 = vmatpush1.msra.mxu0 0.0
  %3694 = vmatprep.subr.mxu0 0.0
  %3695 = vmatpush1.msra.mxu0 0.0
  %3696 = vmatprep.subr.mxu0 0.0
  %3697 = vmatpush1.msra.mxu0 0.0
  %3698 = vmatprep.subr.mxu0 0.0
  %3699 = vmatpush1.msra.mxu0 0.0
  %3700 = vmatprep.subr.mxu0 0.0
  %3701 = vmatpush1.msra.mxu0 0.0
  %3702 = vmatprep.subr.mxu0 0.0
  %3703 = vmatpush1.msra.mxu0 0.0
  %3704 = vmatprep.subr.mxu0 0.0
  %3705 = vmatpush1.msra.mxu0 0.0
  %3706 = vmatprep.subr.mxu0 0.0
  %3707 = vmatpush1.msra.mxu0 0.0
  %3708 = vmatprep.subr.mxu0 0.0
  %3709 = vmatpush1.msra.mxu0 0.0
  %3710 = vmatprep.subr.mxu0 0.0
  %3711 = vmatpush1.msra.mxu0 0.0
  %3712 = vmatprep.subr.mxu0 0.0
  %3713 = vmatpush1.msra.mxu0 0.0
  %3714 = vmatprep.subr.mxu0 0.0
  %3715 = vmatpush1.msra.mxu0 0.0
  %3716 = vmatprep.subr.mxu0 0.0
  %3717 = vmatpush1.msra.mxu0 0.0
  %3718 = vmatprep.subr.mxu0 0.0
  %3719 = vmatpush1.msra.mxu0 0.0
  %3720 = vmatprep.subr.mxu0 0.0
  %3721 = vmatpush1.msra.mxu0 0.0
  %3722 = vmatprep.subr.mxu0 0.0
  %3723 = vmatpush1.msra.mxu0 0.0
  %3724 = vmatprep.subr.mxu0 0.0
  %3725 = vmatpush1.msra.mxu0 0.0
  %3726 = vmatprep.subr.mxu0 0.0
  %3727 = vmatpush1.msra.mxu0 0.0
  %3728 = vmatprep.subr.mxu0 0.0
  %3729 = vmatpush1.msra.mxu0 0.0
  %3730 = vmatprep.subr.mxu0 0.0
  %3731 = vmatpush1.msra.mxu0 0.0
  %3732 = vmatprep.subr.mxu0 0.0
  %3733 = vmatpush1.msra.mxu0 0.0
  %3734 = vmatprep.subr.mxu0 0.0
  %3735 = vmatpush1.msra.mxu0 0.0
  %3736 = vmatprep.subr.mxu0 0.0
  %3737 = vmatpush1.msra.mxu0 0.0
  %3738 = vmatprep.subr.mxu0 0.0
  %3739 = vmatpush1.msra.mxu0 0.0
  %3740 = vmatprep.subr.mxu0 0.0
  %3741 = vmatpush1.msra.mxu0 0.0
  %3742 = vmatprep.subr.mxu0 0.0
  %3743 = vmatpush1.msra.mxu0 0.0
  %3744 = vmatprep.subr.mxu0 0.0
  %3745 = vmatpush1.msra.mxu0 0.0
  %3746 = vmatprep.subr.mxu0 0.0
  %3747 = vmatpush1.msra.mxu0 0.0
  %3748 = vmatprep.subr.mxu0 0.0
  %3749 = vmatpush1.msra.mxu0 0.0
  %3750 = vmatprep.subr.mxu0 0.0
  %3751 = vmatpush1.msra.mxu0 0.0
  %3752 = vmatprep.mubr.f32.mxu0 0.0
  %3753 = vmatmul.mubr.f32.gmra.mrb[0].mxu0 %v3686
  %v3754 = vpop.f32.mrb[0].mxu0
  %v3755 = vadd.f32 0.0, %v3754
  %v3756 = vpop.f32.mrb[0].mxu0
  %3757 = vdwg.mxu0
  %s3758 = scalar_lea.vmem %s9, 48
  %v3759 = vld [vmem:[%s3758] sm:$0xff]
  %v3761 = vsel %vm453, %v3755, 0
  %3763 = vmatprep.subr.mxu0 0.0
  %3764 = vmatpush1.msra.mxu0 %v3759
  %3765 = vmatprep.subr.mxu0 0.0
  %3766 = vmatpush1.msra.mxu0 0.0
  %3767 = vmatprep.subr.mxu0 0.0
  %3768 = vmatpush1.msra.mxu0 0.0
  %3769 = vmatprep.subr.mxu0 0.0
  %3770 = vmatpush1.msra.mxu0 0.0
  %3771 = vmatprep.subr.mxu0 0.0
  %3772 = vmatpush1.msra.mxu0 0.0
  %3773 = vmatprep.subr.mxu0 0.0
  %3774 = vmatpush1.msra.mxu0 0.0
  %3775 = vmatprep.subr.mxu0 0.0
  %3776 = vmatpush1.msra.mxu0 0.0
  %3777 = vmatprep.subr.mxu0 0.0
  %3778 = vmatpush1.msra.mxu0 0.0
  %3779 = vmatprep.subr.mxu0 0.0
  %3780 = vmatpush1.msra.mxu0 0.0
  %3781 = vmatprep.subr.mxu0 0.0
  %3782 = vmatpush1.msra.mxu0 0.0
  %3783 = vmatprep.subr.mxu0 0.0
  %3784 = vmatpush1.msra.mxu0 0.0
  %3785 = vmatprep.subr.mxu0 0.0
  %3786 = vmatpush1.msra.mxu0 0.0
  %3787 = vmatprep.subr.mxu0 0.0
  %3788 = vmatpush1.msra.mxu0 0.0
  %3789 = vmatprep.subr.mxu0 0.0
  %3790 = vmatpush1.msra.mxu0 0.0
  %3791 = vmatprep.subr.mxu0 0.0
  %3792 = vmatpush1.msra.mxu0 0.0
  %3793 = vmatprep.subr.mxu0 0.0
  %3794 = vmatpush1.msra.mxu0 0.0
  %3795 = vmatprep.subr.mxu0 0.0
  %3796 = vmatpush1.msra.mxu0 0.0
  %3797 = vmatprep.subr.mxu0 0.0
  %3798 = vmatpush1.msra.mxu0 0.0
  %3799 = vmatprep.subr.mxu0 0.0
  %3800 = vmatpush1.msra.mxu0 0.0
  %3801 = vmatprep.subr.mxu0 0.0
  %3802 = vmatpush1.msra.mxu0 0.0
  %3803 = vmatprep.subr.mxu0 0.0
  %3804 = vmatpush1.msra.mxu0 0.0
  %3805 = vmatprep.subr.mxu0 0.0
  %3806 = vmatpush1.msra.mxu0 0.0
  %3807 = vmatprep.subr.mxu0 0.0
  %3808 = vmatpush1.msra.mxu0 0.0
  %3809 = vmatprep.subr.mxu0 0.0
  %3810 = vmatpush1.msra.mxu0 0.0
  %3811 = vmatprep.subr.mxu0 0.0
  %3812 = vmatpush1.msra.mxu0 0.0
  %3813 = vmatprep.subr.mxu0 0.0
  %3814 = vmatpush1.msra.mxu0 0.0
  %3815 = vmatprep.subr.mxu0 0.0
  %3816 = vmatpush1.msra.mxu0 0.0
  %3817 = vmatprep.subr.mxu0 0.0
  %3818 = vmatpush1.msra.mxu0 0.0
  %3819 = vmatprep.subr.mxu0 0.0
  %3820 = vmatpush1.msra.mxu0 0.0
  %3821 = vmatprep.subr.mxu0 0.0
  %3822 = vmatpush1.msra.mxu0 0.0
  %3823 = vmatprep.subr.mxu0 0.0
  %3824 = vmatpush1.msra.mxu0 0.0
  %3825 = vmatprep.subr.mxu0 0.0
  %3826 = vmatpush1.msra.mxu0 0.0
  %3827 = vmatprep.mubr.f32.mxu0 0.0
  %3828 = vmatmul.mubr.f32.gmra.mrb[0].mxu0 %v3761
  %v3829 = vpop.f32.mrb[0].mxu0
  %v3830 = vadd.f32 0.0, %v3829
  %v3831 = vpop.f32.mrb[0].mxu0
  %3832 = vdwg.mxu0
  %v3833 = vadd.f32 %v3346, %v3830
  %s3834 = scalar_lea.vmem %s7, 480
  %v3835 = vld [vmem:[%s3834] sm:$0xff]
  %v3836 = vld [vmem:[%s3834 + $0x8] sm:$0xff]
  %v3837 = vld [vmem:[%s3834 + $0x10] sm:$0xff]
  %v3838 = vld [vmem:[%s3834 + $0x18] sm:$0xff]
  %s3839 = scalar_lea.vmem %s8, 15
  %v3840 = vld [vmem:[%s3839] sm:$0x1]
  %v3842 = vlaneseq
  %v3843 = vshrl.u32 %v3842, 7
  %v3844 = vsub.s32 0, %v3843
  %v3845 = vrot.slane %v3840, %v3844
  %3847 = vmatprep.subr.mxu0 0.0
  %3848 = vmatpush1.msra.mxu0 %v3835
  %3849 = vmatprep.subr.mxu0 0.0
  %3850 = vmatpush1.msra.mxu0 %v3836
  %3851 = vmatprep.subr.mxu0 0.0
  %3852 = vmatpush1.msra.mxu0 %v3837
  %3853 = vmatprep.subr.mxu0 0.0
  %3854 = vmatpush1.msra.mxu0 %v3838
  %3855 = vmatprep.subr.mxu0 0.0
  %3856 = vmatpush1.msra.mxu0 0.0
  %3857 = vmatprep.subr.mxu0 0.0
  %3858 = vmatpush1.msra.mxu0 0.0
  %3859 = vmatprep.subr.mxu0 0.0
  %3860 = vmatpush1.msra.mxu0 0.0
  %3861 = vmatprep.subr.mxu0 0.0
  %3862 = vmatpush1.msra.mxu0 0.0
  %3863 = vmatprep.subr.mxu0 0.0
  %3864 = vmatpush1.msra.mxu0 0.0
  %3865 = vmatprep.subr.mxu0 0.0
  %3866 = vmatpush1.msra.mxu0 0.0
  %3867 = vmatprep.subr.mxu0 0.0
  %3868 = vmatpush1.msra.mxu0 0.0
  %3869 = vmatprep.subr.mxu0 0.0
  %3870 = vmatpush1.msra.mxu0 0.0
  %3871 = vmatprep.subr.mxu0 0.0
  %3872 = vmatpush1.msra.mxu0 0.0
  %3873 = vmatprep.subr.mxu0 0.0
  %3874 = vmatpush1.msra.mxu0 0.0
  %3875 = vmatprep.subr.mxu0 0.0
  %3876 = vmatpush1.msra.mxu0 0.0
  %3877 = vmatprep.subr.mxu0 0.0
  %3878 = vmatpush1.msra.mxu0 0.0
  %3879 = vmatprep.subr.mxu0 0.0
  %3880 = vmatpush1.msra.mxu0 0.0
  %3881 = vmatprep.subr.mxu0 0.0
  %3882 = vmatpush1.msra.mxu0 0.0
  %3883 = vmatprep.subr.mxu0 0.0
  %3884 = vmatpush1.msra.mxu0 0.0
  %3885 = vmatprep.subr.mxu0 0.0
  %3886 = vmatpush1.msra.mxu0 0.0
  %3887 = vmatprep.subr.mxu0 0.0
  %3888 = vmatpush1.msra.mxu0 0.0
  %3889 = vmatprep.subr.mxu0 0.0
  %3890 = vmatpush1.msra.mxu0 0.0
  %3891 = vmatprep.subr.mxu0 0.0
  %3892 = vmatpush1.msra.mxu0 0.0
  %3893 = vmatprep.subr.mxu0 0.0
  %3894 = vmatpush1.msra.mxu0 0.0
  %3895 = vmatprep.subr.mxu0 0.0
  %3896 = vmatpush1.msra.mxu0 0.0
  %3897 = vmatprep.subr.mxu0 0.0
  %3898 = vmatpush1.msra.mxu0 0.0
  %3899 = vmatprep.subr.mxu0 0.0
  %3900 = vmatpush1.msra.mxu0 0.0
  %3901 = vmatprep.subr.mxu0 0.0
  %3902 = vmatpush1.msra.mxu0 0.0
  %3903 = vmatprep.subr.mxu0 0.0
  %3904 = vmatpush1.msra.mxu0 0.0
  %3905 = vmatprep.subr.mxu0 0.0
  %3906 = vmatpush1.msra.mxu0 0.0
  %3907 = vmatprep.subr.mxu0 0.0
  %3908 = vmatpush1.msra.mxu0 0.0
  %3909 = vmatprep.subr.mxu0 0.0
  %3910 = vmatpush1.msra.mxu0 0.0
  %3911 = vmatprep.mubr.f32.mxu0 0.0
  %3912 = vmatmul.mubr.f32.gmra.mrb[0].mxu0 %v2392
  %v3913 = vpop.f32.mrb[0].mxu0
  %v3914 = vadd.f32 %v3845, %v3913
  %v3915 = vpop.f32.mrb[0].mxu0
  %3916 = vdwg.mxu0
  %s3917 = scalar_lea.vmem %s7, 608
  %v3918 = vld [vmem:[%s3917] sm:$0xff]
  %v3919 = vld [vmem:[%s3917 + $0x8] sm:$0xff]
  %v3920 = vld [vmem:[%s3917 + $0x10] sm:$0xff]
  %v3921 = vld [vmem:[%s3917 + $0x18] sm:$0xff]
  %s3922 = scalar_lea.vmem %s8, 19
  %v3923 = vld [vmem:[%s3922] sm:$0x1]
  %v3925 = vlaneseq
  %v3926 = vshrl.u32 %v3925, 7
  %v3927 = vsub.s32 0, %v3926
  %v3928 = vrot.slane %v3923, %v3927
  %3930 = vmatprep.subr.mxu0 0.0
  %3931 = vmatpush1.msra.mxu0 %v3918
  %3932 = vmatprep.subr.mxu0 0.0
  %3933 = vmatpush1.msra.mxu0 %v3919
  %3934 = vmatprep.subr.mxu0 0.0
  %3935 = vmatpush1.msra.mxu0 %v3920
  %3936 = vmatprep.subr.mxu0 0.0
  %3937 = vmatpush1.msra.mxu0 %v3921
  %3938 = vmatprep.subr.mxu0 0.0
  %3939 = vmatpush1.msra.mxu0 0.0
  %3940 = vmatprep.subr.mxu0 0.0
  %3941 = vmatpush1.msra.mxu0 0.0
  %3942 = vmatprep.subr.mxu0 0.0
  %3943 = vmatpush1.msra.mxu0 0.0
  %3944 = vmatprep.subr.mxu0 0.0
  %3945 = vmatpush1.msra.mxu0 0.0
  %3946 = vmatprep.subr.mxu0 0.0
  %3947 = vmatpush1.msra.mxu0 0.0
  %3948 = vmatprep.subr.mxu0 0.0
  %3949 = vmatpush1.msra.mxu0 0.0
  %3950 = vmatprep.subr.mxu0 0.0
  %3951 = vmatpush1.msra.mxu0 0.0
  %3952 = vmatprep.subr.mxu0 0.0
  %3953 = vmatpush1.msra.mxu0 0.0
  %3954 = vmatprep.subr.mxu0 0.0
  %3955 = vmatpush1.msra.mxu0 0.0
  %3956 = vmatprep.subr.mxu0 0.0
  %3957 = vmatpush1.msra.mxu0 0.0
  %3958 = vmatprep.subr.mxu0 0.0
  %3959 = vmatpush1.msra.mxu0 0.0
  %3960 = vmatprep.subr.mxu0 0.0
  %3961 = vmatpush1.msra.mxu0 0.0
  %3962 = vmatprep.subr.mxu0 0.0
  %3963 = vmatpush1.msra.mxu0 0.0
  %3964 = vmatprep.subr.mxu0 0.0
  %3965 = vmatpush1.msra.mxu0 0.0
  %3966 = vmatprep.subr.mxu0 0.0
  %3967 = vmatpush1.msra.mxu0 0.0
  %3968 = vmatprep.subr.mxu0 0.0
  %3969 = vmatpush1.msra.mxu0 0.0
  %3970 = vmatprep.subr.mxu0 0.0
  %3971 = vmatpush1.msra.mxu0 0.0
  %3972 = vmatprep.subr.mxu0 0.0
  %3973 = vmatpush1.msra.mxu0 0.0
  %3974 = vmatprep.subr.mxu0 0.0
  %3975 = vmatpush1.msra.mxu0 0.0
  %3976 = vmatprep.subr.mxu0 0.0
  %3977 = vmatpush1.msra.mxu0 0.0
  %3978 = vmatprep.subr.mxu0 0.0
  %3979 = vmatpush1.msra.mxu0 0.0
  %3980 = vmatprep.subr.mxu0 0.0
  %3981 = vmatpush1.msra.mxu0 0.0
  %3982 = vmatprep.subr.mxu0 0.0
  %3983 = vmatpush1.msra.mxu0 0.0
  %3984 = vmatprep.subr.mxu0 0.0
  %3985 = vmatpush1.msra.mxu0 0.0
  %3986 = vmatprep.subr.mxu0 0.0
  %3987 = vmatpush1.msra.mxu0 0.0
  %3988 = vmatprep.subr.mxu0 0.0
  %3989 = vmatpush1.msra.mxu0 0.0
  %3990 = vmatprep.subr.mxu0 0.0
  %3991 = vmatpush1.msra.mxu0 0.0
  %3992 = vmatprep.subr.mxu0 0.0
  %3993 = vmatpush1.msra.mxu0 0.0
  %3994 = vmatprep.mubr.f32.mxu0 0.0
  %3995 = vmatmul.mubr.f32.gmra.mrb[0].mxu0 %v2392
  %v3996 = vpop.f32.mrb[0].mxu0
  %v3997 = vadd.f32 %v3928, %v3996
  %v3998 = vpop.f32.mrb[0].mxu0
  %3999 = vdwg.mxu0
  %s4000 = scalar_lea.vmem %s7, 736
  %v4001 = vld [vmem:[%s4000] sm:$0xff]
  %v4002 = vld [vmem:[%s4000 + $0x8] sm:$0xff]
  %v4003 = vld [vmem:[%s4000 + $0x10] sm:$0xff]
  %v4004 = vld [vmem:[%s4000 + $0x18] sm:$0xff]
  %s4005 = scalar_lea.vmem %s8, 23
  %v4006 = vld [vmem:[%s4005] sm:$0x1]
  %v4008 = vlaneseq
  %v4009 = vshrl.u32 %v4008, 7
  %v4010 = vsub.s32 0, %v4009
  %v4011 = vrot.slane %v4006, %v4010
  %4013 = vmatprep.subr.mxu0 0.0
  %4014 = vmatpush1.msra.mxu0 %v4001
  %4015 = vmatprep.subr.mxu0 0.0
  %4016 = vmatpush1.msra.mxu0 %v4002
  %4017 = vmatprep.subr.mxu0 0.0
  %4018 = vmatpush1.msra.mxu0 %v4003
  %4019 = vmatprep.subr.mxu0 0.0
  %4020 = vmatpush1.msra.mxu0 %v4004
  %4021 = vmatprep.subr.mxu0 0.0
  %4022 = vmatpush1.msra.mxu0 0.0
  %4023 = vmatprep.subr.mxu0 0.0
  %4024 = vmatpush1.msra.mxu0 0.0
  %4025 = vmatprep.subr.mxu0 0.0
  %4026 = vmatpush1.msra.mxu0 0.0
  %4027 = vmatprep.subr.mxu0 0.0
  %4028 = vmatpush1.msra.mxu0 0.0
  %4029 = vmatprep.subr.mxu0 0.0
  %4030 = vmatpush1.msra.mxu0 0.0
  %4031 = vmatprep.subr.mxu0 0.0
  %4032 = vmatpush1.msra.mxu0 0.0
  %4033 = vmatprep.subr.mxu0 0.0
  %4034 = vmatpush1.msra.mxu0 0.0
  %4035 = vmatprep.subr.mxu0 0.0
  %4036 = vmatpush1.msra.mxu0 0.0
  %4037 = vmatprep.subr.mxu0 0.0
  %4038 = vmatpush1.msra.mxu0 0.0
  %4039 = vmatprep.subr.mxu0 0.0
  %4040 = vmatpush1.msra.mxu0 0.0
  %4041 = vmatprep.subr.mxu0 0.0
  %4042 = vmatpush1.msra.mxu0 0.0
  %4043 = vmatprep.subr.mxu0 0.0
  %4044 = vmatpush1.msra.mxu0 0.0
  %4045 = vmatprep.subr.mxu0 0.0
  %4046 = vmatpush1.msra.mxu0 0.0
  %4047 = vmatprep.subr.mxu0 0.0
  %4048 = vmatpush1.msra.mxu0 0.0
  %4049 = vmatprep.subr.mxu0 0.0
  %4050 = vmatpush1.msra.mxu0 0.0
  %4051 = vmatprep.subr.mxu0 0.0
  %4052 = vmatpush1.msra.mxu0 0.0
  %4053 = vmatprep.subr.mxu0 0.0
  %4054 = vmatpush1.msra.mxu0 0.0
  %4055 = vmatprep.subr.mxu0 0.0
  %4056 = vmatpush1.msra.mxu0 0.0
  %4057 = vmatprep.subr.mxu0 0.0
  %4058 = vmatpush1.msra.mxu0 0.0
  %4059 = vmatprep.subr.mxu0 0.0
  %4060 = vmatpush1.msra.mxu0 0.0
  %4061 = vmatprep.subr.mxu0 0.0
  %4062 = vmatpush1.msra.mxu0 0.0
  %4063 = vmatprep.subr.mxu0 0.0
  %4064 = vmatpush1.msra.mxu0 0.0
  %4065 = vmatprep.subr.mxu0 0.0
  %4066 = vmatpush1.msra.mxu0 0.0
  %4067 = vmatprep.subr.mxu0 0.0
  %4068 = vmatpush1.msra.mxu0 0.0
  %4069 = vmatprep.subr.mxu0 0.0
  %4070 = vmatpush1.msra.mxu0 0.0
  %4071 = vmatprep.subr.mxu0 0.0
  %4072 = vmatpush1.msra.mxu0 0.0
  %4073 = vmatprep.subr.mxu0 0.0
  %4074 = vmatpush1.msra.mxu0 0.0
  %4075 = vmatprep.subr.mxu0 0.0
  %4076 = vmatpush1.msra.mxu0 0.0
  %4077 = vmatprep.mubr.f32.mxu0 0.0
  %4078 = vmatmul.mubr.f32.gmra.mrb[0].mxu0 %v2392
  %v4079 = vpop.f32.mrb[0].mxu0
  %v4080 = vadd.f32 %v4011, %v4079
  %v4081 = vpop.f32.mrb[0].mxu0
  %4082 = vdwg.mxu0
  %v4084 = vsel %vm453, %v3914, 0
  %v4087 = vsel %vm453, %v3997, 0
  %4089 = vmatprep.subr.mxu0 0.0
  %4090 = vmatpush1.xpose.msra.mxu0 %v4087
  %4091 = vmatprep.subr.mxu0 0.0
  %4092 = vmatpush1.xpose.msra.mxu0 0.0
  %4093 = vmatprep.subr.mxu0 0.0
  %4094 = vmatpush1.xpose.msra.mxu0 0.0
  %4095 = vmatprep.subr.mxu0 0.0
  %4096 = vmatpush1.xpose.msra.mxu0 0.0
  %4097 = vmatprep.subr.mxu0 0.0
  %4098 = vmatpush1.xpose.msra.mxu0 0.0
  %4099 = vmatprep.subr.mxu0 0.0
  %4100 = vmatpush1.xpose.msra.mxu0 0.0
  %4101 = vmatprep.subr.mxu0 0.0
  %4102 = vmatpush1.xpose.msra.mxu0 0.0
  %4103 = vmatprep.subr.mxu0 0.0
  %4104 = vmatpush1.xpose.msra.mxu0 0.0
  %4105 = vmatprep.subr.mxu0 0.0
  %4106 = vmatpush1.xpose.msra.mxu0 0.0
  %4107 = vmatprep.subr.mxu0 0.0
  %4108 = vmatpush1.xpose.msra.mxu0 0.0
  %4109 = vmatprep.subr.mxu0 0.0
  %4110 = vmatpush1.xpose.msra.mxu0 0.0
  %4111 = vmatprep.subr.mxu0 0.0
  %4112 = vmatpush1.xpose.msra.mxu0 0.0
  %4113 = vmatprep.subr.mxu0 0.0
  %4114 = vmatpush1.xpose.msra.mxu0 0.0
  %4115 = vmatprep.subr.mxu0 0.0
  %4116 = vmatpush1.xpose.msra.mxu0 0.0
  %4117 = vmatprep.subr.mxu0 0.0
  %4118 = vmatpush1.xpose.msra.mxu0 0.0
  %4119 = vmatprep.subr.mxu0 0.0
  %4120 = vmatpush1.xpose.msra.mxu0 0.0
  %4121 = vmatprep.subr.mxu0 0.0
  %4122 = vmatpush1.xpose.msra.mxu0 0.0
  %4123 = vmatprep.subr.mxu0 0.0
  %4124 = vmatpush1.xpose.msra.mxu0 0.0
  %4125 = vmatprep.subr.mxu0 0.0
  %4126 = vmatpush1.xpose.msra.mxu0 0.0
  %4127 = vmatprep.subr.mxu0 0.0
  %4128 = vmatpush1.xpose.msra.mxu0 0.0
  %4129 = vmatprep.subr.mxu0 0.0
  %4130 = vmatpush1.xpose.msra.mxu0 0.0
  %4131 = vmatprep.subr.mxu0 0.0
  %4132 = vmatpush1.xpose.msra.mxu0 0.0
  %4133 = vmatprep.subr.mxu0 0.0
  %4134 = vmatpush1.xpose.msra.mxu0 0.0
  %4135 = vmatprep.subr.mxu0 0.0
  %4136 = vmatpush1.xpose.msra.mxu0 0.0
  %4137 = vmatprep.subr.mxu0 0.0
  %4138 = vmatpush1.xpose.msra.mxu0 0.0
  %4139 = vmatprep.subr.mxu0 0.0
  %4140 = vmatpush1.xpose.msra.mxu0 0.0
  %4141 = vmatprep.subr.mxu0 0.0
  %4142 = vmatpush1.xpose.msra.mxu0 0.0
  %4143 = vmatprep.subr.mxu0 0.0
  %4144 = vmatpush1.xpose.msra.mxu0 0.0
  %4145 = vmatprep.subr.mxu0 0.0
  %4146 = vmatpush1.xpose.msra.mxu0 0.0
  %4147 = vmatprep.subr.mxu0 0.0
  %4148 = vmatpush1.xpose.msra.mxu0 0.0
  %4149 = vmatprep.subr.mxu0 0.0
  %4150 = vmatpush1.xpose.msra.mxu0 0.0
  %4151 = vmatprep.subr.mxu0 0.0
  %4152 = vmatpush1.xpose.msra.mxu0 0.0
  %4153 = vmatprep.mubr.f32.mxu0 0.0
  %4154 = vmatmul.mubr.f32.gmra.mrb[0].mxu0 %v4084
  %v4155 = vpop.f32.mrb[0].mxu0
  %v4156 = vadd.f32 %v451, %v4155
  %v4157 = vpop.f32.mrb[0].mxu0
  %4158 = vdwg.mxu0
  %v4159 = vsel %vm453, %v4156, -inf
  %4160 = vmax.xlane.f32.xlu0 %v4159
  %v4161 = vpop.xlane.xlu0 %4160
  %v4162 = vsub.f32 %v4156, %v4161
  %v4163 = vmul.f32 %v4162, 1.442695
  %v4164 = vpow.pop %v4163
  %v4165 = vsel %vm453, %v4164, 0.0
  %4166 = vadd.xlane.f32.xlu0 %v4165
  %v4167 = vpop.xlane.xlu0 %4166
  %v4168 = vrcp.pop %v4167
  %v4169 = vmul.f32 %v4164, %v4168
  %v4171 = vsel %vm453, %v4169, 0
  %4173 = vmatprep.subr.mxu0 0.0
  %4174 = vmatpush1.msra.mxu0 %v4080
  %4175 = vmatprep.subr.mxu0 0.0
  %4176 = vmatpush1.msra.mxu0 0.0
  %4177 = vmatprep.subr.mxu0 0.0
  %4178 = vmatpush1.msra.mxu0 0.0
  %4179 = vmatprep.subr.mxu0 0.0
  %4180 = vmatpush1.msra.mxu0 0.0
  %4181 = vmatprep.subr.mxu0 0.0
  %4182 = vmatpush1.msra.mxu0 0.0
  %4183 = vmatprep.subr.mxu0 0.0
  %4184 = vmatpush1.msra.mxu0 0.0
  %4185 = vmatprep.subr.mxu0 0.0
  %4186 = vmatpush1.msra.mxu0 0.0
  %4187 = vmatprep.subr.mxu0 0.0
  %4188 = vmatpush1.msra.mxu0 0.0
  %4189 = vmatprep.subr.mxu0 0.0
  %4190 = vmatpush1.msra.mxu0 0.0
  %4191 = vmatprep.subr.mxu0 0.0
  %4192 = vmatpush1.msra.mxu0 0.0
  %4193 = vmatprep.subr.mxu0 0.0
  %4194 = vmatpush1.msra.mxu0 0.0
  %4195 = vmatprep.subr.mxu0 0.0
  %4196 = vmatpush1.msra.mxu0 0.0
  %4197 = vmatprep.subr.mxu0 0.0
  %4198 = vmatpush1.msra.mxu0 0.0
  %4199 = vmatprep.subr.mxu0 0.0
  %4200 = vmatpush1.msra.mxu0 0.0
  %4201 = vmatprep.subr.mxu0 0.0
  %4202 = vmatpush1.msra.mxu0 0.0
  %4203 = vmatprep.subr.mxu0 0.0
  %4204 = vmatpush1.msra.mxu0 0.0
  %4205 = vmatprep.subr.mxu0 0.0
  %4206 = vmatpush1.msra.mxu0 0.0
  %4207 = vmatprep.subr.mxu0 0.0
  %4208 = vmatpush1.msra.mxu0 0.0
  %4209 = vmatprep.subr.mxu0 0.0
  %4210 = vmatpush1.msra.mxu0 0.0
  %4211 = vmatprep.subr.mxu0 0.0
  %4212 = vmatpush1.msra.mxu0 0.0
  %4213 = vmatprep.subr.mxu0 0.0
  %4214 = vmatpush1.msra.mxu0 0.0
  %4215 = vmatprep.subr.mxu0 0.0
  %4216 = vmatpush1.msra.mxu0 0.0
  %4217 = vmatprep.subr.mxu0 0.0
  %4218 = vmatpush1.msra.mxu0 0.0
  %4219 = vmatprep.subr.mxu0 0.0
  %4220 = vmatpush1.msra.mxu0 0.0
  %4221 = vmatprep.subr.mxu0 0.0
  %4222 = vmatpush1.msra.mxu0 0.0
  %4223 = vmatprep.subr.mxu0 0.0
  %4224 = vmatpush1.msra.mxu0 0.0
  %4225 = vmatprep.subr.mxu0 0.0
  %4226 = vmatpush1.msra.mxu0 0.0
  %4227 = vmatprep.subr.mxu0 0.0
  %4228 = vmatpush1.msra.mxu0 0.0
  %4229 = vmatprep.subr.mxu0 0.0
  %4230 = vmatpush1.msra.mxu0 0.0
  %4231 = vmatprep.subr.mxu0 0.0
  %4232 = vmatpush1.msra.mxu0 0.0
  %4233 = vmatprep.subr.mxu0 0.0
  %4234 = vmatpush1.msra.mxu0 0.0
  %4235 = vmatprep.subr.mxu0 0.0
  %4236 = vmatpush1.msra.mxu0 0.0
  %4237 = vmatprep.mubr.f32.mxu0 0.0
  %4238 = vmatmul.mubr.f32.gmra.mrb[0].mxu0 %v4171
  %v4239 = vpop.f32.mrb[0].mxu0
  %v4240 = vadd.f32 0.0, %v4239
  %v4241 = vpop.f32.mrb[0].mxu0
  %4242 = vdwg.mxu0
  %s4243 = scalar_lea.vmem %s9, 56
  %v4244 = vld [vmem:[%s4243] sm:$0xff]
  %v4246 = vsel %vm453, %v4240, 0
  %4248 = vmatprep.subr.mxu0 0.0
  %4249 = vmatpush1.msra.mxu0 %v4244
  %4250 = vmatprep.subr.mxu0 0.0
  %4251 = vmatpush1.msra.mxu0 0.0
  %4252 = vmatprep.subr.mxu0 0.0
  %4253 = vmatpush1.msra.mxu0 0.0
  %4254 = vmatprep.subr.mxu0 0.0
  %4255 = vmatpush1.msra.mxu0 0.0
  %4256 = vmatprep.subr.mxu0 0.0
  %4257 = vmatpush1.msra.mxu0 0.0
  %4258 = vmatprep.subr.mxu0 0.0
  %4259 = vmatpush1.msra.mxu0 0.0
  %4260 = vmatprep.subr.mxu0 0.0
  %4261 = vmatpush1.msra.mxu0 0.0
  %4262 = vmatprep.subr.mxu0 0.0
  %4263 = vmatpush1.msra.mxu0 0.0
  %4264 = vmatprep.subr.mxu0 0.0
  %4265 = vmatpush1.msra.mxu0 0.0
  %4266 = vmatprep.subr.mxu0 0.0
  %4267 = vmatpush1.msra.mxu0 0.0
  %4268 = vmatprep.subr.mxu0 0.0
  %4269 = vmatpush1.msra.mxu0 0.0
  %4270 = vmatprep.subr.mxu0 0.0
  %4271 = vmatpush1.msra.mxu0 0.0
  %4272 = vmatprep.subr.mxu0 0.0
  %4273 = vmatpush1.msra.mxu0 0.0
  %4274 = vmatprep.subr.mxu0 0.0
  %4275 = vmatpush1.msra.mxu0 0.0
  %4276 = vmatprep.subr.mxu0 0.0
  %4277 = vmatpush1.msra.mxu0 0.0
  %4278 = vmatprep.subr.mxu0 0.0
  %4279 = vmatpush1.msra.mxu0 0.0
  %4280 = vmatprep.subr.mxu0 0.0
  %4281 = vmatpush1.msra.mxu0 0.0
  %4282 = vmatprep.subr.mxu0 0.0
  %4283 = vmatpush1.msra.mxu0 0.0
  %4284 = vmatprep.subr.mxu0 0.0
  %4285 = vmatpush1.msra.mxu0 0.0
  %4286 = vmatprep.subr.mxu0 0.0
  %4287 = vmatpush1.msra.mxu0 0.0
  %4288 = vmatprep.subr.mxu0 0.0
  %4289 = vmatpush1.msra.mxu0 0.0
  %4290 = vmatprep.subr.mxu0 0.0
  %4291 = vmatpush1.msra.mxu0 0.0
  %4292 = vmatprep.subr.mxu0 0.0
  %4293 = vmatpush1.msra.mxu0 0.0
  %4294 = vmatprep.subr.mxu0 0.0
  %4295 = vmatpush1.msra.mxu0 0.0
  %4296 = vmatprep.subr.mxu0 0.0
  %4297 = vmatpush1.msra.mxu0 0.0
  %4298 = vmatprep.subr.mxu0 0.0
  %4299 = vmatpush1.msra.mxu0 0.0
  %4300 = vmatprep.subr.mxu0 0.0
  %4301 = vmatpush1.msra.mxu0 0.0
  %4302 = vmatprep.subr.mxu0 0.0
  %4303 = vmatpush1.msra.mxu0 0.0
  %4304 = vmatprep.subr.mxu0 0.0
  %4305 = vmatpush1.msra.mxu0 0.0
  %4306 = vmatprep.subr.mxu0 0.0
  %4307 = vmatpush1.msra.mxu0 0.0
  %4308 = vmatprep.subr.mxu0 0.0
  %4309 = vmatpush1.msra.mxu0 0.0
  %4310 = vmatprep.subr.mxu0 0.0
  %4311 = vmatpush1.msra.mxu0 0.0
  %4312 = vmatprep.mubr.f32.mxu0 0.0
  %4313 = vmatmul.mubr.f32.gmra.mrb[0].mxu0 %v4246
  %v4314 = vpop.f32.mrb[0].mxu0
  %v4315 = vadd.f32 0.0, %v4314
  %v4316 = vpop.f32.mrb[0].mxu0
  %4317 = vdwg.mxu0
  %v4318 = vadd.f32 %v3833, %v4315
  %v4319 = vlaneseq
  %v4320 = vshrl.u32 %v4319, 7
  %v4321 = vsub.s32 0, %v4320
  %v4322 = vrot.slane %v2377, %v4321
  %v4323 = vadd.f32 %v4318, %v4322
  %v4324 = vadd.f32 %v4323, %v2373
  %v4325 = vsel %vm166, %v4324, 0.0
  %4326 = vadd.xlane.f32.xlu0 %v4325
  %v4327 = vpop.xlane.xlu0 %4326
  %v4328 = vmul.f32 %v4327, %v170
  %v4329 = vsub.f32 %v4324, %v4328
  %v4330 = vmul.f32 %v4329, %v4329
  %v4331 = vsel %vm166, %v4330, 0.0
  %4332 = vadd.xlane.f32.xlu0 %v4331
  %v4333 = vpop.xlane.xlu0 %4332
  %v4334 = vmul.f32 %v4333, %v170
  %v4335 = vadd.f32 %v4334, 1e-12
  %v4336 = vrsqrt.pop %v4335
  %v4337 = vmul.f32 %v4329, %v4336
  %v4338 = vlaneseq
  %v4339 = vshrl.u32 %v4338, 7
  %v4340 = vsub.s32 1, %v4339
  %v4341 = vrot.slane %v2377, %v4340
  %v4342 = vmul.f32 %v4337, %v4341
  %v4343 = vlaneseq
  %v4344 = vshrl.u32 %v4343, 7
  %v4345 = vsub.s32 2, %v4344
  %v4346 = vrot.slane %v2377, %v4345
  %v4347 = vadd.f32 %v4342, %v4346
  %s4348 = scalar_lea.vmem %s10, 32
  %v4349 = vld [vmem:[%s4348] sm:$0xff]
  %v4350 = vld [vmem:[%s4348 + $0x8] sm:$0xff]
  %v4351 = vld [vmem:[%s4348 + $0x10] sm:$0xff]
  %v4352 = vld [vmem:[%s4348 + $0x18] sm:$0xff]
  %s4353 = scalar_lea.vmem %s12, 1
  %v4354 = vld [vmem:[%s4353] sm:$0x1]
  %v4356 = vlaneseq
  %v4357 = vshrl.u32 %v4356, 7
  %v4358 = vsub.s32 0, %v4357
  %v4359 = vrot.slane %v4354, %v4358
  %v4362 = vsel %vm166, %v4347, 0
  %4364 = vmatprep.subr.mxu0 0.0
  %4365 = vmatpush1.msra.mxu0 %v4349
  %4366 = vmatprep.subr.mxu0 0.0
  %4367 = vmatpush1.msra.mxu0 %v4350
  %4368 = vmatprep.subr.mxu0 0.0
  %4369 = vmatpush1.msra.mxu0 %v4351
  %4370 = vmatprep.subr.mxu0 0.0
  %4371 = vmatpush1.msra.mxu0 %v4352
  %4372 = vmatprep.subr.mxu0 0.0
  %4373 = vmatpush1.msra.mxu0 0.0
  %4374 = vmatprep.subr.mxu0 0.0
  %4375 = vmatpush1.msra.mxu0 0.0
  %4376 = vmatprep.subr.mxu0 0.0
  %4377 = vmatpush1.msra.mxu0 0.0
  %4378 = vmatprep.subr.mxu0 0.0
  %4379 = vmatpush1.msra.mxu0 0.0
  %4380 = vmatprep.subr.mxu0 0.0
  %4381 = vmatpush1.msra.mxu0 0.0
  %4382 = vmatprep.subr.mxu0 0.0
  %4383 = vmatpush1.msra.mxu0 0.0
  %4384 = vmatprep.subr.mxu0 0.0
  %4385 = vmatpush1.msra.mxu0 0.0
  %4386 = vmatprep.subr.mxu0 0.0
  %4387 = vmatpush1.msra.mxu0 0.0
  %4388 = vmatprep.subr.mxu0 0.0
  %4389 = vmatpush1.msra.mxu0 0.0
  %4390 = vmatprep.subr.mxu0 0.0
  %4391 = vmatpush1.msra.mxu0 0.0
  %4392 = vmatprep.subr.mxu0 0.0
  %4393 = vmatpush1.msra.mxu0 0.0
  %4394 = vmatprep.subr.mxu0 0.0
  %4395 = vmatpush1.msra.mxu0 0.0
  %4396 = vmatprep.subr.mxu0 0.0
  %4397 = vmatpush1.msra.mxu0 0.0
  %4398 = vmatprep.subr.mxu0 0.0
  %4399 = vmatpush1.msra.mxu0 0.0
  %4400 = vmatprep.subr.mxu0 0.0
  %4401 = vmatpush1.msra.mxu0 0.0
  %4402 = vmatprep.subr.mxu0 0.0
  %4403 = vmatpush1.msra.mxu0 0.0
  %4404 = vmatprep.subr.mxu0 0.0
  %4405 = vmatpush1.msra.mxu0 0.0
  %4406 = vmatprep.subr.mxu0 0.0
  %4407 = vmatpush1.msra.mxu0 0.0
  %4408 = vmatprep.subr.mxu0 0.0
  %4409 = vmatpush1.msra.mxu0 0.0
  %4410 = vmatprep.subr.mxu0 0.0
  %4411 = vmatpush1.msra.mxu0 0.0
  %4412 = vmatprep.subr.mxu0 0.0
  %4413 = vmatpush1.msra.mxu0 0.0
  %4414 = vmatprep.subr.mxu0 0.0
  %4415 = vmatpush1.msra.mxu0 0.0
  %4416 = vmatprep.subr.mxu0 0.0
  %4417 = vmatpush1.msra.mxu0 0.0
  %4418 = vmatprep.subr.mxu0 0.0
  %4419 = vmatpush1.msra.mxu0 0.0
  %4420 = vmatprep.subr.mxu0 0.0
  %4421 = vmatpush1.msra.mxu0 0.0
  %4422 = vmatprep.subr.mxu0 0.0
  %4423 = vmatpush1.msra.mxu0 0.0
  %4424 = vmatprep.subr.mxu0 0.0
  %4425 = vmatpush1.msra.mxu0 0.0
  %4426 = vmatprep.subr.mxu0 0.0
  %4427 = vmatpush1.msra.mxu0 0.0
  %4428 = vmatprep.mubr.f32.mxu0 0.0
  %4429 = vmatmul.mubr.f32.gmra.mrb[0].mxu0 %v4362
  %v4430 = vpop.f32.mrb[0].mxu0
  %v4431 = vadd.f32 %v4359, %v4430
  %v4432 = vpop.f32.mrb[0].mxu0
  %4433 = vdwg.mxu0
  %v4434 = vmul.f32 %v4431, 0.5
  %v4435 = vmul.f32 %v4431, 0.044715
  %v4436 = vmul.f32 %v4435, %v4431
  %v4437 = vmul.f32 %v4436, %v4431
  %v4438 = vadd.f32 %v4431, %v4437
  %v4439 = vmul.f32 %v4438, 0.7978846
  %v4440 = vtanh.pop %v4439
  %v4441 = vadd.f32 %v4440, 1.0
  %v4442 = vmul.f32 %v4434, %v4441
  %s4443 = scalar_lea.vmem %s11, 64
  %v4444 = vld [vmem:[%s4443] sm:$0xff]
  %v4445 = vld [vmem:[%s4443 + $0x8] sm:$0xff]
  %v4446 = vld [vmem:[%s4443 + $0x10] sm:$0xff]
  %v4447 = vld [vmem:[%s4443 + $0x18] sm:$0xff]
  %v4448 = vld [vmem:[%s4443 + $0x20] sm:$0xff]
  %v4449 = vld [vmem:[%s4443 + $0x28] sm:$0xff]
  %v4450 = vld [vmem:[%s4443 + $0x30] sm:$0xff]
  %v4451 = vld [vmem:[%s4443 + $0x38] sm:$0xff]
  %v4452 = vlaneseq
  %v4453 = vshrl.u32 %v4452, 7
  %v4454 = vsub.s32 3, %v4453
  %v4455 = vrot.slane %v2377, %v4454
  %v4457 = vsel %vm2276, %v4442, 0
  %4459 = vmatprep.subr.mxu0 0.0
  %4460 = vmatpush1.msra.mxu0 %v4444
  %4461 = vmatprep.subr.mxu0 0.0
  %4462 = vmatpush1.msra.mxu0 %v4445
  %4463 = vmatprep.subr.mxu0 0.0
  %4464 = vmatpush1.msra.mxu0 %v4446
  %4465 = vmatprep.subr.mxu0 0.0
  %4466 = vmatpush1.msra.mxu0 %v4447
  %4467 = vmatprep.subr.mxu0 0.0
  %4468 = vmatpush1.msra.mxu0 %v4448
  %4469 = vmatprep.subr.mxu0 0.0
  %4470 = vmatpush1.msra.mxu0 %v4449
  %4471 = vmatprep.subr.mxu0 0.0
  %4472 = vmatpush1.msra.mxu0 %v4450
  %4473 = vmatprep.subr.mxu0 0.0
  %4474 = vmatpush1.msra.mxu0 %v4451
  %4475 = vmatprep.subr.mxu0 0.0
  %4476 = vmatpush1.msra.mxu0 0.0
  %4477 = vmatprep.subr.mxu0 0.0
  %4478 = vmatpush1.msra.mxu0 0.0
  %4479 = vmatprep.subr.mxu0 0.0
  %4480 = vmatpush1.msra.mxu0 0.0
  %4481 = vmatprep.subr.mxu0 0.0
  %4482 = vmatpush1.msra.mxu0 0.0
  %4483 = vmatprep.subr.mxu0 0.0
  %4484 = vmatpush1.msra.mxu0 0.0
  %4485 = vmatprep.subr.mxu0 0.0
  %4486 = vmatpush1.msra.mxu0 0.0
  %4487 = vmatprep.subr.mxu0 0.0
  %4488 = vmatpush1.msra.mxu0 0.0
  %4489 = vmatprep.subr.mxu0 0.0
  %4490 = vmatpush1.msra.mxu0 0.0
  %4491 = vmatprep.subr.mxu0 0.0
  %4492 = vmatpush1.msra.mxu0 0.0
  %4493 = vmatprep.subr.mxu0 0.0
  %4494 = vmatpush1.msra.mxu0 0.0
  %4495 = vmatprep.subr.mxu0 0.0
  %4496 = vmatpush1.msra.mxu0 0.0
  %4497 = vmatprep.subr.mxu0 0.0
  %4498 = vmatpush1.msra.mxu0 0.0
  %4499 = vmatprep.subr.mxu0 0.0
  %4500 = vmatpush1.msra.mxu0 0.0
  %4501 = vmatprep.subr.mxu0 0.0
  %4502 = vmatpush1.msra.mxu0 0.0
  %4503 = vmatprep.subr.mxu0 0.0
  %4504 = vmatpush1.msra.mxu0 0.0
  %4505 = vmatprep.subr.mxu0 0.0
  %4506 = vmatpush1.msra.mxu0 0.0
  %4507 = vmatprep.subr.mxu0 0.0
  %4508 = vmatpush1.msra.mxu0 0.0
  %4509 = vmatprep.subr.mxu0 0.0
  %4510 = vmatpush1.msra.mxu0 0.0
  %4511 = vmatprep.subr.mxu0 0.0
  %4512 = vmatpush1.msra.mxu0 0.0
  %4513 = vmatprep.subr.mxu0 0.0
  %4514 = vmatpush1.msra.mxu0 0.0
  %4515 = vmatprep.subr.mxu0 0.0
  %4516 = vmatpush1.msra.mxu0 0.0
  %4517 = vmatprep.subr.mxu0 0.0
  %4518 = vmatpush1.msra.mxu0 0.0
  %4519 = vmatprep.subr.mxu0 0.0
  %4520 = vmatpush1.msra.mxu0 0.0
  %4521 = vmatprep.subr.mxu0 0.0
  %4522 = vmatpush1.msra.mxu0 0.0
  %4523 = vmatprep.mubr.f32.mxu0 0.0
  %4524 = vmatmul.mubr.f32.gmra.mrb[0].mxu0 %v4457
  %v4525 = vpop.f32.mrb[0].mxu0
  %v4526 = vadd.f32 %v4455, %v4525
  %v4527 = vpop.f32.mrb[0].mxu0
  %4528 = vdwg.mxu0
  %v4529 = vadd.f32 %v4526, %v4347
  %v4530 = vsel %vm166, %v4529, 0.0
  %4531 = vadd.xlane.f32.xlu0 %v4530
  %v4532 = vpop.xlane.xlu0 %4531
  %v4533 = vmul.f32 %v4532, %v170
  %v4534 = vsub.f32 %v4529, %v4533
  %v4535 = vmul.f32 %v4534, %v4534
  %v4536 = vsel %vm166, %v4535, 0.0
  %4537 = vadd.xlane.f32.xlu0 %v4536
  %v4538 = vpop.xlane.xlu0 %4537
  %v4539 = vmul.f32 %v4538, %v170
  %v4540 = vadd.f32 %v4539, 1e-12
  %v4541 = vrsqrt.pop %v4540
  %v4542 = vmul.f32 %v4534, %v4541
  %v4543 = vlaneseq
  %v4544 = vshrl.u32 %v4543, 7
  %v4545 = vsub.s32 4, %v4544
  %v4546 = vrot.slane %v2377, %v4545
  %v4547 = vmul.f32 %v4542, %v4546
  %v4548 = vlaneseq
  %v4549 = vshrl.u32 %v4548, 7
  %v4550 = vsub.s32 5, %v4549
  %v4551 = vrot.slane %v2377, %v4550
  %v4552 = vadd.f32 %v4547, %v4551
  %s4553 = scalar_lea.vmem %s14, 16
  %4554 = vst.msk [vmem:[%s4553] sm:$0xff] %vm166, %v4552
  // Predicated region
  $region58: #{encode.1} parent=0 // pred_check
    _
  $region59: #{encode.1} parent=0 // pred_check_branch
    %4556 = sbr.rel (0) target = $region61
  $region60: #{encode.1} parent=0 // pred_region
    _
  $region61: #{encode.1} parent=0 // pred_fallthru
    _
  // Predicated region
  $region62: #{encode.1} parent=0 // pred_check
    _
  $region63: #{encode.1} parent=0 // pred_check_branch
    %4558 = sbr.rel (0) target = $region65
  $region64: #{encode.1} parent=0 // pred_region
    _
  $region65: #{encode.1} parent=0 // pred_fallthru
    _

</llo_original>
